<compile_context>
chip_gen: v7x
topology: tpu7x:2x2x1
jax: 0.10.0
libtpu: 0.0.40
codegen_flags: <defaults>
</compile_context>

<pallas_src>
import functools

import jax
import jax.numpy as jnp
from jax.experimental import pallas as pl
from jax.experimental.pallas import tpu as pltpu


# ----------------------------------------------------------------------------
# Kernel
# ----------------------------------------------------------------------------
def phrase_encode_kernel(x_ref, w_ref, b_ref, o_ref, *, L):
    R = x_ref.shape[0]                 # rows in this block (= Bt * L)
    D = o_ref.shape[1]                 # model dim
    f32 = jnp.float32

    # One wide matmul: (R, D) x (D, 5D) -> (R, 5D), f32 accumulation on MXU.
    y = jnp.dot(x_ref[...], w_ref[...], preferred_element_type=f32)

    # Token position within each sequence (batch rows are flattened together,
    # block boundaries are aligned to multiples of L).
    pos = jax.lax.broadcasted_iota(jnp.int32, (R, 1), 0) % L
    zero = jnp.zeros((), f32)

    # Tap x[t] + folded bias, then accumulate the shifted taps one at a time.
    out = y[:, :D] + b_ref[...]
    # x[t-1]: shift down by 1, valid where pos >= 1.
    out = out + jnp.where(pos >= 1, pltpu.roll(y[:, D:2 * D], 1, axis=0), zero)
    # x[t+1]: shift up by 1 (roll by R-1), valid where pos <= L-2.
    out = out + jnp.where(pos <= L - 2,
                          pltpu.roll(y[:, 2 * D:3 * D], R - 1, axis=0), zero)
    # x[t-2]: shift down by 2, valid where pos >= 2.
    out = out + jnp.where(pos >= 2,
                          pltpu.roll(y[:, 3 * D:4 * D], 2, axis=0), zero)
    # x[t+2]: shift up by 2 (roll by R-2), valid where pos <= L-3.
    out = out + jnp.where(pos <= L - 3,
                          pltpu.roll(y[:, 4 * D:5 * D], R - 2, axis=0), zero)

    o_ref[...] = out.astype(o_ref.dtype)


# ----------------------------------------------------------------------------
# Wrapper helpers
# ----------------------------------------------------------------------------
def _tensorcores_per_chip():
    """Best-effort TensorCore count of the local chip (perf heuristic only)."""
    try:
        dev = jax.devices()[0]
        nc = getattr(dev, "num_cores", None)
        if isinstance(nc, int) and nc > 0:
            return nc
        kind = str(getattr(dev, "device_kind", "")).lower()
        if "v7" in kind or "v4" in kind:
            return 2
    except Exception:
        pass
    return 1


def _pick_block_batch(B, L, target_rows, min_steps):
    """Largest batch-divisor block that fits target_rows, with >= min_steps
    equal grid steps when the chip has more than one TensorCore."""
    divisors = [d for d in range(1, B + 1) if B % d == 0]
    # Row count must be a multiple of 8 (sublane) unless the block is the
    # whole (flattened) array.
    ok = [d for d in divisors if d == B or (d * L) % 8 == 0]
    fitting = [d for d in ok if d * L <= target_rows] or [min(ok)]
    bt = max(fitting)
    if min_steps > 1:
        candidates = [d for d in ok if B // d >= min_steps]
        if candidates:
            bt = min(bt, max(candidates))
    return bt


def _vmem_limit_bytes(rows, D, cbytes, obytes):
    # Per block: x (double-buffered, compute dtype) + out (double-buffered)
    # + wide f32 result (R, 5D) + f32 accumulator (~2 * R * D).
    per_row = D * (2 * cbytes + 2 * obytes + 5 * 4 + 2 * 4)
    est = rows * per_row + 5 * D * D * cbytes + 4 * D + (1 << 20)
    # >= 32 MiB (past the scoped defaults), <= 64 MiB (v7x physical VMEM).
    return int(min(max(2 * est, 32 << 20), 64 << 20))


# ----------------------------------------------------------------------------
# Public entry point
# ----------------------------------------------------------------------------
def phrase_encode(x, w1, b1, w2, b2, w3, b3, wl, bl, *,
                  compute_dtype=jnp.bfloat16, out_dtype=None,
                  target_rows=None):
    """x: (B, L, D). Conv weights in PyTorch layout (out, in, k); wl: (D, 3D)."""
    B, L, D = x.shape
    out_dtype = x.dtype if out_dtype is None else out_dtype
    compute_dtype = x.dtype if compute_dtype is None else compute_dtype
    f32 = jnp.float32

    # ---- Fold conv kernels through the final linear layer (trace time, f32).
    w1f, w2f, w3f, wlf = (w.astype(f32) for w in (w1, w2, w3, wl))
    b1f, b2f, b3f, blf = (b.astype(f32) for b in (b1, b2, b3, bl))

    wl1 = wlf[:, :D].T                      # (D, D)  — uni part of txt_linear
    wl2 = wlf[:, D:2 * D].T                 # (D, D)  — bi  part
    wl3 = wlf[:, 2 * D:].T                  # (D, D)  — tri part
    F0 = w1f[:, :, 0].T @ wl1 + w3f[:, :, 1].T @ wl3    # tap x[t]
    Fm1 = w2f[:, :, 0].T @ wl2                           # tap x[t-1]
    Fp1 = w2f[:, :, 1].T @ wl2                           # tap x[t+1]
    Fm2 = w3f[:, :, 0].T @ wl3                           # tap x[t-2]
    Fp2 = w3f[:, :, 2].T @ wl3                           # tap x[t+2]
    w_wide = jnp.concatenate([F0, Fm1, Fp1, Fm2, Fp2], axis=1)   # (D, 5D)
    b_tot = (b1f[None, :] @ wl1 + b2f[None, :] @ wl2
             + b3f[None, :] @ wl3 + blf[None, :])                # (1, D), f32

    # ---- Operands (matmul inputs in compute_dtype, bias/accumulate in f32).
    x_flat = x.astype(compute_dtype).reshape(B * L, D)
    w_wide = w_wide.astype(compute_dtype)

    # ---- Per-generation block sizing.
    cores = _tensorcores_per_chip()
    if target_rows is None:
        target_rows = 2048 if cores > 1 else 4096
    min_steps = 2 if cores > 1 else 1
    bt = _pick_block_batch(B, L, target_rows, min_steps)
    rows = bt * L
    grid = (B // bt,)

    cbytes = jnp.dtype(compute_dtype).itemsize
    obytes = jnp.dtype(out_dtype).itemsize
    vmem_limit = _vmem_limit_bytes(rows, D, cbytes, obytes)

    out_flat = pl.pallas_call(
        functools.partial(phrase_encode_kernel, L=L),
        out_shape=jax.ShapeDtypeStruct((B * L, D), out_dtype),
        grid_spec=pltpu.PrefetchScalarGridSpec(
            num_scalar_prefetch=0,
            grid=grid,
            in_specs=[
                pl.BlockSpec((rows, D), lambda g: (g, 0)),      # x rows
                pl.BlockSpec((D, 5 * D), lambda g: (0, 0)),     # folded weights
                pl.BlockSpec((1, D), lambda g: (0, 0)),         # folded bias
            ],
            out_specs=pl.BlockSpec((rows, D), lambda g: (g, 0)),
        ),
        compiler_params=pltpu.CompilerParams(
            dimension_semantics=("parallel",),
            vmem_limit_bytes=vmem_limit),
    )(x_flat, w_wide, b_tot)

    return out_flat.reshape(B, L, D)


# ----------------------------------------------------------------------------
# Pure-JAX reference (matches the PyTorch forward exactly)
# ----------------------------------------------------------------------------
def phrase_encode_reference(x, w1, b1, w2, b2, w3, b3, wl, bl):
    words = jnp.transpose(x, (0, 2, 1))                        # (B, D, L) == NCW
    dn = jax.lax.conv_dimension_numbers(words.shape, w1.shape,
                                        ('NCH', 'OIH', 'NCH'))
    uni = jax.lax.conv_general_dilated(
        words, w1, (1,), [(0, 0)], rhs_dilation=(1,),
        dimension_numbers=dn) + b1[None, :, None]
    bi = jax.lax.conv_general_dilated(
        words, w2, (1,), [(1, 1)], rhs_dilation=(2,),
        dimension_numbers=dn) + b2[None, :, None]
    tri = jax.lax.conv_general_dilated(
        words, w3, (1,), [(2, 2)], rhs_dilation=(2,),
        dimension_numbers=dn) + b3[None, :, None]
    phrase = jnp.concatenate([uni, bi, tri], axis=1)           # (B, 3D, L)
    phrase = jnp.transpose(phrase, (0, 2, 1))                  # (B, L, 3D)
    return phrase @ wl.T + bl


if __name__ == "__main__":
    B, L, D = 8, 64, 128

    key = jax.random.PRNGKey(0)
    ks = jax.random.split(key, 9)
    u = lambda k, shape: jax.random.uniform(k, shape, jnp.float32, -0.05, 0.05)

    w1 = u(ks[0], (D, D, 1));  b1 = u(ks[1], (D,))
    w2 = u(ks[2], (D, D, 2));  b2 = u(ks[3], (D,))
    w3 = u(ks[4], (D, D, 3));  b3 = u(ks[5], (D,))
    wl = u(ks[6], (D, 3 * D)); bl = u(ks[7], (D,))
    x = jax.random.normal(ks[8], (B, L, D), jnp.float32)

    ref = jax.block_until_ready(
        phrase_encode_reference(x, w1, b1, w2, b2, w3, b3, wl, bl))

    # f32 matmul operands: tight tolerance (only summation order differs).
    out_f32 = jax.block_until_ready(
        phrase_encode(x, w1, b1, w2, b2, w3, b3, wl, bl,
                      compute_dtype=jnp.float32))
    assert out_f32.shape == (B, L, D), out_f32.shape
    assert jnp.allclose(out_f32, ref, rtol=2e-3, atol=2e-3), \
        float(jnp.max(jnp.abs(out_f32 - ref)))

    # Default path: bf16 matmul operands with f32 accumulation (MXU fast path).
    out = jax.block_until_ready(
        phrase_encode(x, w1, b1, w2, b2, w3, b3, wl, bl))
    assert out.shape == (B, L, D), out.shape
    assert jnp.allclose(out, ref, rtol=5e-2, atol=5e-2), \
        float(jnp.max(jnp.abs(out - ref)))

    print("KERNEL_OK")
</pallas_src>

<mosaic_0001>
module attributes {stable_mosaic.version = 11 : i64} {
  func.func @phrase_encode_kernel(%arg0: i32, %arg1: memref<512x128xf32, #tpu.memory_space<vmem>>, %arg2: memref<128x640xf32, #tpu.memory_space<vmem>>, %arg3: memref<1x128xf32, #tpu.memory_space<vmem>>, %arg4: memref<512x128xf32, #tpu.memory_space<vmem>>) attributes {dimension_semantics = [#tpu.dimension_semantics<parallel>], iteration_bounds = array<i64: 1>, scalar_prefetch = 0 : i64, scratch_operands = 0 : i64, tpu.core_type = #tpu.core_type<tc>, window_params = [{transform_indices = @transform_0, window_bounds = array<i64: 512, 128>}, {pipeline_mode = #tpu.pipeline_mode<synchronous>, transform_indices = @transform_1, window_bounds = array<i64: 128, 640>}, {pipeline_mode = #tpu.pipeline_mode<synchronous>, transform_indices = @transform_2, window_bounds = array<i64: 1, 128>}, {transform_indices = @transform_3, window_bounds = array<i64: 512, 128>}]} {
    %c0 = arith.constant 0 : index
    %c0_0 = arith.constant 0 : index
    %0 = vector.load %arg1[%c0, %c0_0] : memref<512x128xf32, #tpu.memory_space<vmem>>, vector<512x128xf32>
    %c0_1 = arith.constant 0 : index
    %c0_2 = arith.constant 0 : index
    %1 = vector.load %arg2[%c0_1, %c0_2] : memref<128x640xf32, #tpu.memory_space<vmem>>, vector<128x640xf32>
    %cst = arith.constant dense<0.000000e+00> : vector<512x640xf32>
    %2 = tpu.matmul %0, %1, %cst {dimension_numbers = #tpu.dot_dimension_numbers<[1], [0], [0], [1], [0, 0, 1, 1], [], []>} : vector<512x128xf32>, vector<128x640xf32>, vector<512x640xf32> -> vector<512x640xf32>
    %3 = tpu.iota {dimensions = array<i32: 0>} : vector<512x1xi32>
    %c64_i32 = arith.constant 64 : i32
    %c0_i32 = arith.constant 0 : i32
    %4 = arith.cmpi eq, %c64_i32, %c0_i32 : i32
    %c1_i32 = arith.constant 1 : i32
    %5 = arith.select %4, %c1_i32, %c64_i32 : i32
    %6 = vector.broadcast %5 : i32 to vector<512x1xi32>
    %7 = arith.remsi %3, %6 : vector<512x1xi32>
    %c0_i32_3 = arith.constant 0 : i32
    %8 = vector.broadcast %c0_i32_3 : i32 to vector<512x1xi32>
    %9 = arith.cmpi ne, %7, %8 : vector<512x1xi32>
    %c0_i32_4 = arith.constant 0 : i32
    %10 = vector.broadcast %c0_i32_4 : i32 to vector<512x1xi32>
    %11 = arith.cmpi slt, %7, %10 : vector<512x1xi32>
    %c0_i32_5 = arith.constant 0 : i32
    %12 = arith.cmpi slt, %5, %c0_i32_5 : i32
    %13 = vector.broadcast %12 : i1 to vector<512x1xi1>
    %14 = vector.broadcast %13 : vector<512x1xi1> to vector<512x1xi1>
    %15 = arith.xori %11, %14 : vector<512x1xi1>
    %16 = arith.andi %15, %9 : vector<512x1xi1>
    %17 = vector.broadcast %5 : i32 to vector<512x1xi32>
    %18 = arith.addi %7, %17 : vector<512x1xi32>
    %19 = arith.select %16, %18, %7 : vector<512x1xi1>, vector<512x1xi32>
    %20 = vector.extract_strided_slice %2 {offsets = [0, 0], sizes = [512, 128], strides = [1, 1]} : vector<512x640xf32> to vector<512x128xf32>
    %c0_6 = arith.constant 0 : index
    %c0_7 = arith.constant 0 : index
    %21 = vector.load %arg3[%c0_6, %c0_7] : memref<1x128xf32, #tpu.memory_space<vmem>>, vector<1x128xf32>
    %22 = vector.broadcast %21 : vector<1x128xf32> to vector<512x128xf32>
    %23 = arith.addf %20, %22 : vector<512x128xf32>
    %c1_i32_8 = arith.constant 1 : i32
    %24 = vector.broadcast %c1_i32_8 : i32 to vector<512x1xi32>
    %25 = arith.cmpi sge, %19, %24 : vector<512x1xi32>
    %26 = vector.extract_strided_slice %2 {offsets = [0, 128], sizes = [512, 128], strides = [1, 1]} : vector<512x640xf32> to vector<512x128xf32>
    %c1_i32_9 = arith.constant 1 : i32
    %27 = tpu.dynamic_rotate %26 by %c1_i32_9 dim 0 : vector<512x128xf32>, i32 -> vector<512x128xf32>
    %cst_10 = arith.constant 0.000000e+00 : f32
    %28 = vector.shape_cast %25 : vector<512x1xi1> to vector<512x1xi1>
    %29 = vector.broadcast %28 : vector<512x1xi1> to vector<512x128xi1>
    %30 = vector.broadcast %cst_10 : f32 to vector<512x128xf32>
    %31 = arith.select %29, %27, %30 : vector<512x128xi1>, vector<512x128xf32>
    %32 = arith.addf %23, %31 : vector<512x128xf32>
    %c62_i32 = arith.constant 62 : i32
    %33 = vector.broadcast %c62_i32 : i32 to vector<512x1xi32>
    %34 = arith.cmpi sle, %19, %33 : vector<512x1xi32>
    %35 = vector.extract_strided_slice %2 {offsets = [0, 256], sizes = [512, 128], strides = [1, 1]} : vector<512x640xf32> to vector<512x128xf32>
    %c511_i32 = arith.constant 511 : i32
    %36 = tpu.dynamic_rotate %35 by %c511_i32 dim 0 : vector<512x128xf32>, i32 -> vector<512x128xf32>
    %cst_11 = arith.constant 0.000000e+00 : f32
    %37 = vector.shape_cast %34 : vector<512x1xi1> to vector<512x1xi1>
    %38 = vector.broadcast %37 : vector<512x1xi1> to vector<512x128xi1>
    %39 = vector.broadcast %cst_11 : f32 to vector<512x128xf32>
    %40 = arith.select %38, %36, %39 : vector<512x128xi1>, vector<512x128xf32>
    %41 = arith.addf %32, %40 : vector<512x128xf32>
    %c2_i32 = arith.constant 2 : i32
    %42 = vector.broadcast %c2_i32 : i32 to vector<512x1xi32>
    %43 = arith.cmpi sge, %19, %42 : vector<512x1xi32>
    %44 = vector.extract_strided_slice %2 {offsets = [0, 384], sizes = [512, 128], strides = [1, 1]} : vector<512x640xf32> to vector<512x128xf32>
    %c2_i32_12 = arith.constant 2 : i32
    %45 = tpu.dynamic_rotate %44 by %c2_i32_12 dim 0 : vector<512x128xf32>, i32 -> vector<512x128xf32>
    %cst_13 = arith.constant 0.000000e+00 : f32
    %46 = vector.shape_cast %43 : vector<512x1xi1> to vector<512x1xi1>
    %47 = vector.broadcast %46 : vector<512x1xi1> to vector<512x128xi1>
    %48 = vector.broadcast %cst_13 : f32 to vector<512x128xf32>
    %49 = arith.select %47, %45, %48 : vector<512x128xi1>, vector<512x128xf32>
    %50 = arith.addf %41, %49 : vector<512x128xf32>
    %c61_i32 = arith.constant 61 : i32
    %51 = vector.broadcast %c61_i32 : i32 to vector<512x1xi32>
    %52 = arith.cmpi sle, %19, %51 : vector<512x1xi32>
    %53 = vector.extract_strided_slice %2 {offsets = [0, 512], sizes = [512, 128], strides = [1, 1]} : vector<512x640xf32> to vector<512x128xf32>
    %c510_i32 = arith.constant 510 : i32
    %54 = tpu.dynamic_rotate %53 by %c510_i32 dim 0 : vector<512x128xf32>, i32 -> vector<512x128xf32>
    %cst_14 = arith.constant 0.000000e+00 : f32
    %55 = vector.shape_cast %52 : vector<512x1xi1> to vector<512x1xi1>
    %56 = vector.broadcast %55 : vector<512x1xi1> to vector<512x128xi1>
    %57 = vector.broadcast %cst_14 : f32 to vector<512x128xf32>
    %58 = arith.select %56, %54, %57 : vector<512x128xi1>, vector<512x128xf32>
    %59 = arith.addf %50, %58 : vector<512x128xf32>
    %c0_15 = arith.constant 0 : index
    %c0_16 = arith.constant 0 : index
    %60 = vector.load %arg4[%c0_15, %c0_16] : memref<512x128xf32, #tpu.memory_space<vmem>>, vector<512x128xf32>
    tpu.vector_store %arg4[%c0_15, %c0_16], %59 {strides = array<i32>} : memref<512x128xf32, #tpu.memory_space<vmem>>, vector<512x128xf32>,
    return
  }
  func.func @transform_0(%arg0: i32) -> (i32, i32) {
    %c0_i32 = arith.constant 0 : i32
    %c0_i32_0 = arith.constant 0 : i32
    return %arg0, %c0_i32 : i32, i32
  }
  func.func @transform_1(%arg0: i32) -> (i32, i32) {
    %c0_i32 = arith.constant 0 : i32
    %c0_i32_0 = arith.constant 0 : i32
    %c0_i32_1 = arith.constant 0 : i32
    return %c0_i32, %c0_i32_0 : i32, i32
  }
  func.func @transform_2(%arg0: i32) -> (i32, i32) {
    %c0_i32 = arith.constant 0 : i32
    %c0_i32_0 = arith.constant 0 : i32
    %c0_i32_1 = arith.constant 0 : i32
    return %c0_i32, %c0_i32_0 : i32, i32
  }
  func.func @transform_3(%arg0: i32) -> (i32, i32) {
    %c0_i32 = arith.constant 0 : i32
    %c0_i32_0 = arith.constant 0 : i32
    return %arg0, %c0_i32 : i32, i32
  }
}

</mosaic_0001>

<llo_original>
// kernel: tpu_custom_call.1
$region0: #{tpu_custom_call.1}
  #allocation0 [shape = 'u32[]', space=smem, size = 0x4, offset = 0x4, fixed_abs, tag = 'smem constant byte address 0x4 - core index']
  #allocation1 [shape = 'u32[144,128]{1,0:T(1,128)}', space=vmem, size = 0x12000, scoped, tag = 'internal scratch']
  %s0 = inlined_call_operand.hbm [shape: f32[512,128], index: 0, kind: input, shape index: {}]
  %s1 = inlined_call_operand.hbm [shape: f32[128,640], index: 1, kind: input, shape index: {}]
  %s2 = inlined_call_operand.vmem [shape: f32[1,128], index: 2, kind: input, shape index: {}]
  %s3 = inlined_call_operand.hbm [shape: f32[512,128], index: 3, kind: output, shape index: {}]
  %s4 = sld [smem:[#allocation0]]
  $region30: #{tpu_custom_call.1} parent=0
    _
  %s6 = ssub.s32 1, %s4
  %s7 = scalar_select 0, %s6, %s4
  $region1: #{tpu_custom_call.1} parent=0
    #allocation2 [shape = 'u8[262144]{0}', space=vmem, size = 0x40000, scoped, tag = 'input window, operand 0, single buffered']
    #allocation3 [shape = 's32[1]{0}', space=sflag, size = 0x4, scoped, tag = 'scoped memory for tpu_custom_call.1']
    #allocation4 [shape = 's32[1]{0}', space=sflag, size = 0x4, scoped, tag = 'scoped memory for tpu_custom_call.1']
    #allocation5 [shape = 'u8[327680]{0}', space=vmem, size = 0x50000, scoped, tag = 'input window, operand 1, single buffered']
    #allocation6 [shape = 's32[1]{0}', space=sflag, size = 0x4, scoped, tag = 'scoped memory for tpu_custom_call.1']
    #allocation7 [shape = 'u8[262144]{0}', space=vmem, size = 0x40000, scoped, tag = 'output window, operand 0, single buffered']
    %8 = vsyncpa [#allocation3], 0
    %9 = vsyncpa [#allocation6], 0
    %10 = vsyncpa [#allocation4], 0
    // Predicated region
    $region2: #{tpu_custom_call.1} parent=1 // pred_check
      _
    $region3: #{tpu_custom_call.1} parent=1 // pred_check_branch
      %12 = sbr.rel (0) target = $region5
    $region4: #{tpu_custom_call.1} parent=1 // pred_region
      %s14 = ssub.s32 8192, 8192
      %15 = vsyncadd [#allocation3], %s14
      %s16 = sshll.u32 [#allocation2], 4
      %s17 = int_to_ptr.vmem [resolvable:$true] %s16
      %22 = dma.hbm_to_vmem [thread:$0]  %s0, 8192, %s17, [#allocation3], 128, 128, 8
    $region5: #{tpu_custom_call.1} parent=1 // pred_fallthru
      _
    // Predicated region
    $region6: #{tpu_custom_call.1} parent=1 // pred_check
      _
    $region7: #{tpu_custom_call.1} parent=1 // pred_check_branch
      %24 = sbr.rel (0) target = $region9
    $region8: #{tpu_custom_call.1} parent=1 // pred_region
      %s26 = ssub.s32 10240, 10240
      %27 = vsyncadd [#allocation6], %s26
      %s28 = sshll.u32 [#allocation5], 4
      %s29 = int_to_ptr.vmem [resolvable:$true] %s28
      %34 = dma.hbm_to_vmem [thread:$0]  %s1, 10240, %s29, [#allocation6], 640, 640, 40
    $region9: #{tpu_custom_call.1} parent=1 // pred_fallthru
      _
    // Predicated region
    $region10: #{tpu_custom_call.1} parent=1 // pred_check
      _
    $region11: #{tpu_custom_call.1} parent=1 // pred_check_branch
      %36 = sbr.rel (0) target = $region13
    $region12: #{tpu_custom_call.1} parent=1 // pred_region
      _
    $region13: #{tpu_custom_call.1} parent=1 // pred_fallthru
      _
    // Predicated region
    $region14: #{tpu_custom_call.1} parent=1 // pred_check
      _
    $region15: #{tpu_custom_call.1} parent=1 // pred_check_branch
      %38 = sbr.rel (0) target = $region17
    $region16: #{tpu_custom_call.1} parent=1 // pred_region
      %39 = dma.done [#allocation3], 8192
    $region17: #{tpu_custom_call.1} parent=1 // pred_fallthru
      _
    // Predicated region
    $region18: #{tpu_custom_call.1} parent=1 // pred_check
      _
    $region19: #{tpu_custom_call.1} parent=1 // pred_check_branch
      %41 = sbr.rel (0) target = $region21
    $region20: #{tpu_custom_call.1} parent=1 // pred_region
      %42 = dma.done [#allocation6], 10240
    $region21: #{tpu_custom_call.1} parent=1 // pred_fallthru
      _
    %v43 = vld [vmem:[#allocation2] sm:$0xff]
    %v44 = vld [vmem:[#allocation2 + $0x8] sm:$0xff]
    %v45 = vld [vmem:[#allocation2 + $0x10] sm:$0xff]
    %v46 = vld [vmem:[#allocation2 + $0x18] sm:$0xff]
    %v47 = vld [vmem:[#allocation2 + $0x20] sm:$0xff]
    %v48 = vld [vmem:[#allocation2 + $0x28] sm:$0xff]
    %v49 = vld [vmem:[#allocation2 + $0x30] sm:$0xff]
    %v50 = vld [vmem:[#allocation2 + $0x38] sm:$0xff]
    %v51 = vld [vmem:[#allocation2 + $0x40] sm:$0xff]
    %v52 = vld [vmem:[#allocation2 + $0x48] sm:$0xff]
    %v53 = vld [vmem:[#allocation2 + $0x50] sm:$0xff]
    %v54 = vld [vmem:[#allocation2 + $0x58] sm:$0xff]
    %v55 = vld [vmem:[#allocation2 + $0x60] sm:$0xff]
    %v56 = vld [vmem:[#allocation2 + $0x68] sm:$0xff]
    %v57 = vld [vmem:[#allocation2 + $0x70] sm:$0xff]
    %v58 = vld [vmem:[#allocation2 + $0x78] sm:$0xff]
    %v59 = vld [vmem:[#allocation2 + $0x80] sm:$0xff]
    %v60 = vld [vmem:[#allocation2 + $0x88] sm:$0xff]
    %v61 = vld [vmem:[#allocation2 + $0x90] sm:$0xff]
    %v62 = vld [vmem:[#allocation2 + $0x98] sm:$0xff]
    %v63 = vld [vmem:[#allocation2 + $0xa0] sm:$0xff]
    %v64 = vld [vmem:[#allocation2 + $0xa8] sm:$0xff]
    %v65 = vld [vmem:[#allocation2 + $0xb0] sm:$0xff]
    %v66 = vld [vmem:[#allocation2 + $0xb8] sm:$0xff]
    %v67 = vld [vmem:[#allocation2 + $0xc0] sm:$0xff]
    %v68 = vld [vmem:[#allocation2 + $0xc8] sm:$0xff]
    %v69 = vld [vmem:[#allocation2 + $0xd0] sm:$0xff]
    %v70 = vld [vmem:[#allocation2 + $0xd8] sm:$0xff]
    %v71 = vld [vmem:[#allocation2 + $0xe0] sm:$0xff]
    %v72 = vld [vmem:[#allocation2 + $0xe8] sm:$0xff]
    %v73 = vld [vmem:[#allocation2 + $0xf0] sm:$0xff]
    %v74 = vld [vmem:[#allocation2 + $0xf8] sm:$0xff]
    %v75 = vld [vmem:[#allocation2 + $0x100] sm:$0xff]
    %v76 = vld [vmem:[#allocation2 + $0x108] sm:$0xff]
    %v77 = vld [vmem:[#allocation2 + $0x110] sm:$0xff]
    %v78 = vld [vmem:[#allocation2 + $0x118] sm:$0xff]
    %v79 = vld [vmem:[#allocation2 + $0x120] sm:$0xff]
    %v80 = vld [vmem:[#allocation2 + $0x128] sm:$0xff]
    %v81 = vld [vmem:[#allocation2 + $0x130] sm:$0xff]
    %v82 = vld [vmem:[#allocation2 + $0x138] sm:$0xff]
    %v83 = vld [vmem:[#allocation2 + $0x140] sm:$0xff]
    %v84 = vld [vmem:[#allocation2 + $0x148] sm:$0xff]
    %v85 = vld [vmem:[#allocation2 + $0x150] sm:$0xff]
    %v86 = vld [vmem:[#allocation2 + $0x158] sm:$0xff]
    %v87 = vld [vmem:[#allocation2 + $0x160] sm:$0xff]
    %v88 = vld [vmem:[#allocation2 + $0x168] sm:$0xff]
    %v89 = vld [vmem:[#allocation2 + $0x170] sm:$0xff]
    %v90 = vld [vmem:[#allocation2 + $0x178] sm:$0xff]
    %v91 = vld [vmem:[#allocation2 + $0x180] sm:$0xff]
    %v92 = vld [vmem:[#allocation2 + $0x188] sm:$0xff]
    %v93 = vld [vmem:[#allocation2 + $0x190] sm:$0xff]
    %v94 = vld [vmem:[#allocation2 + $0x198] sm:$0xff]
    %v95 = vld [vmem:[#allocation2 + $0x1a0] sm:$0xff]
    %v96 = vld [vmem:[#allocation2 + $0x1a8] sm:$0xff]
    %v97 = vld [vmem:[#allocation2 + $0x1b0] sm:$0xff]
    %v98 = vld [vmem:[#allocation2 + $0x1b8] sm:$0xff]
    %v99 = vld [vmem:[#allocation2 + $0x1c0] sm:$0xff]
    %v100 = vld [vmem:[#allocation2 + $0x1c8] sm:$0xff]
    %v101 = vld [vmem:[#allocation2 + $0x1d0] sm:$0xff]
    %v102 = vld [vmem:[#allocation2 + $0x1d8] sm:$0xff]
    %v103 = vld [vmem:[#allocation2 + $0x1e0] sm:$0xff]
    %v104 = vld [vmem:[#allocation2 + $0x1e8] sm:$0xff]
    %v105 = vld [vmem:[#allocation2 + $0x1f0] sm:$0xff]
    %v106 = vld [vmem:[#allocation2 + $0x1f8] sm:$0xff]
    %v107 = vld [vmem:[#allocation5] sm:$0xff]
    %v108 = vld [vmem:[#allocation5 + $0x8] sm:$0xff]
    %v109 = vld [vmem:[#allocation5 + $0x10] sm:$0xff]
    %v110 = vld [vmem:[#allocation5 + $0x18] sm:$0xff]
    %v111 = vld [vmem:[#allocation5 + $0x20] sm:$0xff]
    %v112 = vld [vmem:[#allocation5 + $0x28] sm:$0xff]
    %v113 = vld [vmem:[#allocation5 + $0x30] sm:$0xff]
    %v114 = vld [vmem:[#allocation5 + $0x38] sm:$0xff]
    %v115 = vld [vmem:[#allocation5 + $0x40] sm:$0xff]
    %v116 = vld [vmem:[#allocation5 + $0x48] sm:$0xff]
    %v117 = vld [vmem:[#allocation5 + $0x50] sm:$0xff]
    %v118 = vld [vmem:[#allocation5 + $0x58] sm:$0xff]
    %v119 = vld [vmem:[#allocation5 + $0x60] sm:$0xff]
    %v120 = vld [vmem:[#allocation5 + $0x68] sm:$0xff]
    %v121 = vld [vmem:[#allocation5 + $0x70] sm:$0xff]
    %v122 = vld [vmem:[#allocation5 + $0x78] sm:$0xff]
    %v123 = vld [vmem:[#allocation5 + $0x80] sm:$0xff]
    %v124 = vld [vmem:[#allocation5 + $0x88] sm:$0xff]
    %v125 = vld [vmem:[#allocation5 + $0x90] sm:$0xff]
    %v126 = vld [vmem:[#allocation5 + $0x98] sm:$0xff]
    %v127 = vld [vmem:[#allocation5 + $0xa0] sm:$0xff]
    %v128 = vld [vmem:[#allocation5 + $0xa8] sm:$0xff]
    %v129 = vld [vmem:[#allocation5 + $0xb0] sm:$0xff]
    %v130 = vld [vmem:[#allocation5 + $0xb8] sm:$0xff]
    %v131 = vld [vmem:[#allocation5 + $0xc0] sm:$0xff]
    %v132 = vld [vmem:[#allocation5 + $0xc8] sm:$0xff]
    %v133 = vld [vmem:[#allocation5 + $0xd0] sm:$0xff]
    %v134 = vld [vmem:[#allocation5 + $0xd8] sm:$0xff]
    %v135 = vld [vmem:[#allocation5 + $0xe0] sm:$0xff]
    %v136 = vld [vmem:[#allocation5 + $0xe8] sm:$0xff]
    %v137 = vld [vmem:[#allocation5 + $0xf0] sm:$0xff]
    %v138 = vld [vmem:[#allocation5 + $0xf8] sm:$0xff]
    %v139 = vld [vmem:[#allocation5 + $0x100] sm:$0xff]
    %v140 = vld [vmem:[#allocation5 + $0x108] sm:$0xff]
    %v141 = vld [vmem:[#allocation5 + $0x110] sm:$0xff]
    %v142 = vld [vmem:[#allocation5 + $0x118] sm:$0xff]
    %v143 = vld [vmem:[#allocation5 + $0x120] sm:$0xff]
    %v144 = vld [vmem:[#allocation5 + $0x128] sm:$0xff]
    %v145 = vld [vmem:[#allocation5 + $0x130] sm:$0xff]
    %v146 = vld [vmem:[#allocation5 + $0x138] sm:$0xff]
    %v147 = vld [vmem:[#allocation5 + $0x140] sm:$0xff]
    %v148 = vld [vmem:[#allocation5 + $0x148] sm:$0xff]
    %v149 = vld [vmem:[#allocation5 + $0x150] sm:$0xff]
    %v150 = vld [vmem:[#allocation5 + $0x158] sm:$0xff]
    %v151 = vld [vmem:[#allocation5 + $0x160] sm:$0xff]
    %v152 = vld [vmem:[#allocation5 + $0x168] sm:$0xff]
    %v153 = vld [vmem:[#allocation5 + $0x170] sm:$0xff]
    %v154 = vld [vmem:[#allocation5 + $0x178] sm:$0xff]
    %v155 = vld [vmem:[#allocation5 + $0x180] sm:$0xff]
    %v156 = vld [vmem:[#allocation5 + $0x188] sm:$0xff]
    %v157 = vld [vmem:[#allocation5 + $0x190] sm:$0xff]
    %v158 = vld [vmem:[#allocation5 + $0x198] sm:$0xff]
    %v159 = vld [vmem:[#allocation5 + $0x1a0] sm:$0xff]
    %v160 = vld [vmem:[#allocation5 + $0x1a8] sm:$0xff]
    %v161 = vld [vmem:[#allocation5 + $0x1b0] sm:$0xff]
    %v162 = vld [vmem:[#allocation5 + $0x1b8] sm:$0xff]
    %v163 = vld [vmem:[#allocation5 + $0x1c0] sm:$0xff]
    %v164 = vld [vmem:[#allocation5 + $0x1c8] sm:$0xff]
    %v165 = vld [vmem:[#allocation5 + $0x1d0] sm:$0xff]
    %v166 = vld [vmem:[#allocation5 + $0x1d8] sm:$0xff]
    %v167 = vld [vmem:[#allocation5 + $0x1e0] sm:$0xff]
    %v168 = vld [vmem:[#allocation5 + $0x1e8] sm:$0xff]
    %v169 = vld [vmem:[#allocation5 + $0x1f0] sm:$0xff]
    %v170 = vld [vmem:[#allocation5 + $0x1f8] sm:$0xff]
    %v171 = vld [vmem:[#allocation5 + $0x200] sm:$0xff]
    %v172 = vld [vmem:[#allocation5 + $0x208] sm:$0xff]
    %v173 = vld [vmem:[#allocation5 + $0x210] sm:$0xff]
    %v174 = vld [vmem:[#allocation5 + $0x218] sm:$0xff]
    %v175 = vld [vmem:[#allocation5 + $0x220] sm:$0xff]
    %v176 = vld [vmem:[#allocation5 + $0x228] sm:$0xff]
    %v177 = vld [vmem:[#allocation5 + $0x230] sm:$0xff]
    %v178 = vld [vmem:[#allocation5 + $0x238] sm:$0xff]
    %v179 = vld [vmem:[#allocation5 + $0x240] sm:$0xff]
    %v180 = vld [vmem:[#allocation5 + $0x248] sm:$0xff]
    %v181 = vld [vmem:[#allocation5 + $0x250] sm:$0xff]
    %v182 = vld [vmem:[#allocation5 + $0x258] sm:$0xff]
    %v183 = vld [vmem:[#allocation5 + $0x260] sm:$0xff]
    %v184 = vld [vmem:[#allocation5 + $0x268] sm:$0xff]
    %v185 = vld [vmem:[#allocation5 + $0x270] sm:$0xff]
    %v186 = vld [vmem:[#allocation5 + $0x278] sm:$0xff]
    %187 = vmatprep.subr.mxu0 %v108
    %188 = vmatpush1.msra.mxu0 %v107
    %189 = vmatprep.subr.mxu0 %v113
    %190 = vmatpush1.msra.mxu0 %v112
    %191 = vmatprep.subr.mxu0 %v118
    %192 = vmatpush1.msra.mxu0 %v117
    %193 = vmatprep.subr.mxu0 %v123
    %194 = vmatpush1.msra.mxu0 %v122
    %195 = vmatprep.subr.mxu0 %v128
    %196 = vmatpush1.msra.mxu0 %v127
    %197 = vmatprep.subr.mxu0 %v133
    %198 = vmatpush1.msra.mxu0 %v132
    %199 = vmatprep.subr.mxu0 %v138
    %200 = vmatpush1.msra.mxu0 %v137
    %201 = vmatprep.subr.mxu0 %v143
    %202 = vmatpush1.msra.mxu0 %v142
    %203 = vmatprep.subr.mxu0 %v148
    %204 = vmatpush1.msra.mxu0 %v147
    %205 = vmatprep.subr.mxu0 %v153
    %206 = vmatpush1.msra.mxu0 %v152
    %207 = vmatprep.subr.mxu0 %v158
    %208 = vmatpush1.msra.mxu0 %v157
    %209 = vmatprep.subr.mxu0 %v163
    %210 = vmatpush1.msra.mxu0 %v162
    %211 = vmatprep.subr.mxu0 %v168
    %212 = vmatpush1.msra.mxu0 %v167
    %213 = vmatprep.subr.mxu0 %v173
    %214 = vmatpush1.msra.mxu0 %v172
    %215 = vmatprep.subr.mxu0 %v178
    %216 = vmatpush1.msra.mxu0 %v177
    %217 = vmatprep.subr.mxu0 %v183
    %218 = vmatpush1.msra.mxu0 %v182
    %219 = vmatprep.subr.mxu0 0.0
    %220 = vmatpush1.msra.mxu0 0.0
    %221 = vmatprep.subr.mxu0 0.0
    %222 = vmatpush1.msra.mxu0 0.0
    %223 = vmatprep.subr.mxu0 0.0
    %224 = vmatpush1.msra.mxu0 0.0
    %225 = vmatprep.subr.mxu0 0.0
    %226 = vmatpush1.msra.mxu0 0.0
    %227 = vmatprep.subr.mxu0 0.0
    %228 = vmatpush1.msra.mxu0 0.0
    %229 = vmatprep.subr.mxu0 0.0
    %230 = vmatpush1.msra.mxu0 0.0
    %231 = vmatprep.subr.mxu0 0.0
    %232 = vmatpush1.msra.mxu0 0.0
    %233 = vmatprep.subr.mxu0 0.0
    %234 = vmatpush1.msra.mxu0 0.0
    %235 = vmatprep.subr.mxu0 0.0
    %236 = vmatpush1.msra.mxu0 0.0
    %237 = vmatprep.subr.mxu0 0.0
    %238 = vmatpush1.msra.mxu0 0.0
    %239 = vmatprep.subr.mxu0 0.0
    %240 = vmatpush1.msra.mxu0 0.0
    %241 = vmatprep.subr.mxu0 0.0
    %242 = vmatpush1.msra.mxu0 0.0
    %243 = vmatprep.subr.mxu0 0.0
    %244 = vmatpush1.msra.mxu0 0.0
    %245 = vmatprep.subr.mxu0 0.0
    %246 = vmatpush1.msra.mxu0 0.0
    %247 = vmatprep.subr.mxu0 0.0
    %248 = vmatpush1.msra.mxu0 0.0
    %249 = vmatprep.subr.mxu0 0.0
    %250 = vmatpush1.msra.mxu0 0.0
    %251 = vmatprep.mubr.f32.mxu0 0.0
    %252 = vmatmul.mubr.f32.gmra.mrb[0].mxu0 %v43
    %v253 = vpop.f32.mrb[0].mxu0
    %v254 = vadd.f32 0.0, %v253
    %v255 = vpop.f32.mrb[0].mxu0
    %v256 = vadd.f32 0.0, %v255
    %257 = vmatprep.mubr.f32.mxu0 0.0
    %258 = vmatmul.mubr.f32.gmra.mrb[0].mxu0 %v44
    %v259 = vpop.f32.mrb[0].mxu0
    %v260 = vadd.f32 0.0, %v259
    %v261 = vpop.f32.mrb[0].mxu0
    %v262 = vadd.f32 0.0, %v261
    %263 = vmatprep.mubr.f32.mxu0 0.0
    %264 = vmatmul.mubr.f32.gmra.mrb[0].mxu0 %v45
    %v265 = vpop.f32.mrb[0].mxu0
    %v266 = vadd.f32 0.0, %v265
    %v267 = vpop.f32.mrb[0].mxu0
    %v268 = vadd.f32 0.0, %v267
    %269 = vmatprep.mubr.f32.mxu0 0.0
    %270 = vmatmul.mubr.f32.gmra.mrb[0].mxu0 %v46
    %v271 = vpop.f32.mrb[0].mxu0
    %v272 = vadd.f32 0.0, %v271
    %v273 = vpop.f32.mrb[0].mxu0
    %v274 = vadd.f32 0.0, %v273
    %275 = vmatprep.mubr.f32.mxu0 0.0
    %276 = vmatmul.mubr.f32.gmra.mrb[0].mxu0 %v47
    %v277 = vpop.f32.mrb[0].mxu0
    %v278 = vadd.f32 0.0, %v277
    %v279 = vpop.f32.mrb[0].mxu0
    %v280 = vadd.f32 0.0, %v279
    %281 = vmatprep.mubr.f32.mxu0 0.0
    %282 = vmatmul.mubr.f32.gmra.mrb[0].mxu0 %v48
    %v283 = vpop.f32.mrb[0].mxu0
    %v284 = vadd.f32 0.0, %v283
    %v285 = vpop.f32.mrb[0].mxu0
    %v286 = vadd.f32 0.0, %v285
    %287 = vmatprep.mubr.f32.mxu0 0.0
    %288 = vmatmul.mubr.f32.gmra.mrb[0].mxu0 %v49
    %v289 = vpop.f32.mrb[0].mxu0
    %v290 = vadd.f32 0.0, %v289
    %v291 = vpop.f32.mrb[0].mxu0
    %v292 = vadd.f32 0.0, %v291
    %293 = vmatprep.mubr.f32.mxu0 0.0
    %294 = vmatmul.mubr.f32.gmra.mrb[0].mxu0 %v50
    %v295 = vpop.f32.mrb[0].mxu0
    %v296 = vadd.f32 0.0, %v295
    %v297 = vpop.f32.mrb[0].mxu0
    %v298 = vadd.f32 0.0, %v297
    %299 = vmatprep.mubr.f32.mxu0 0.0
    %300 = vmatmul.mubr.f32.gmra.mrb[0].mxu0 %v51
    %v301 = vpop.f32.mrb[0].mxu0
    %v302 = vadd.f32 0.0, %v301
    %v303 = vpop.f32.mrb[0].mxu0
    %v304 = vadd.f32 0.0, %v303
    %305 = vmatprep.mubr.f32.mxu0 0.0
    %306 = vmatmul.mubr.f32.gmra.mrb[0].mxu0 %v52
    %v307 = vpop.f32.mrb[0].mxu0
    %v308 = vadd.f32 0.0, %v307
    %v309 = vpop.f32.mrb[0].mxu0
    %v310 = vadd.f32 0.0, %v309
    %311 = vmatprep.mubr.f32.mxu0 0.0
    %312 = vmatmul.mubr.f32.gmra.mrb[0].mxu0 %v53
    %v313 = vpop.f32.mrb[0].mxu0
    %v314 = vadd.f32 0.0, %v313
    %v315 = vpop.f32.mrb[0].mxu0
    %v316 = vadd.f32 0.0, %v315
    %317 = vmatprep.mubr.f32.mxu0 0.0
    %318 = vmatmul.mubr.f32.gmra.mrb[0].mxu0 %v54
    %v319 = vpop.f32.mrb[0].mxu0
    %v320 = vadd.f32 0.0, %v319
    %v321 = vpop.f32.mrb[0].mxu0
    %v322 = vadd.f32 0.0, %v321
    %323 = vmatprep.mubr.f32.mxu0 0.0
    %324 = vmatmul.mubr.f32.gmra.mrb[0].mxu0 %v55
    %v325 = vpop.f32.mrb[0].mxu0
    %v326 = vadd.f32 0.0, %v325
    %v327 = vpop.f32.mrb[0].mxu0
    %v328 = vadd.f32 0.0, %v327
    %329 = vmatprep.mubr.f32.mxu0 0.0
    %330 = vmatmul.mubr.f32.gmra.mrb[0].mxu0 %v56
    %v331 = vpop.f32.mrb[0].mxu0
    %v332 = vadd.f32 0.0, %v331
    %v333 = vpop.f32.mrb[0].mxu0
    %v334 = vadd.f32 0.0, %v333
    %335 = vmatprep.mubr.f32.mxu0 0.0
    %336 = vmatmul.mubr.f32.gmra.mrb[0].mxu0 %v57
    %v337 = vpop.f32.mrb[0].mxu0
    %v338 = vadd.f32 0.0, %v337
    %v339 = vpop.f32.mrb[0].mxu0
    %v340 = vadd.f32 0.0, %v339
    %341 = vmatprep.mubr.f32.mxu0 0.0
    %342 = vmatmul.mubr.f32.gmra.mrb[0].mxu0 %v58
    %v343 = vpop.f32.mrb[0].mxu0
    %v344 = vadd.f32 0.0, %v343
    %v345 = vpop.f32.mrb[0].mxu0
    %v346 = vadd.f32 0.0, %v345
    %347 = vmatprep.mubr.f32.mxu0 0.0
    %348 = vmatmul.mubr.f32.gmra.mrb[0].mxu0 %v59
    %v349 = vpop.f32.mrb[0].mxu0
    %v350 = vadd.f32 0.0, %v349
    %v351 = vpop.f32.mrb[0].mxu0
    %v352 = vadd.f32 0.0, %v351
    %353 = vmatprep.mubr.f32.mxu0 0.0
    %354 = vmatmul.mubr.f32.gmra.mrb[0].mxu0 %v60
    %v355 = vpop.f32.mrb[0].mxu0
    %v356 = vadd.f32 0.0, %v355
    %v357 = vpop.f32.mrb[0].mxu0
    %v358 = vadd.f32 0.0, %v357
    %359 = vmatprep.mubr.f32.mxu0 0.0
    %360 = vmatmul.mubr.f32.gmra.mrb[0].mxu0 %v61
    %v361 = vpop.f32.mrb[0].mxu0
    %v362 = vadd.f32 0.0, %v361
    %v363 = vpop.f32.mrb[0].mxu0
    %v364 = vadd.f32 0.0, %v363
    %365 = vmatprep.mubr.f32.mxu0 0.0
    %366 = vmatmul.mubr.f32.gmra.mrb[0].mxu0 %v62
    %v367 = vpop.f32.mrb[0].mxu0
    %v368 = vadd.f32 0.0, %v367
    %v369 = vpop.f32.mrb[0].mxu0
    %v370 = vadd.f32 0.0, %v369
    %371 = vmatprep.mubr.f32.mxu0 0.0
    %372 = vmatmul.mubr.f32.gmra.mrb[0].mxu0 %v63
    %v373 = vpop.f32.mrb[0].mxu0
    %v374 = vadd.f32 0.0, %v373
    %v375 = vpop.f32.mrb[0].mxu0
    %v376 = vadd.f32 0.0, %v375
    %377 = vmatprep.mubr.f32.mxu0 0.0
    %378 = vmatmul.mubr.f32.gmra.mrb[0].mxu0 %v64
    %v379 = vpop.f32.mrb[0].mxu0
    %v380 = vadd.f32 0.0, %v379
    %v381 = vpop.f32.mrb[0].mxu0
    %v382 = vadd.f32 0.0, %v381
    %383 = vmatprep.mubr.f32.mxu0 0.0
    %384 = vmatmul.mubr.f32.gmra.mrb[0].mxu0 %v65
    %v385 = vpop.f32.mrb[0].mxu0
    %v386 = vadd.f32 0.0, %v385
    %v387 = vpop.f32.mrb[0].mxu0
    %v388 = vadd.f32 0.0, %v387
    %389 = vmatprep.mubr.f32.mxu0 0.0
    %390 = vmatmul.mubr.f32.gmra.mrb[0].mxu0 %v66
    %v391 = vpop.f32.mrb[0].mxu0
    %v392 = vadd.f32 0.0, %v391
    %v393 = vpop.f32.mrb[0].mxu0
    %v394 = vadd.f32 0.0, %v393
    %395 = vmatprep.mubr.f32.mxu0 0.0
    %396 = vmatmul.mubr.f32.gmra.mrb[0].mxu0 %v67
    %v397 = vpop.f32.mrb[0].mxu0
    %v398 = vadd.f32 0.0, %v397
    %v399 = vpop.f32.mrb[0].mxu0
    %v400 = vadd.f32 0.0, %v399
    %401 = vmatprep.mubr.f32.mxu0 0.0
    %402 = vmatmul.mubr.f32.gmra.mrb[0].mxu0 %v68
    %v403 = vpop.f32.mrb[0].mxu0
    %v404 = vadd.f32 0.0, %v403
    %v405 = vpop.f32.mrb[0].mxu0
    %v406 = vadd.f32 0.0, %v405
    %407 = vmatprep.mubr.f32.mxu0 0.0
    %408 = vmatmul.mubr.f32.gmra.mrb[0].mxu0 %v69
    %v409 = vpop.f32.mrb[0].mxu0
    %v410 = vadd.f32 0.0, %v409
    %v411 = vpop.f32.mrb[0].mxu0
    %v412 = vadd.f32 0.0, %v411
    %413 = vmatprep.mubr.f32.mxu0 0.0
    %414 = vmatmul.mubr.f32.gmra.mrb[0].mxu0 %v70
    %v415 = vpop.f32.mrb[0].mxu0
    %v416 = vadd.f32 0.0, %v415
    %v417 = vpop.f32.mrb[0].mxu0
    %v418 = vadd.f32 0.0, %v417
    %419 = vmatprep.mubr.f32.mxu0 0.0
    %420 = vmatmul.mubr.f32.gmra.mrb[0].mxu0 %v71
    %v421 = vpop.f32.mrb[0].mxu0
    %v422 = vadd.f32 0.0, %v421
    %v423 = vpop.f32.mrb[0].mxu0
    %v424 = vadd.f32 0.0, %v423
    %425 = vmatprep.mubr.f32.mxu0 0.0
    %426 = vmatmul.mubr.f32.gmra.mrb[0].mxu0 %v72
    %v427 = vpop.f32.mrb[0].mxu0
    %v428 = vadd.f32 0.0, %v427
    %v429 = vpop.f32.mrb[0].mxu0
    %v430 = vadd.f32 0.0, %v429
    %431 = vmatprep.mubr.f32.mxu0 0.0
    %432 = vmatmul.mubr.f32.gmra.mrb[0].mxu0 %v73
    %v433 = vpop.f32.mrb[0].mxu0
    %v434 = vadd.f32 0.0, %v433
    %v435 = vpop.f32.mrb[0].mxu0
    %v436 = vadd.f32 0.0, %v435
    %437 = vmatprep.mubr.f32.mxu0 0.0
    %438 = vmatmul.mubr.f32.gmra.mrb[0].mxu0 %v74
    %v439 = vpop.f32.mrb[0].mxu0
    %v440 = vadd.f32 0.0, %v439
    %v441 = vpop.f32.mrb[0].mxu0
    %v442 = vadd.f32 0.0, %v441
    %443 = vmatprep.mubr.f32.mxu0 0.0
    %444 = vmatmul.mubr.f32.gmra.mrb[0].mxu0 %v75
    %v445 = vpop.f32.mrb[0].mxu0
    %v446 = vadd.f32 0.0, %v445
    %v447 = vpop.f32.mrb[0].mxu0
    %v448 = vadd.f32 0.0, %v447
    %449 = vmatprep.mubr.f32.mxu0 0.0
    %450 = vmatmul.mubr.f32.gmra.mrb[0].mxu0 %v76
    %v451 = vpop.f32.mrb[0].mxu0
    %v452 = vadd.f32 0.0, %v451
    %v453 = vpop.f32.mrb[0].mxu0
    %v454 = vadd.f32 0.0, %v453
    %455 = vmatprep.mubr.f32.mxu0 0.0
    %456 = vmatmul.mubr.f32.gmra.mrb[0].mxu0 %v77
    %v457 = vpop.f32.mrb[0].mxu0
    %v458 = vadd.f32 0.0, %v457
    %v459 = vpop.f32.mrb[0].mxu0
    %v460 = vadd.f32 0.0, %v459
    %461 = vmatprep.mubr.f32.mxu0 0.0
    %462 = vmatmul.mubr.f32.gmra.mrb[0].mxu0 %v78
    %v463 = vpop.f32.mrb[0].mxu0
    %v464 = vadd.f32 0.0, %v463
    %v465 = vpop.f32.mrb[0].mxu0
    %v466 = vadd.f32 0.0, %v465
    %467 = vmatprep.mubr.f32.mxu0 0.0
    %468 = vmatmul.mubr.f32.gmra.mrb[0].mxu0 %v79
    %v469 = vpop.f32.mrb[0].mxu0
    %v470 = vadd.f32 0.0, %v469
    %v471 = vpop.f32.mrb[0].mxu0
    %v472 = vadd.f32 0.0, %v471
    %473 = vmatprep.mubr.f32.mxu0 0.0
    %474 = vmatmul.mubr.f32.gmra.mrb[0].mxu0 %v80
    %v475 = vpop.f32.mrb[0].mxu0
    %v476 = vadd.f32 0.0, %v475
    %v477 = vpop.f32.mrb[0].mxu0
    %v478 = vadd.f32 0.0, %v477
    %479 = vmatprep.mubr.f32.mxu0 0.0
    %480 = vmatmul.mubr.f32.gmra.mrb[0].mxu0 %v81
    %v481 = vpop.f32.mrb[0].mxu0
    %v482 = vadd.f32 0.0, %v481
    %v483 = vpop.f32.mrb[0].mxu0
    %v484 = vadd.f32 0.0, %v483
    %485 = vmatprep.mubr.f32.mxu0 0.0
    %486 = vmatmul.mubr.f32.gmra.mrb[0].mxu0 %v82
    %v487 = vpop.f32.mrb[0].mxu0
    %v488 = vadd.f32 0.0, %v487
    %v489 = vpop.f32.mrb[0].mxu0
    %v490 = vadd.f32 0.0, %v489
    %491 = vmatprep.mubr.f32.mxu0 0.0
    %492 = vmatmul.mubr.f32.gmra.mrb[0].mxu0 %v83
    %v493 = vpop.f32.mrb[0].mxu0
    %v494 = vadd.f32 0.0, %v493
    %v495 = vpop.f32.mrb[0].mxu0
    %v496 = vadd.f32 0.0, %v495
    %497 = vmatprep.mubr.f32.mxu0 0.0
    %498 = vmatmul.mubr.f32.gmra.mrb[0].mxu0 %v84
    %v499 = vpop.f32.mrb[0].mxu0
    %v500 = vadd.f32 0.0, %v499
    %v501 = vpop.f32.mrb[0].mxu0
    %v502 = vadd.f32 0.0, %v501
    %503 = vmatprep.mubr.f32.mxu0 0.0
    %504 = vmatmul.mubr.f32.gmra.mrb[0].mxu0 %v85
    %v505 = vpop.f32.mrb[0].mxu0
    %v506 = vadd.f32 0.0, %v505
    %v507 = vpop.f32.mrb[0].mxu0
    %v508 = vadd.f32 0.0, %v507
    %509 = vmatprep.mubr.f32.mxu0 0.0
    %510 = vmatmul.mubr.f32.gmra.mrb[0].mxu0 %v86
    %v511 = vpop.f32.mrb[0].mxu0
    %v512 = vadd.f32 0.0, %v511
    %v513 = vpop.f32.mrb[0].mxu0
    %v514 = vadd.f32 0.0, %v513
    %515 = vmatprep.mubr.f32.mxu0 0.0
    %516 = vmatmul.mubr.f32.gmra.mrb[0].mxu0 %v87
    %v517 = vpop.f32.mrb[0].mxu0
    %v518 = vadd.f32 0.0, %v517
    %v519 = vpop.f32.mrb[0].mxu0
    %v520 = vadd.f32 0.0, %v519
    %521 = vmatprep.mubr.f32.mxu0 0.0
    %522 = vmatmul.mubr.f32.gmra.mrb[0].mxu0 %v88
    %v523 = vpop.f32.mrb[0].mxu0
    %v524 = vadd.f32 0.0, %v523
    %v525 = vpop.f32.mrb[0].mxu0
    %v526 = vadd.f32 0.0, %v525
    %527 = vmatprep.mubr.f32.mxu0 0.0
    %528 = vmatmul.mubr.f32.gmra.mrb[0].mxu0 %v89
    %v529 = vpop.f32.mrb[0].mxu0
    %v530 = vadd.f32 0.0, %v529
    %v531 = vpop.f32.mrb[0].mxu0
    %v532 = vadd.f32 0.0, %v531
    %533 = vmatprep.mubr.f32.mxu0 0.0
    %534 = vmatmul.mubr.f32.gmra.mrb[0].mxu0 %v90
    %v535 = vpop.f32.mrb[0].mxu0
    %v536 = vadd.f32 0.0, %v535
    %v537 = vpop.f32.mrb[0].mxu0
    %v538 = vadd.f32 0.0, %v537
    %539 = vmatprep.mubr.f32.mxu0 0.0
    %540 = vmatmul.mubr.f32.gmra.mrb[0].mxu0 %v91
    %v541 = vpop.f32.mrb[0].mxu0
    %v542 = vadd.f32 0.0, %v541
    %v543 = vpop.f32.mrb[0].mxu0
    %v544 = vadd.f32 0.0, %v543
    %545 = vmatprep.mubr.f32.mxu0 0.0
    %546 = vmatmul.mubr.f32.gmra.mrb[0].mxu0 %v92
    %v547 = vpop.f32.mrb[0].mxu0
    %v548 = vadd.f32 0.0, %v547
    %v549 = vpop.f32.mrb[0].mxu0
    %v550 = vadd.f32 0.0, %v549
    %551 = vmatprep.mubr.f32.mxu0 0.0
    %552 = vmatmul.mubr.f32.gmra.mrb[0].mxu0 %v93
    %v553 = vpop.f32.mrb[0].mxu0
    %v554 = vadd.f32 0.0, %v553
    %v555 = vpop.f32.mrb[0].mxu0
    %v556 = vadd.f32 0.0, %v555
    %557 = vmatprep.mubr.f32.mxu0 0.0
    %558 = vmatmul.mubr.f32.gmra.mrb[0].mxu0 %v94
    %v559 = vpop.f32.mrb[0].mxu0
    %v560 = vadd.f32 0.0, %v559
    %v561 = vpop.f32.mrb[0].mxu0
    %v562 = vadd.f32 0.0, %v561
    %563 = vmatprep.mubr.f32.mxu0 0.0
    %564 = vmatmul.mubr.f32.gmra.mrb[0].mxu0 %v95
    %v565 = vpop.f32.mrb[0].mxu0
    %v566 = vadd.f32 0.0, %v565
    %v567 = vpop.f32.mrb[0].mxu0
    %v568 = vadd.f32 0.0, %v567
    %569 = vmatprep.mubr.f32.mxu0 0.0
    %570 = vmatmul.mubr.f32.gmra.mrb[0].mxu0 %v96
    %v571 = vpop.f32.mrb[0].mxu0
    %v572 = vadd.f32 0.0, %v571
    %v573 = vpop.f32.mrb[0].mxu0
    %v574 = vadd.f32 0.0, %v573
    %575 = vmatprep.mubr.f32.mxu0 0.0
    %576 = vmatmul.mubr.f32.gmra.mrb[0].mxu0 %v97
    %v577 = vpop.f32.mrb[0].mxu0
    %v578 = vadd.f32 0.0, %v577
    %v579 = vpop.f32.mrb[0].mxu0
    %v580 = vadd.f32 0.0, %v579
    %581 = vmatprep.mubr.f32.mxu0 0.0
    %582 = vmatmul.mubr.f32.gmra.mrb[0].mxu0 %v98
    %v583 = vpop.f32.mrb[0].mxu0
    %v584 = vadd.f32 0.0, %v583
    %v585 = vpop.f32.mrb[0].mxu0
    %v586 = vadd.f32 0.0, %v585
    %587 = vmatprep.mubr.f32.mxu0 0.0
    %588 = vmatmul.mubr.f32.gmra.mrb[0].mxu0 %v99
    %v589 = vpop.f32.mrb[0].mxu0
    %v590 = vadd.f32 0.0, %v589
    %v591 = vpop.f32.mrb[0].mxu0
    %v592 = vadd.f32 0.0, %v591
    %593 = vmatprep.mubr.f32.mxu0 0.0
    %594 = vmatmul.mubr.f32.gmra.mrb[0].mxu0 %v100
    %v595 = vpop.f32.mrb[0].mxu0
    %v596 = vadd.f32 0.0, %v595
    %v597 = vpop.f32.mrb[0].mxu0
    %v598 = vadd.f32 0.0, %v597
    %599 = vmatprep.mubr.f32.mxu0 0.0
    %600 = vmatmul.mubr.f32.gmra.mrb[0].mxu0 %v101
    %v601 = vpop.f32.mrb[0].mxu0
    %v602 = vadd.f32 0.0, %v601
    %v603 = vpop.f32.mrb[0].mxu0
    %v604 = vadd.f32 0.0, %v603
    %605 = vmatprep.mubr.f32.mxu0 0.0
    %606 = vmatmul.mubr.f32.gmra.mrb[0].mxu0 %v102
    %v607 = vpop.f32.mrb[0].mxu0
    %v608 = vadd.f32 0.0, %v607
    %v609 = vpop.f32.mrb[0].mxu0
    %v610 = vadd.f32 0.0, %v609
    %611 = vmatprep.mubr.f32.mxu0 0.0
    %612 = vmatmul.mubr.f32.gmra.mrb[0].mxu0 %v103
    %v613 = vpop.f32.mrb[0].mxu0
    %v614 = vadd.f32 0.0, %v613
    %v615 = vpop.f32.mrb[0].mxu0
    %v616 = vadd.f32 0.0, %v615
    %617 = vmatprep.mubr.f32.mxu0 0.0
    %618 = vmatmul.mubr.f32.gmra.mrb[0].mxu0 %v104
    %v619 = vpop.f32.mrb[0].mxu0
    %v620 = vadd.f32 0.0, %v619
    %v621 = vpop.f32.mrb[0].mxu0
    %v622 = vadd.f32 0.0, %v621
    %623 = vmatprep.mubr.f32.mxu0 0.0
    %624 = vmatmul.mubr.f32.gmra.mrb[0].mxu0 %v105
    %v625 = vpop.f32.mrb[0].mxu0
    %v626 = vadd.f32 0.0, %v625
    %v627 = vpop.f32.mrb[0].mxu0
    %v628 = vadd.f32 0.0, %v627
    %629 = vmatprep.mubr.f32.mxu0 0.0
    %630 = vmatmul.mubr.f32.gmra.mrb[0].mxu0 %v106
    %v631 = vpop.f32.mrb[0].mxu0
    %v632 = vadd.f32 0.0, %v631
    %v633 = vpop.f32.mrb[0].mxu0
    %v634 = vadd.f32 0.0, %v633
    %635 = vdwg.mxu0
    %636 = vmatprep.subr.mxu0 %v110
    %637 = vmatpush1.msra.mxu0 %v109
    %638 = vmatprep.subr.mxu0 %v115
    %639 = vmatpush1.msra.mxu0 %v114
    %640 = vmatprep.subr.mxu0 %v120
    %641 = vmatpush1.msra.mxu0 %v119
    %642 = vmatprep.subr.mxu0 %v125
    %643 = vmatpush1.msra.mxu0 %v124
    %644 = vmatprep.subr.mxu0 %v130
    %645 = vmatpush1.msra.mxu0 %v129
    %646 = vmatprep.subr.mxu0 %v135
    %647 = vmatpush1.msra.mxu0 %v134
    %648 = vmatprep.subr.mxu0 %v140
    %649 = vmatpush1.msra.mxu0 %v139
    %650 = vmatprep.subr.mxu0 %v145
    %651 = vmatpush1.msra.mxu0 %v144
    %652 = vmatprep.subr.mxu0 %v150
    %653 = vmatpush1.msra.mxu0 %v149
    %654 = vmatprep.subr.mxu0 %v155
    %655 = vmatpush1.msra.mxu0 %v154
    %656 = vmatprep.subr.mxu0 %v160
    %657 = vmatpush1.msra.mxu0 %v159
    %658 = vmatprep.subr.mxu0 %v165
    %659 = vmatpush1.msra.mxu0 %v164
    %660 = vmatprep.subr.mxu0 %v170
    %661 = vmatpush1.msra.mxu0 %v169
    %662 = vmatprep.subr.mxu0 %v175
    %663 = vmatpush1.msra.mxu0 %v174
    %664 = vmatprep.subr.mxu0 %v180
    %665 = vmatpush1.msra.mxu0 %v179
    %666 = vmatprep.subr.mxu0 %v185
    %667 = vmatpush1.msra.mxu0 %v184
    %668 = vmatprep.subr.mxu0 0.0
    %669 = vmatpush1.msra.mxu0 0.0
    %670 = vmatprep.subr.mxu0 0.0
    %671 = vmatpush1.msra.mxu0 0.0
    %672 = vmatprep.subr.mxu0 0.0
    %673 = vmatpush1.msra.mxu0 0.0
    %674 = vmatprep.subr.mxu0 0.0
    %675 = vmatpush1.msra.mxu0 0.0
    %676 = vmatprep.subr.mxu0 0.0
    %677 = vmatpush1.msra.mxu0 0.0
    %678 = vmatprep.subr.mxu0 0.0
    %679 = vmatpush1.msra.mxu0 0.0
    %680 = vmatprep.subr.mxu0 0.0
    %681 = vmatpush1.msra.mxu0 0.0
    %682 = vmatprep.subr.mxu0 0.0
    %683 = vmatpush1.msra.mxu0 0.0
    %684 = vmatprep.subr.mxu0 0.0
    %685 = vmatpush1.msra.mxu0 0.0
    %686 = vmatprep.subr.mxu0 0.0
    %687 = vmatpush1.msra.mxu0 0.0
    %688 = vmatprep.subr.mxu0 0.0
    %689 = vmatpush1.msra.mxu0 0.0
    %690 = vmatprep.subr.mxu0 0.0
    %691 = vmatpush1.msra.mxu0 0.0
    %692 = vmatprep.subr.mxu0 0.0
    %693 = vmatpush1.msra.mxu0 0.0
    %694 = vmatprep.subr.mxu0 0.0
    %695 = vmatpush1.msra.mxu0 0.0
    %696 = vmatprep.subr.mxu0 0.0
    %697 = vmatpush1.msra.mxu0 0.0
    %698 = vmatprep.subr.mxu0 0.0
    %699 = vmatpush1.msra.mxu0 0.0
    %700 = vmatprep.mubr.f32.mxu0 0.0
    %701 = vmatmul.mubr.f32.gmra.mrb[0].mxu0 %v43
    %v702 = vpop.f32.mrb[0].mxu0
    %v703 = vadd.f32 0.0, %v702
    %v704 = vpop.f32.mrb[0].mxu0
    %v705 = vadd.f32 0.0, %v704
    %706 = vmatprep.mubr.f32.mxu0 0.0
    %707 = vmatmul.mubr.f32.gmra.mrb[0].mxu0 %v44
    %v708 = vpop.f32.mrb[0].mxu0
    %v709 = vadd.f32 0.0, %v708
    %v710 = vpop.f32.mrb[0].mxu0
    %v711 = vadd.f32 0.0, %v710
    %712 = vmatprep.mubr.f32.mxu0 0.0
    %713 = vmatmul.mubr.f32.gmra.mrb[0].mxu0 %v45
    %v714 = vpop.f32.mrb[0].mxu0
    %v715 = vadd.f32 0.0, %v714
    %v716 = vpop.f32.mrb[0].mxu0
    %v717 = vadd.f32 0.0, %v716
    %718 = vmatprep.mubr.f32.mxu0 0.0
    %719 = vmatmul.mubr.f32.gmra.mrb[0].mxu0 %v46
    %v720 = vpop.f32.mrb[0].mxu0
    %v721 = vadd.f32 0.0, %v720
    %v722 = vpop.f32.mrb[0].mxu0
    %v723 = vadd.f32 0.0, %v722
    %724 = vmatprep.mubr.f32.mxu0 0.0
    %725 = vmatmul.mubr.f32.gmra.mrb[0].mxu0 %v47
    %v726 = vpop.f32.mrb[0].mxu0
    %v727 = vadd.f32 0.0, %v726
    %v728 = vpop.f32.mrb[0].mxu0
    %v729 = vadd.f32 0.0, %v728
    %730 = vmatprep.mubr.f32.mxu0 0.0
    %731 = vmatmul.mubr.f32.gmra.mrb[0].mxu0 %v48
    %v732 = vpop.f32.mrb[0].mxu0
    %v733 = vadd.f32 0.0, %v732
    %v734 = vpop.f32.mrb[0].mxu0
    %v735 = vadd.f32 0.0, %v734
    %736 = vmatprep.mubr.f32.mxu0 0.0
    %737 = vmatmul.mubr.f32.gmra.mrb[0].mxu0 %v49
    %v738 = vpop.f32.mrb[0].mxu0
    %v739 = vadd.f32 0.0, %v738
    %v740 = vpop.f32.mrb[0].mxu0
    %v741 = vadd.f32 0.0, %v740
    %742 = vmatprep.mubr.f32.mxu0 0.0
    %743 = vmatmul.mubr.f32.gmra.mrb[0].mxu0 %v50
    %v744 = vpop.f32.mrb[0].mxu0
    %v745 = vadd.f32 0.0, %v744
    %v746 = vpop.f32.mrb[0].mxu0
    %v747 = vadd.f32 0.0, %v746
    %748 = vmatprep.mubr.f32.mxu0 0.0
    %749 = vmatmul.mubr.f32.gmra.mrb[0].mxu0 %v51
    %v750 = vpop.f32.mrb[0].mxu0
    %v751 = vadd.f32 0.0, %v750
    %v752 = vpop.f32.mrb[0].mxu0
    %v753 = vadd.f32 0.0, %v752
    %754 = vmatprep.mubr.f32.mxu0 0.0
    %755 = vmatmul.mubr.f32.gmra.mrb[0].mxu0 %v52
    %v756 = vpop.f32.mrb[0].mxu0
    %v757 = vadd.f32 0.0, %v756
    %v758 = vpop.f32.mrb[0].mxu0
    %v759 = vadd.f32 0.0, %v758
    %760 = vmatprep.mubr.f32.mxu0 0.0
    %761 = vmatmul.mubr.f32.gmra.mrb[0].mxu0 %v53
    %v762 = vpop.f32.mrb[0].mxu0
    %v763 = vadd.f32 0.0, %v762
    %v764 = vpop.f32.mrb[0].mxu0
    %v765 = vadd.f32 0.0, %v764
    %766 = vmatprep.mubr.f32.mxu0 0.0
    %767 = vmatmul.mubr.f32.gmra.mrb[0].mxu0 %v54
    %v768 = vpop.f32.mrb[0].mxu0
    %v769 = vadd.f32 0.0, %v768
    %v770 = vpop.f32.mrb[0].mxu0
    %v771 = vadd.f32 0.0, %v770
    %772 = vmatprep.mubr.f32.mxu0 0.0
    %773 = vmatmul.mubr.f32.gmra.mrb[0].mxu0 %v55
    %v774 = vpop.f32.mrb[0].mxu0
    %v775 = vadd.f32 0.0, %v774
    %v776 = vpop.f32.mrb[0].mxu0
    %v777 = vadd.f32 0.0, %v776
    %778 = vmatprep.mubr.f32.mxu0 0.0
    %779 = vmatmul.mubr.f32.gmra.mrb[0].mxu0 %v56
    %v780 = vpop.f32.mrb[0].mxu0
    %v781 = vadd.f32 0.0, %v780
    %v782 = vpop.f32.mrb[0].mxu0
    %v783 = vadd.f32 0.0, %v782
    %784 = vmatprep.mubr.f32.mxu0 0.0
    %785 = vmatmul.mubr.f32.gmra.mrb[0].mxu0 %v57
    %v786 = vpop.f32.mrb[0].mxu0
    %v787 = vadd.f32 0.0, %v786
    %v788 = vpop.f32.mrb[0].mxu0
    %v789 = vadd.f32 0.0, %v788
    %790 = vmatprep.mubr.f32.mxu0 0.0
    %791 = vmatmul.mubr.f32.gmra.mrb[0].mxu0 %v58
    %v792 = vpop.f32.mrb[0].mxu0
    %v793 = vadd.f32 0.0, %v792
    %v794 = vpop.f32.mrb[0].mxu0
    %v795 = vadd.f32 0.0, %v794
    %796 = vmatprep.mubr.f32.mxu0 0.0
    %797 = vmatmul.mubr.f32.gmra.mrb[0].mxu0 %v59
    %v798 = vpop.f32.mrb[0].mxu0
    %v799 = vadd.f32 0.0, %v798
    %v800 = vpop.f32.mrb[0].mxu0
    %v801 = vadd.f32 0.0, %v800
    %802 = vmatprep.mubr.f32.mxu0 0.0
    %803 = vmatmul.mubr.f32.gmra.mrb[0].mxu0 %v60
    %v804 = vpop.f32.mrb[0].mxu0
    %v805 = vadd.f32 0.0, %v804
    %v806 = vpop.f32.mrb[0].mxu0
    %v807 = vadd.f32 0.0, %v806
    %808 = vmatprep.mubr.f32.mxu0 0.0
    %809 = vmatmul.mubr.f32.gmra.mrb[0].mxu0 %v61
    %v810 = vpop.f32.mrb[0].mxu0
    %v811 = vadd.f32 0.0, %v810
    %v812 = vpop.f32.mrb[0].mxu0
    %v813 = vadd.f32 0.0, %v812
    %814 = vmatprep.mubr.f32.mxu0 0.0
    %815 = vmatmul.mubr.f32.gmra.mrb[0].mxu0 %v62
    %v816 = vpop.f32.mrb[0].mxu0
    %v817 = vadd.f32 0.0, %v816
    %v818 = vpop.f32.mrb[0].mxu0
    %v819 = vadd.f32 0.0, %v818
    %820 = vmatprep.mubr.f32.mxu0 0.0
    %821 = vmatmul.mubr.f32.gmra.mrb[0].mxu0 %v63
    %v822 = vpop.f32.mrb[0].mxu0
    %v823 = vadd.f32 0.0, %v822
    %v824 = vpop.f32.mrb[0].mxu0
    %v825 = vadd.f32 0.0, %v824
    %826 = vmatprep.mubr.f32.mxu0 0.0
    %827 = vmatmul.mubr.f32.gmra.mrb[0].mxu0 %v64
    %v828 = vpop.f32.mrb[0].mxu0
    %v829 = vadd.f32 0.0, %v828
    %v830 = vpop.f32.mrb[0].mxu0
    %v831 = vadd.f32 0.0, %v830
    %832 = vmatprep.mubr.f32.mxu0 0.0
    %833 = vmatmul.mubr.f32.gmra.mrb[0].mxu0 %v65
    %v834 = vpop.f32.mrb[0].mxu0
    %v835 = vadd.f32 0.0, %v834
    %v836 = vpop.f32.mrb[0].mxu0
    %v837 = vadd.f32 0.0, %v836
    %838 = vmatprep.mubr.f32.mxu0 0.0
    %839 = vmatmul.mubr.f32.gmra.mrb[0].mxu0 %v66
    %v840 = vpop.f32.mrb[0].mxu0
    %v841 = vadd.f32 0.0, %v840
    %v842 = vpop.f32.mrb[0].mxu0
    %v843 = vadd.f32 0.0, %v842
    %844 = vmatprep.mubr.f32.mxu0 0.0
    %845 = vmatmul.mubr.f32.gmra.mrb[0].mxu0 %v67
    %v846 = vpop.f32.mrb[0].mxu0
    %v847 = vadd.f32 0.0, %v846
    %v848 = vpop.f32.mrb[0].mxu0
    %v849 = vadd.f32 0.0, %v848
    %850 = vmatprep.mubr.f32.mxu0 0.0
    %851 = vmatmul.mubr.f32.gmra.mrb[0].mxu0 %v68
    %v852 = vpop.f32.mrb[0].mxu0
    %v853 = vadd.f32 0.0, %v852
    %v854 = vpop.f32.mrb[0].mxu0
    %v855 = vadd.f32 0.0, %v854
    %856 = vmatprep.mubr.f32.mxu0 0.0
    %857 = vmatmul.mubr.f32.gmra.mrb[0].mxu0 %v69
    %v858 = vpop.f32.mrb[0].mxu0
    %v859 = vadd.f32 0.0, %v858
    %v860 = vpop.f32.mrb[0].mxu0
    %v861 = vadd.f32 0.0, %v860
    %862 = vmatprep.mubr.f32.mxu0 0.0
    %863 = vmatmul.mubr.f32.gmra.mrb[0].mxu0 %v70
    %v864 = vpop.f32.mrb[0].mxu0
    %v865 = vadd.f32 0.0, %v864
    %v866 = vpop.f32.mrb[0].mxu0
    %v867 = vadd.f32 0.0, %v866
    %868 = vmatprep.mubr.f32.mxu0 0.0
    %869 = vmatmul.mubr.f32.gmra.mrb[0].mxu0 %v71
    %v870 = vpop.f32.mrb[0].mxu0
    %v871 = vadd.f32 0.0, %v870
    %v872 = vpop.f32.mrb[0].mxu0
    %v873 = vadd.f32 0.0, %v872
    %874 = vmatprep.mubr.f32.mxu0 0.0
    %875 = vmatmul.mubr.f32.gmra.mrb[0].mxu0 %v72
    %v876 = vpop.f32.mrb[0].mxu0
    %v877 = vadd.f32 0.0, %v876
    %v878 = vpop.f32.mrb[0].mxu0
    %v879 = vadd.f32 0.0, %v878
    %880 = vmatprep.mubr.f32.mxu0 0.0
    %881 = vmatmul.mubr.f32.gmra.mrb[0].mxu0 %v73
    %v882 = vpop.f32.mrb[0].mxu0
    %v883 = vadd.f32 0.0, %v882
    %v884 = vpop.f32.mrb[0].mxu0
    %v885 = vadd.f32 0.0, %v884
    %886 = vmatprep.mubr.f32.mxu0 0.0
    %887 = vmatmul.mubr.f32.gmra.mrb[0].mxu0 %v74
    %v888 = vpop.f32.mrb[0].mxu0
    %v889 = vadd.f32 0.0, %v888
    %v890 = vpop.f32.mrb[0].mxu0
    %v891 = vadd.f32 0.0, %v890
    %892 = vmatprep.mubr.f32.mxu0 0.0
    %893 = vmatmul.mubr.f32.gmra.mrb[0].mxu0 %v75
    %v894 = vpop.f32.mrb[0].mxu0
    %v895 = vadd.f32 0.0, %v894
    %v896 = vpop.f32.mrb[0].mxu0
    %v897 = vadd.f32 0.0, %v896
    %898 = vmatprep.mubr.f32.mxu0 0.0
    %899 = vmatmul.mubr.f32.gmra.mrb[0].mxu0 %v76
    %v900 = vpop.f32.mrb[0].mxu0
    %v901 = vadd.f32 0.0, %v900
    %v902 = vpop.f32.mrb[0].mxu0
    %v903 = vadd.f32 0.0, %v902
    %904 = vmatprep.mubr.f32.mxu0 0.0
    %905 = vmatmul.mubr.f32.gmra.mrb[0].mxu0 %v77
    %v906 = vpop.f32.mrb[0].mxu0
    %v907 = vadd.f32 0.0, %v906
    %v908 = vpop.f32.mrb[0].mxu0
    %v909 = vadd.f32 0.0, %v908
    %910 = vmatprep.mubr.f32.mxu0 0.0
    %911 = vmatmul.mubr.f32.gmra.mrb[0].mxu0 %v78
    %v912 = vpop.f32.mrb[0].mxu0
    %v913 = vadd.f32 0.0, %v912
    %v914 = vpop.f32.mrb[0].mxu0
    %v915 = vadd.f32 0.0, %v914
    %916 = vmatprep.mubr.f32.mxu0 0.0
    %917 = vmatmul.mubr.f32.gmra.mrb[0].mxu0 %v79
    %v918 = vpop.f32.mrb[0].mxu0
    %v919 = vadd.f32 0.0, %v918
    %v920 = vpop.f32.mrb[0].mxu0
    %v921 = vadd.f32 0.0, %v920
    %922 = vmatprep.mubr.f32.mxu0 0.0
    %923 = vmatmul.mubr.f32.gmra.mrb[0].mxu0 %v80
    %v924 = vpop.f32.mrb[0].mxu0
    %v925 = vadd.f32 0.0, %v924
    %v926 = vpop.f32.mrb[0].mxu0
    %v927 = vadd.f32 0.0, %v926
    %928 = vmatprep.mubr.f32.mxu0 0.0
    %929 = vmatmul.mubr.f32.gmra.mrb[0].mxu0 %v81
    %v930 = vpop.f32.mrb[0].mxu0
    %v931 = vadd.f32 0.0, %v930
    %v932 = vpop.f32.mrb[0].mxu0
    %v933 = vadd.f32 0.0, %v932
    %934 = vmatprep.mubr.f32.mxu0 0.0
    %935 = vmatmul.mubr.f32.gmra.mrb[0].mxu0 %v82
    %v936 = vpop.f32.mrb[0].mxu0
    %v937 = vadd.f32 0.0, %v936
    %v938 = vpop.f32.mrb[0].mxu0
    %v939 = vadd.f32 0.0, %v938
    %940 = vmatprep.mubr.f32.mxu0 0.0
    %941 = vmatmul.mubr.f32.gmra.mrb[0].mxu0 %v83
    %v942 = vpop.f32.mrb[0].mxu0
    %v943 = vadd.f32 0.0, %v942
    %v944 = vpop.f32.mrb[0].mxu0
    %v945 = vadd.f32 0.0, %v944
    %946 = vmatprep.mubr.f32.mxu0 0.0
    %947 = vmatmul.mubr.f32.gmra.mrb[0].mxu0 %v84
    %v948 = vpop.f32.mrb[0].mxu0
    %v949 = vadd.f32 0.0, %v948
    %v950 = vpop.f32.mrb[0].mxu0
    %v951 = vadd.f32 0.0, %v950
    %952 = vmatprep.mubr.f32.mxu0 0.0
    %953 = vmatmul.mubr.f32.gmra.mrb[0].mxu0 %v85
    %v954 = vpop.f32.mrb[0].mxu0
    %v955 = vadd.f32 0.0, %v954
    %v956 = vpop.f32.mrb[0].mxu0
    %v957 = vadd.f32 0.0, %v956
    %958 = vmatprep.mubr.f32.mxu0 0.0
    %959 = vmatmul.mubr.f32.gmra.mrb[0].mxu0 %v86
    %v960 = vpop.f32.mrb[0].mxu0
    %v961 = vadd.f32 0.0, %v960
    %v962 = vpop.f32.mrb[0].mxu0
    %v963 = vadd.f32 0.0, %v962
    %964 = vmatprep.mubr.f32.mxu0 0.0
    %965 = vmatmul.mubr.f32.gmra.mrb[0].mxu0 %v87
    %v966 = vpop.f32.mrb[0].mxu0
    %v967 = vadd.f32 0.0, %v966
    %v968 = vpop.f32.mrb[0].mxu0
    %v969 = vadd.f32 0.0, %v968
    %970 = vmatprep.mubr.f32.mxu0 0.0
    %971 = vmatmul.mubr.f32.gmra.mrb[0].mxu0 %v88
    %v972 = vpop.f32.mrb[0].mxu0
    %v973 = vadd.f32 0.0, %v972
    %v974 = vpop.f32.mrb[0].mxu0
    %v975 = vadd.f32 0.0, %v974
    %976 = vmatprep.mubr.f32.mxu0 0.0
    %977 = vmatmul.mubr.f32.gmra.mrb[0].mxu0 %v89
    %v978 = vpop.f32.mrb[0].mxu0
    %v979 = vadd.f32 0.0, %v978
    %v980 = vpop.f32.mrb[0].mxu0
    %v981 = vadd.f32 0.0, %v980
    %982 = vmatprep.mubr.f32.mxu0 0.0
    %983 = vmatmul.mubr.f32.gmra.mrb[0].mxu0 %v90
    %v984 = vpop.f32.mrb[0].mxu0
    %v985 = vadd.f32 0.0, %v984
    %v986 = vpop.f32.mrb[0].mxu0
    %v987 = vadd.f32 0.0, %v986
    %988 = vmatprep.mubr.f32.mxu0 0.0
    %989 = vmatmul.mubr.f32.gmra.mrb[0].mxu0 %v91
    %v990 = vpop.f32.mrb[0].mxu0
    %v991 = vadd.f32 0.0, %v990
    %v992 = vpop.f32.mrb[0].mxu0
    %v993 = vadd.f32 0.0, %v992
    %994 = vmatprep.mubr.f32.mxu0 0.0
    %995 = vmatmul.mubr.f32.gmra.mrb[0].mxu0 %v92
    %v996 = vpop.f32.mrb[0].mxu0
    %v997 = vadd.f32 0.0, %v996
    %v998 = vpop.f32.mrb[0].mxu0
    %v999 = vadd.f32 0.0, %v998
    %1000 = vmatprep.mubr.f32.mxu0 0.0
    %1001 = vmatmul.mubr.f32.gmra.mrb[0].mxu0 %v93
    %v1002 = vpop.f32.mrb[0].mxu0
    %v1003 = vadd.f32 0.0, %v1002
    %v1004 = vpop.f32.mrb[0].mxu0
    %v1005 = vadd.f32 0.0, %v1004
    %1006 = vmatprep.mubr.f32.mxu0 0.0
    %1007 = vmatmul.mubr.f32.gmra.mrb[0].mxu0 %v94
    %v1008 = vpop.f32.mrb[0].mxu0
    %v1009 = vadd.f32 0.0, %v1008
    %v1010 = vpop.f32.mrb[0].mxu0
    %v1011 = vadd.f32 0.0, %v1010
    %1012 = vmatprep.mubr.f32.mxu0 0.0
    %1013 = vmatmul.mubr.f32.gmra.mrb[0].mxu0 %v95
    %v1014 = vpop.f32.mrb[0].mxu0
    %v1015 = vadd.f32 0.0, %v1014
    %v1016 = vpop.f32.mrb[0].mxu0
    %v1017 = vadd.f32 0.0, %v1016
    %1018 = vmatprep.mubr.f32.mxu0 0.0
    %1019 = vmatmul.mubr.f32.gmra.mrb[0].mxu0 %v96
    %v1020 = vpop.f32.mrb[0].mxu0
    %v1021 = vadd.f32 0.0, %v1020
    %v1022 = vpop.f32.mrb[0].mxu0
    %v1023 = vadd.f32 0.0, %v1022
    %1024 = vmatprep.mubr.f32.mxu0 0.0
    %1025 = vmatmul.mubr.f32.gmra.mrb[0].mxu0 %v97
    %v1026 = vpop.f32.mrb[0].mxu0
    %v1027 = vadd.f32 0.0, %v1026
    %v1028 = vpop.f32.mrb[0].mxu0
    %v1029 = vadd.f32 0.0, %v1028
    %1030 = vmatprep.mubr.f32.mxu0 0.0
    %1031 = vmatmul.mubr.f32.gmra.mrb[0].mxu0 %v98
    %v1032 = vpop.f32.mrb[0].mxu0
    %v1033 = vadd.f32 0.0, %v1032
    %v1034 = vpop.f32.mrb[0].mxu0
    %v1035 = vadd.f32 0.0, %v1034
    %1036 = vmatprep.mubr.f32.mxu0 0.0
    %1037 = vmatmul.mubr.f32.gmra.mrb[0].mxu0 %v99
    %v1038 = vpop.f32.mrb[0].mxu0
    %v1039 = vadd.f32 0.0, %v1038
    %v1040 = vpop.f32.mrb[0].mxu0
    %v1041 = vadd.f32 0.0, %v1040
    %1042 = vmatprep.mubr.f32.mxu0 0.0
    %1043 = vmatmul.mubr.f32.gmra.mrb[0].mxu0 %v100
    %v1044 = vpop.f32.mrb[0].mxu0
    %v1045 = vadd.f32 0.0, %v1044
    %v1046 = vpop.f32.mrb[0].mxu0
    %v1047 = vadd.f32 0.0, %v1046
    %1048 = vmatprep.mubr.f32.mxu0 0.0
    %1049 = vmatmul.mubr.f32.gmra.mrb[0].mxu0 %v101
    %v1050 = vpop.f32.mrb[0].mxu0
    %v1051 = vadd.f32 0.0, %v1050
    %v1052 = vpop.f32.mrb[0].mxu0
    %v1053 = vadd.f32 0.0, %v1052
    %1054 = vmatprep.mubr.f32.mxu0 0.0
    %1055 = vmatmul.mubr.f32.gmra.mrb[0].mxu0 %v102
    %v1056 = vpop.f32.mrb[0].mxu0
    %v1057 = vadd.f32 0.0, %v1056
    %v1058 = vpop.f32.mrb[0].mxu0
    %v1059 = vadd.f32 0.0, %v1058
    %1060 = vmatprep.mubr.f32.mxu0 0.0
    %1061 = vmatmul.mubr.f32.gmra.mrb[0].mxu0 %v103
    %v1062 = vpop.f32.mrb[0].mxu0
    %v1063 = vadd.f32 0.0, %v1062
    %v1064 = vpop.f32.mrb[0].mxu0
    %v1065 = vadd.f32 0.0, %v1064
    %1066 = vmatprep.mubr.f32.mxu0 0.0
    %1067 = vmatmul.mubr.f32.gmra.mrb[0].mxu0 %v104
    %v1068 = vpop.f32.mrb[0].mxu0
    %v1069 = vadd.f32 0.0, %v1068
    %v1070 = vpop.f32.mrb[0].mxu0
    %v1071 = vadd.f32 0.0, %v1070
    %1072 = vmatprep.mubr.f32.mxu0 0.0
    %1073 = vmatmul.mubr.f32.gmra.mrb[0].mxu0 %v105
    %v1074 = vpop.f32.mrb[0].mxu0
    %v1075 = vadd.f32 0.0, %v1074
    %v1076 = vpop.f32.mrb[0].mxu0
    %v1077 = vadd.f32 0.0, %v1076
    %1078 = vmatprep.mubr.f32.mxu0 0.0
    %1079 = vmatmul.mubr.f32.gmra.mrb[0].mxu0 %v106
    %v1080 = vpop.f32.mrb[0].mxu0
    %v1081 = vadd.f32 0.0, %v1080
    %v1082 = vpop.f32.mrb[0].mxu0
    %v1083 = vadd.f32 0.0, %v1082
    %1084 = vdwg.mxu0
    %1085 = vmatprep.subr.mxu0 0.0
    %1086 = vmatpush1.msra.mxu0 %v111
    %1087 = vmatprep.subr.mxu0 0.0
    %1088 = vmatpush1.msra.mxu0 %v116
    %1089 = vmatprep.subr.mxu0 0.0
    %1090 = vmatpush1.msra.mxu0 %v121
    %1091 = vmatprep.subr.mxu0 0.0
    %1092 = vmatpush1.msra.mxu0 %v126
    %1093 = vmatprep.subr.mxu0 0.0
    %1094 = vmatpush1.msra.mxu0 %v131
    %1095 = vmatprep.subr.mxu0 0.0
    %1096 = vmatpush1.msra.mxu0 %v136
    %1097 = vmatprep.subr.mxu0 0.0
    %1098 = vmatpush1.msra.mxu0 %v141
    %1099 = vmatprep.subr.mxu0 0.0
    %1100 = vmatpush1.msra.mxu0 %v146
    %1101 = vmatprep.subr.mxu0 0.0
    %1102 = vmatpush1.msra.mxu0 %v151
    %1103 = vmatprep.subr.mxu0 0.0
    %1104 = vmatpush1.msra.mxu0 %v156
    %1105 = vmatprep.subr.mxu0 0.0
    %1106 = vmatpush1.msra.mxu0 %v161
    %1107 = vmatprep.subr.mxu0 0.0
    %1108 = vmatpush1.msra.mxu0 %v166
    %1109 = vmatprep.subr.mxu0 0.0
    %1110 = vmatpush1.msra.mxu0 %v171
    %1111 = vmatprep.subr.mxu0 0.0
    %1112 = vmatpush1.msra.mxu0 %v176
    %1113 = vmatprep.subr.mxu0 0.0
    %1114 = vmatpush1.msra.mxu0 %v181
    %1115 = vmatprep.subr.mxu0 0.0
    %1116 = vmatpush1.msra.mxu0 %v186
    %1117 = vmatprep.subr.mxu0 0.0
    %1118 = vmatpush1.msra.mxu0 0.0
    %1119 = vmatprep.subr.mxu0 0.0
    %1120 = vmatpush1.msra.mxu0 0.0
    %1121 = vmatprep.subr.mxu0 0.0
    %1122 = vmatpush1.msra.mxu0 0.0
    %1123 = vmatprep.subr.mxu0 0.0
    %1124 = vmatpush1.msra.mxu0 0.0
    %1125 = vmatprep.subr.mxu0 0.0
    %1126 = vmatpush1.msra.mxu0 0.0
    %1127 = vmatprep.subr.mxu0 0.0
    %1128 = vmatpush1.msra.mxu0 0.0
    %1129 = vmatprep.subr.mxu0 0.0
    %1130 = vmatpush1.msra.mxu0 0.0
    %1131 = vmatprep.subr.mxu0 0.0
    %1132 = vmatpush1.msra.mxu0 0.0
    %1133 = vmatprep.subr.mxu0 0.0
    %1134 = vmatpush1.msra.mxu0 0.0
    %1135 = vmatprep.subr.mxu0 0.0
    %1136 = vmatpush1.msra.mxu0 0.0
    %1137 = vmatprep.subr.mxu0 0.0
    %1138 = vmatpush1.msra.mxu0 0.0
    %1139 = vmatprep.subr.mxu0 0.0
    %1140 = vmatpush1.msra.mxu0 0.0
    %1141 = vmatprep.subr.mxu0 0.0
    %1142 = vmatpush1.msra.mxu0 0.0
    %1143 = vmatprep.subr.mxu0 0.0
    %1144 = vmatpush1.msra.mxu0 0.0
    %1145 = vmatprep.subr.mxu0 0.0
    %1146 = vmatpush1.msra.mxu0 0.0
    %1147 = vmatprep.subr.mxu0 0.0
    %1148 = vmatpush1.msra.mxu0 0.0
    %1149 = vmatprep.mubr.f32.mxu0 0.0
    %1150 = vmatmul.mubr.f32.gmra.mrb[0].mxu0 %v43
    %v1151 = vpop.f32.mrb[0].mxu0
    %v1152 = vadd.f32 0.0, %v1151
    %v1153 = vpop.f32.mrb[0].mxu0
    %1154 = vmatprep.mubr.f32.mxu0 0.0
    %1155 = vmatmul.mubr.f32.gmra.mrb[0].mxu0 %v44
    %v1156 = vpop.f32.mrb[0].mxu0
    %v1157 = vadd.f32 0.0, %v1156
    %v1158 = vpop.f32.mrb[0].mxu0
    %1159 = vmatprep.mubr.f32.mxu0 0.0
    %1160 = vmatmul.mubr.f32.gmra.mrb[0].mxu0 %v45
    %v1161 = vpop.f32.mrb[0].mxu0
    %v1162 = vadd.f32 0.0, %v1161
    %v1163 = vpop.f32.mrb[0].mxu0
    %1164 = vmatprep.mubr.f32.mxu0 0.0
    %1165 = vmatmul.mubr.f32.gmra.mrb[0].mxu0 %v46
    %v1166 = vpop.f32.mrb[0].mxu0
    %v1167 = vadd.f32 0.0, %v1166
    %v1168 = vpop.f32.mrb[0].mxu0
    %1169 = vmatprep.mubr.f32.mxu0 0.0
    %1170 = vmatmul.mubr.f32.gmra.mrb[0].mxu0 %v47
    %v1171 = vpop.f32.mrb[0].mxu0
    %v1172 = vadd.f32 0.0, %v1171
    %v1173 = vpop.f32.mrb[0].mxu0
    %1174 = vmatprep.mubr.f32.mxu0 0.0
    %1175 = vmatmul.mubr.f32.gmra.mrb[0].mxu0 %v48
    %v1176 = vpop.f32.mrb[0].mxu0
    %v1177 = vadd.f32 0.0, %v1176
    %v1178 = vpop.f32.mrb[0].mxu0
    %1179 = vmatprep.mubr.f32.mxu0 0.0
    %1180 = vmatmul.mubr.f32.gmra.mrb[0].mxu0 %v49
    %v1181 = vpop.f32.mrb[0].mxu0
    %v1182 = vadd.f32 0.0, %v1181
    %v1183 = vpop.f32.mrb[0].mxu0
    %1184 = vmatprep.mubr.f32.mxu0 0.0
    %1185 = vmatmul.mubr.f32.gmra.mrb[0].mxu0 %v50
    %v1186 = vpop.f32.mrb[0].mxu0
    %v1187 = vadd.f32 0.0, %v1186
    %v1188 = vpop.f32.mrb[0].mxu0
    %1189 = vmatprep.mubr.f32.mxu0 0.0
    %1190 = vmatmul.mubr.f32.gmra.mrb[0].mxu0 %v51
    %v1191 = vpop.f32.mrb[0].mxu0
    %v1192 = vadd.f32 0.0, %v1191
    %v1193 = vpop.f32.mrb[0].mxu0
    %1194 = vmatprep.mubr.f32.mxu0 0.0
    %1195 = vmatmul.mubr.f32.gmra.mrb[0].mxu0 %v52
    %v1196 = vpop.f32.mrb[0].mxu0
    %v1197 = vadd.f32 0.0, %v1196
    %v1198 = vpop.f32.mrb[0].mxu0
    %1199 = vmatprep.mubr.f32.mxu0 0.0
    %1200 = vmatmul.mubr.f32.gmra.mrb[0].mxu0 %v53
    %v1201 = vpop.f32.mrb[0].mxu0
    %v1202 = vadd.f32 0.0, %v1201
    %v1203 = vpop.f32.mrb[0].mxu0
    %1204 = vmatprep.mubr.f32.mxu0 0.0
    %1205 = vmatmul.mubr.f32.gmra.mrb[0].mxu0 %v54
    %v1206 = vpop.f32.mrb[0].mxu0
    %v1207 = vadd.f32 0.0, %v1206
    %v1208 = vpop.f32.mrb[0].mxu0
    %1209 = vmatprep.mubr.f32.mxu0 0.0
    %1210 = vmatmul.mubr.f32.gmra.mrb[0].mxu0 %v55
    %v1211 = vpop.f32.mrb[0].mxu0
    %v1212 = vadd.f32 0.0, %v1211
    %v1213 = vpop.f32.mrb[0].mxu0
    %1214 = vmatprep.mubr.f32.mxu0 0.0
    %1215 = vmatmul.mubr.f32.gmra.mrb[0].mxu0 %v56
    %v1216 = vpop.f32.mrb[0].mxu0
    %v1217 = vadd.f32 0.0, %v1216
    %v1218 = vpop.f32.mrb[0].mxu0
    %1219 = vmatprep.mubr.f32.mxu0 0.0
    %1220 = vmatmul.mubr.f32.gmra.mrb[0].mxu0 %v57
    %v1221 = vpop.f32.mrb[0].mxu0
    %v1222 = vadd.f32 0.0, %v1221
    %v1223 = vpop.f32.mrb[0].mxu0
    %1224 = vmatprep.mubr.f32.mxu0 0.0
    %1225 = vmatmul.mubr.f32.gmra.mrb[0].mxu0 %v58
    %v1226 = vpop.f32.mrb[0].mxu0
    %v1227 = vadd.f32 0.0, %v1226
    %v1228 = vpop.f32.mrb[0].mxu0
    %1229 = vmatprep.mubr.f32.mxu0 0.0
    %1230 = vmatmul.mubr.f32.gmra.mrb[0].mxu0 %v59
    %v1231 = vpop.f32.mrb[0].mxu0
    %v1232 = vadd.f32 0.0, %v1231
    %v1233 = vpop.f32.mrb[0].mxu0
    %1234 = vmatprep.mubr.f32.mxu0 0.0
    %1235 = vmatmul.mubr.f32.gmra.mrb[0].mxu0 %v60
    %v1236 = vpop.f32.mrb[0].mxu0
    %v1237 = vadd.f32 0.0, %v1236
    %v1238 = vpop.f32.mrb[0].mxu0
    %1239 = vmatprep.mubr.f32.mxu0 0.0
    %1240 = vmatmul.mubr.f32.gmra.mrb[0].mxu0 %v61
    %v1241 = vpop.f32.mrb[0].mxu0
    %v1242 = vadd.f32 0.0, %v1241
    %v1243 = vpop.f32.mrb[0].mxu0
    %1244 = vmatprep.mubr.f32.mxu0 0.0
    %1245 = vmatmul.mubr.f32.gmra.mrb[0].mxu0 %v62
    %v1246 = vpop.f32.mrb[0].mxu0
    %v1247 = vadd.f32 0.0, %v1246
    %v1248 = vpop.f32.mrb[0].mxu0
    %1249 = vmatprep.mubr.f32.mxu0 0.0
    %1250 = vmatmul.mubr.f32.gmra.mrb[0].mxu0 %v63
    %v1251 = vpop.f32.mrb[0].mxu0
    %v1252 = vadd.f32 0.0, %v1251
    %v1253 = vpop.f32.mrb[0].mxu0
    %1254 = vmatprep.mubr.f32.mxu0 0.0
    %1255 = vmatmul.mubr.f32.gmra.mrb[0].mxu0 %v64
    %v1256 = vpop.f32.mrb[0].mxu0
    %v1257 = vadd.f32 0.0, %v1256
    %v1258 = vpop.f32.mrb[0].mxu0
    %1259 = vmatprep.mubr.f32.mxu0 0.0
    %1260 = vmatmul.mubr.f32.gmra.mrb[0].mxu0 %v65
    %v1261 = vpop.f32.mrb[0].mxu0
    %v1262 = vadd.f32 0.0, %v1261
    %v1263 = vpop.f32.mrb[0].mxu0
    %1264 = vmatprep.mubr.f32.mxu0 0.0
    %1265 = vmatmul.mubr.f32.gmra.mrb[0].mxu0 %v66
    %v1266 = vpop.f32.mrb[0].mxu0
    %v1267 = vadd.f32 0.0, %v1266
    %v1268 = vpop.f32.mrb[0].mxu0
    %1269 = vmatprep.mubr.f32.mxu0 0.0
    %1270 = vmatmul.mubr.f32.gmra.mrb[0].mxu0 %v67
    %v1271 = vpop.f32.mrb[0].mxu0
    %v1272 = vadd.f32 0.0, %v1271
    %v1273 = vpop.f32.mrb[0].mxu0
    %1274 = vmatprep.mubr.f32.mxu0 0.0
    %1275 = vmatmul.mubr.f32.gmra.mrb[0].mxu0 %v68
    %v1276 = vpop.f32.mrb[0].mxu0
    %v1277 = vadd.f32 0.0, %v1276
    %v1278 = vpop.f32.mrb[0].mxu0
    %1279 = vmatprep.mubr.f32.mxu0 0.0
    %1280 = vmatmul.mubr.f32.gmra.mrb[0].mxu0 %v69
    %v1281 = vpop.f32.mrb[0].mxu0
    %v1282 = vadd.f32 0.0, %v1281
    %v1283 = vpop.f32.mrb[0].mxu0
    %1284 = vmatprep.mubr.f32.mxu0 0.0
    %1285 = vmatmul.mubr.f32.gmra.mrb[0].mxu0 %v70
    %v1286 = vpop.f32.mrb[0].mxu0
    %v1287 = vadd.f32 0.0, %v1286
    %v1288 = vpop.f32.mrb[0].mxu0
    %1289 = vmatprep.mubr.f32.mxu0 0.0
    %1290 = vmatmul.mubr.f32.gmra.mrb[0].mxu0 %v71
    %v1291 = vpop.f32.mrb[0].mxu0
    %v1292 = vadd.f32 0.0, %v1291
    %v1293 = vpop.f32.mrb[0].mxu0
    %1294 = vmatprep.mubr.f32.mxu0 0.0
    %1295 = vmatmul.mubr.f32.gmra.mrb[0].mxu0 %v72
    %v1296 = vpop.f32.mrb[0].mxu0
    %v1297 = vadd.f32 0.0, %v1296
    %v1298 = vpop.f32.mrb[0].mxu0
    %1299 = vmatprep.mubr.f32.mxu0 0.0
    %1300 = vmatmul.mubr.f32.gmra.mrb[0].mxu0 %v73
    %v1301 = vpop.f32.mrb[0].mxu0
    %v1302 = vadd.f32 0.0, %v1301
    %v1303 = vpop.f32.mrb[0].mxu0
    %1304 = vmatprep.mubr.f32.mxu0 0.0
    %1305 = vmatmul.mubr.f32.gmra.mrb[0].mxu0 %v74
    %v1306 = vpop.f32.mrb[0].mxu0
    %v1307 = vadd.f32 0.0, %v1306
    %v1308 = vpop.f32.mrb[0].mxu0
    %1309 = vmatprep.mubr.f32.mxu0 0.0
    %1310 = vmatmul.mubr.f32.gmra.mrb[0].mxu0 %v75
    %v1311 = vpop.f32.mrb[0].mxu0
    %v1312 = vadd.f32 0.0, %v1311
    %v1313 = vpop.f32.mrb[0].mxu0
    %1314 = vmatprep.mubr.f32.mxu0 0.0
    %1315 = vmatmul.mubr.f32.gmra.mrb[0].mxu0 %v76
    %v1316 = vpop.f32.mrb[0].mxu0
    %v1317 = vadd.f32 0.0, %v1316
    %v1318 = vpop.f32.mrb[0].mxu0
    %1319 = vmatprep.mubr.f32.mxu0 0.0
    %1320 = vmatmul.mubr.f32.gmra.mrb[0].mxu0 %v77
    %v1321 = vpop.f32.mrb[0].mxu0
    %v1322 = vadd.f32 0.0, %v1321
    %v1323 = vpop.f32.mrb[0].mxu0
    %1324 = vmatprep.mubr.f32.mxu0 0.0
    %1325 = vmatmul.mubr.f32.gmra.mrb[0].mxu0 %v78
    %v1326 = vpop.f32.mrb[0].mxu0
    %v1327 = vadd.f32 0.0, %v1326
    %v1328 = vpop.f32.mrb[0].mxu0
    %1329 = vmatprep.mubr.f32.mxu0 0.0
    %1330 = vmatmul.mubr.f32.gmra.mrb[0].mxu0 %v79
    %v1331 = vpop.f32.mrb[0].mxu0
    %v1332 = vadd.f32 0.0, %v1331
    %v1333 = vpop.f32.mrb[0].mxu0
    %1334 = vmatprep.mubr.f32.mxu0 0.0
    %1335 = vmatmul.mubr.f32.gmra.mrb[0].mxu0 %v80
    %v1336 = vpop.f32.mrb[0].mxu0
    %v1337 = vadd.f32 0.0, %v1336
    %v1338 = vpop.f32.mrb[0].mxu0
    %1339 = vmatprep.mubr.f32.mxu0 0.0
    %1340 = vmatmul.mubr.f32.gmra.mrb[0].mxu0 %v81
    %v1341 = vpop.f32.mrb[0].mxu0
    %v1342 = vadd.f32 0.0, %v1341
    %v1343 = vpop.f32.mrb[0].mxu0
    %1344 = vmatprep.mubr.f32.mxu0 0.0
    %1345 = vmatmul.mubr.f32.gmra.mrb[0].mxu0 %v82
    %v1346 = vpop.f32.mrb[0].mxu0
    %v1347 = vadd.f32 0.0, %v1346
    %v1348 = vpop.f32.mrb[0].mxu0
    %1349 = vmatprep.mubr.f32.mxu0 0.0
    %1350 = vmatmul.mubr.f32.gmra.mrb[0].mxu0 %v83
    %v1351 = vpop.f32.mrb[0].mxu0
    %v1352 = vadd.f32 0.0, %v1351
    %v1353 = vpop.f32.mrb[0].mxu0
    %1354 = vmatprep.mubr.f32.mxu0 0.0
    %1355 = vmatmul.mubr.f32.gmra.mrb[0].mxu0 %v84
    %v1356 = vpop.f32.mrb[0].mxu0
    %v1357 = vadd.f32 0.0, %v1356
    %v1358 = vpop.f32.mrb[0].mxu0
    %1359 = vmatprep.mubr.f32.mxu0 0.0
    %1360 = vmatmul.mubr.f32.gmra.mrb[0].mxu0 %v85
    %v1361 = vpop.f32.mrb[0].mxu0
    %v1362 = vadd.f32 0.0, %v1361
    %v1363 = vpop.f32.mrb[0].mxu0
    %1364 = vmatprep.mubr.f32.mxu0 0.0
    %1365 = vmatmul.mubr.f32.gmra.mrb[0].mxu0 %v86
    %v1366 = vpop.f32.mrb[0].mxu0
    %v1367 = vadd.f32 0.0, %v1366
    %v1368 = vpop.f32.mrb[0].mxu0
    %1369 = vmatprep.mubr.f32.mxu0 0.0
    %1370 = vmatmul.mubr.f32.gmra.mrb[0].mxu0 %v87
    %v1371 = vpop.f32.mrb[0].mxu0
    %v1372 = vadd.f32 0.0, %v1371
    %v1373 = vpop.f32.mrb[0].mxu0
    %1374 = vmatprep.mubr.f32.mxu0 0.0
    %1375 = vmatmul.mubr.f32.gmra.mrb[0].mxu0 %v88
    %v1376 = vpop.f32.mrb[0].mxu0
    %v1377 = vadd.f32 0.0, %v1376
    %v1378 = vpop.f32.mrb[0].mxu0
    %1379 = vmatprep.mubr.f32.mxu0 0.0
    %1380 = vmatmul.mubr.f32.gmra.mrb[0].mxu0 %v89
    %v1381 = vpop.f32.mrb[0].mxu0
    %v1382 = vadd.f32 0.0, %v1381
    %v1383 = vpop.f32.mrb[0].mxu0
    %1384 = vmatprep.mubr.f32.mxu0 0.0
    %1385 = vmatmul.mubr.f32.gmra.mrb[0].mxu0 %v90
    %v1386 = vpop.f32.mrb[0].mxu0
    %v1387 = vadd.f32 0.0, %v1386
    %v1388 = vpop.f32.mrb[0].mxu0
    %1389 = vmatprep.mubr.f32.mxu0 0.0
    %1390 = vmatmul.mubr.f32.gmra.mrb[0].mxu0 %v91
    %v1391 = vpop.f32.mrb[0].mxu0
    %v1392 = vadd.f32 0.0, %v1391
    %v1393 = vpop.f32.mrb[0].mxu0
    %1394 = vmatprep.mubr.f32.mxu0 0.0
    %1395 = vmatmul.mubr.f32.gmra.mrb[0].mxu0 %v92
    %v1396 = vpop.f32.mrb[0].mxu0
    %v1397 = vadd.f32 0.0, %v1396
    %v1398 = vpop.f32.mrb[0].mxu0
    %1399 = vmatprep.mubr.f32.mxu0 0.0
    %1400 = vmatmul.mubr.f32.gmra.mrb[0].mxu0 %v93
    %v1401 = vpop.f32.mrb[0].mxu0
    %v1402 = vadd.f32 0.0, %v1401
    %v1403 = vpop.f32.mrb[0].mxu0
    %1404 = vmatprep.mubr.f32.mxu0 0.0
    %1405 = vmatmul.mubr.f32.gmra.mrb[0].mxu0 %v94
    %v1406 = vpop.f32.mrb[0].mxu0
    %v1407 = vadd.f32 0.0, %v1406
    %v1408 = vpop.f32.mrb[0].mxu0
    %1409 = vmatprep.mubr.f32.mxu0 0.0
    %1410 = vmatmul.mubr.f32.gmra.mrb[0].mxu0 %v95
    %v1411 = vpop.f32.mrb[0].mxu0
    %v1412 = vadd.f32 0.0, %v1411
    %v1413 = vpop.f32.mrb[0].mxu0
    %1414 = vmatprep.mubr.f32.mxu0 0.0
    %1415 = vmatmul.mubr.f32.gmra.mrb[0].mxu0 %v96
    %v1416 = vpop.f32.mrb[0].mxu0
    %v1417 = vadd.f32 0.0, %v1416
    %v1418 = vpop.f32.mrb[0].mxu0
    %1419 = vmatprep.mubr.f32.mxu0 0.0
    %1420 = vmatmul.mubr.f32.gmra.mrb[0].mxu0 %v97
    %v1421 = vpop.f32.mrb[0].mxu0
    %v1422 = vadd.f32 0.0, %v1421
    %v1423 = vpop.f32.mrb[0].mxu0
    %1424 = vmatprep.mubr.f32.mxu0 0.0
    %1425 = vmatmul.mubr.f32.gmra.mrb[0].mxu0 %v98
    %v1426 = vpop.f32.mrb[0].mxu0
    %v1427 = vadd.f32 0.0, %v1426
    %v1428 = vpop.f32.mrb[0].mxu0
    %1429 = vmatprep.mubr.f32.mxu0 0.0
    %1430 = vmatmul.mubr.f32.gmra.mrb[0].mxu0 %v99
    %v1431 = vpop.f32.mrb[0].mxu0
    %v1432 = vadd.f32 0.0, %v1431
    %v1433 = vpop.f32.mrb[0].mxu0
    %1434 = vmatprep.mubr.f32.mxu0 0.0
    %1435 = vmatmul.mubr.f32.gmra.mrb[0].mxu0 %v100
    %v1436 = vpop.f32.mrb[0].mxu0
    %v1437 = vadd.f32 0.0, %v1436
    %v1438 = vpop.f32.mrb[0].mxu0
    %1439 = vmatprep.mubr.f32.mxu0 0.0
    %1440 = vmatmul.mubr.f32.gmra.mrb[0].mxu0 %v101
    %v1441 = vpop.f32.mrb[0].mxu0
    %v1442 = vadd.f32 0.0, %v1441
    %v1443 = vpop.f32.mrb[0].mxu0
    %1444 = vmatprep.mubr.f32.mxu0 0.0
    %1445 = vmatmul.mubr.f32.gmra.mrb[0].mxu0 %v102
    %v1446 = vpop.f32.mrb[0].mxu0
    %v1447 = vadd.f32 0.0, %v1446
    %v1448 = vpop.f32.mrb[0].mxu0
    %1449 = vmatprep.mubr.f32.mxu0 0.0
    %1450 = vmatmul.mubr.f32.gmra.mrb[0].mxu0 %v103
    %v1451 = vpop.f32.mrb[0].mxu0
    %v1452 = vadd.f32 0.0, %v1451
    %v1453 = vpop.f32.mrb[0].mxu0
    %1454 = vmatprep.mubr.f32.mxu0 0.0
    %1455 = vmatmul.mubr.f32.gmra.mrb[0].mxu0 %v104
    %v1456 = vpop.f32.mrb[0].mxu0
    %v1457 = vadd.f32 0.0, %v1456
    %v1458 = vpop.f32.mrb[0].mxu0
    %1459 = vmatprep.mubr.f32.mxu0 0.0
    %1460 = vmatmul.mubr.f32.gmra.mrb[0].mxu0 %v105
    %v1461 = vpop.f32.mrb[0].mxu0
    %v1462 = vadd.f32 0.0, %v1461
    %v1463 = vpop.f32.mrb[0].mxu0
    %1464 = vmatprep.mubr.f32.mxu0 0.0
    %1465 = vmatmul.mubr.f32.gmra.mrb[0].mxu0 %v106
    %v1466 = vpop.f32.mrb[0].mxu0
    %v1467 = vadd.f32 0.0, %v1466
    %v1468 = vpop.f32.mrb[0].mxu0
    %1469 = vdwg.mxu0
    %v1470 = vlaneseq
    %v1471 = vshrl.u32 %v1470, 7
    %v1472 = vadd.s32 %v1471, 8
    %v1473 = vadd.s32 %v1471, 16
    %v1474 = vadd.s32 %v1471, 24
    %v1475 = vadd.s32 %v1471, 32
    %v1476 = vadd.s32 %v1471, 40
    %v1477 = vadd.s32 %v1471, 48
    %v1478 = vadd.s32 %v1471, 56
    %v1479 = vadd.s32 %v1471, 64
    %v1480 = vadd.s32 %v1471, 72
    %v1481 = vadd.s32 %v1471, 80
    %v1482 = vadd.s32 %v1471, 88
    %v1483 = vadd.s32 %v1471, 96
    %v1484 = vadd.s32 %v1471, 104
    %v1485 = vadd.s32 %v1471, 112
    %v1486 = vadd.s32 %v1471, 120
    %v1487 = vadd.s32 %v1471, 128
    %v1488 = vadd.s32 %v1471, 136
    %v1489 = vadd.s32 %v1471, 144
    %v1490 = vadd.s32 %v1471, 152
    %v1491 = vadd.s32 %v1471, 160
    %v1492 = vadd.s32 %v1471, 168
    %v1493 = vadd.s32 %v1471, 176
    %v1494 = vadd.s32 %v1471, 184
    %v1495 = vadd.s32 %v1471, 192
    %v1496 = vadd.s32 %v1471, 200
    %v1497 = vadd.s32 %v1471, 208
    %v1498 = vadd.s32 %v1471, 216
    %v1499 = vadd.s32 %v1471, 224
    %v1500 = vadd.s32 %v1471, 232
    %v1501 = vadd.s32 %v1471, 240
    %v1502 = vadd.s32 %v1471, 248
    %v1503 = vadd.s32 %v1471, 256
    %v1504 = vadd.s32 %v1471, 264
    %v1505 = vadd.s32 %v1471, 272
    %v1506 = vadd.s32 %v1471, 280
    %v1507 = vadd.s32 %v1471, 288
    %v1508 = vadd.s32 %v1471, 296
    %v1509 = vadd.s32 %v1471, 304
    %v1510 = vadd.s32 %v1471, 312
    %v1511 = vadd.s32 %v1471, 320
    %v1512 = vadd.s32 %v1471, 328
    %v1513 = vadd.s32 %v1471, 336
    %v1514 = vadd.s32 %v1471, 344
    %v1515 = vadd.s32 %v1471, 352
    %v1516 = vadd.s32 %v1471, 360
    %v1517 = vadd.s32 %v1471, 368
    %v1518 = vadd.s32 %v1471, 376
    %v1519 = vadd.s32 %v1471, 384
    %v1520 = vadd.s32 %v1471, 392
    %v1521 = vadd.s32 %v1471, 400
    %v1522 = vadd.s32 %v1471, 408
    %v1523 = vadd.s32 %v1471, 416
    %v1524 = vadd.s32 %v1471, 424
    %v1525 = vadd.s32 %v1471, 432
    %v1526 = vadd.s32 %v1471, 440
    %v1527 = vadd.s32 %v1471, 448
    %v1528 = vadd.s32 %v1471, 456
    %v1529 = vadd.s32 %v1471, 464
    %v1530 = vadd.s32 %v1471, 472
    %v1531 = vadd.s32 %v1471, 480
    %v1532 = vadd.s32 %v1471, 488
    %v1533 = vadd.s32 %v1471, 496
    %v1534 = vadd.s32 %v1471, 504
    %vm1535 = vcmp.lt.s32.totalorder %v1471, 0
    %v1536 = vsub.s32 0, %v1471
    %v1537 = vsel %vm1535, %v1536, %v1471
    %v1538 = vshrl.u32 %v1537, 6
    %v1539 = vand.u32 %v1537, 63
    %v1540 = vsub.s32 0, %v1539
    %v1541 = vsel %vm1535, %v1540, %v1539
    %vm1542 = vcmp.lt.s32.totalorder %v1472, 0
    %v1543 = vsub.s32 0, %v1472
    %v1544 = vsel %vm1542, %v1543, %v1472
    %v1545 = vshrl.u32 %v1544, 6
    %v1546 = vand.u32 %v1544, 63
    %v1547 = vsub.s32 0, %v1546
    %v1548 = vsel %vm1542, %v1547, %v1546
    %vm1549 = vcmp.lt.s32.totalorder %v1473, 0
    %v1550 = vsub.s32 0, %v1473
    %v1551 = vsel %vm1549, %v1550, %v1473
    %v1552 = vshrl.u32 %v1551, 6
    %v1553 = vand.u32 %v1551, 63
    %v1554 = vsub.s32 0, %v1553
    %v1555 = vsel %vm1549, %v1554, %v1553
    %vm1556 = vcmp.lt.s32.totalorder %v1474, 0
    %v1557 = vsub.s32 0, %v1474
    %v1558 = vsel %vm1556, %v1557, %v1474
    %v1559 = vshrl.u32 %v1558, 6
    %v1560 = vand.u32 %v1558, 63
    %v1561 = vsub.s32 0, %v1560
    %v1562 = vsel %vm1556, %v1561, %v1560
    %vm1563 = vcmp.lt.s32.totalorder %v1475, 0
    %v1564 = vsub.s32 0, %v1475
    %v1565 = vsel %vm1563, %v1564, %v1475
    %v1566 = vshrl.u32 %v1565, 6
    %v1567 = vand.u32 %v1565, 63
    %v1568 = vsub.s32 0, %v1567
    %v1569 = vsel %vm1563, %v1568, %v1567
    %vm1570 = vcmp.lt.s32.totalorder %v1476, 0
    %v1571 = vsub.s32 0, %v1476
    %v1572 = vsel %vm1570, %v1571, %v1476
    %v1573 = vshrl.u32 %v1572, 6
    %v1574 = vand.u32 %v1572, 63
    %v1575 = vsub.s32 0, %v1574
    %v1576 = vsel %vm1570, %v1575, %v1574
    %vm1577 = vcmp.lt.s32.totalorder %v1477, 0
    %v1578 = vsub.s32 0, %v1477
    %v1579 = vsel %vm1577, %v1578, %v1477
    %v1580 = vshrl.u32 %v1579, 6
    %v1581 = vand.u32 %v1579, 63
    %v1582 = vsub.s32 0, %v1581
    %v1583 = vsel %vm1577, %v1582, %v1581
    %vm1584 = vcmp.lt.s32.totalorder %v1478, 0
    %v1585 = vsub.s32 0, %v1478
    %v1586 = vsel %vm1584, %v1585, %v1478
    %v1587 = vshrl.u32 %v1586, 6
    %v1588 = vand.u32 %v1586, 63
    %v1589 = vsub.s32 0, %v1588
    %v1590 = vsel %vm1584, %v1589, %v1588
    %vm1591 = vcmp.lt.s32.totalorder %v1479, 0
    %v1592 = vsub.s32 0, %v1479
    %v1593 = vsel %vm1591, %v1592, %v1479
    %v1594 = vshrl.u32 %v1593, 6
    %v1595 = vand.u32 %v1593, 63
    %v1596 = vsub.s32 0, %v1595
    %v1597 = vsel %vm1591, %v1596, %v1595
    %vm1598 = vcmp.lt.s32.totalorder %v1480, 0
    %v1599 = vsub.s32 0, %v1480
    %v1600 = vsel %vm1598, %v1599, %v1480
    %v1601 = vshrl.u32 %v1600, 6
    %v1602 = vand.u32 %v1600, 63
    %v1603 = vsub.s32 0, %v1602
    %v1604 = vsel %vm1598, %v1603, %v1602
    %vm1605 = vcmp.lt.s32.totalorder %v1481, 0
    %v1606 = vsub.s32 0, %v1481
    %v1607 = vsel %vm1605, %v1606, %v1481
    %v1608 = vshrl.u32 %v1607, 6
    %v1609 = vand.u32 %v1607, 63
    %v1610 = vsub.s32 0, %v1609
    %v1611 = vsel %vm1605, %v1610, %v1609
    %vm1612 = vcmp.lt.s32.totalorder %v1482, 0
    %v1613 = vsub.s32 0, %v1482
    %v1614 = vsel %vm1612, %v1613, %v1482
    %v1615 = vshrl.u32 %v1614, 6
    %v1616 = vand.u32 %v1614, 63
    %v1617 = vsub.s32 0, %v1616
    %v1618 = vsel %vm1612, %v1617, %v1616
    %vm1619 = vcmp.lt.s32.totalorder %v1483, 0
    %v1620 = vsub.s32 0, %v1483
    %v1621 = vsel %vm1619, %v1620, %v1483
    %v1622 = vshrl.u32 %v1621, 6
    %v1623 = vand.u32 %v1621, 63
    %v1624 = vsub.s32 0, %v1623
    %v1625 = vsel %vm1619, %v1624, %v1623
    %vm1626 = vcmp.lt.s32.totalorder %v1484, 0
    %v1627 = vsub.s32 0, %v1484
    %v1628 = vsel %vm1626, %v1627, %v1484
    %v1629 = vshrl.u32 %v1628, 6
    %v1630 = vand.u32 %v1628, 63
    %v1631 = vsub.s32 0, %v1630
    %v1632 = vsel %vm1626, %v1631, %v1630
    %vm1633 = vcmp.lt.s32.totalorder %v1485, 0
    %v1634 = vsub.s32 0, %v1485
    %v1635 = vsel %vm1633, %v1634, %v1485
    %v1636 = vshrl.u32 %v1635, 6
    %v1637 = vand.u32 %v1635, 63
    %v1638 = vsub.s32 0, %v1637
    %v1639 = vsel %vm1633, %v1638, %v1637
    %vm1640 = vcmp.lt.s32.totalorder %v1486, 0
    %v1641 = vsub.s32 0, %v1486
    %v1642 = vsel %vm1640, %v1641, %v1486
    %v1643 = vshrl.u32 %v1642, 6
    %v1644 = vand.u32 %v1642, 63
    %v1645 = vsub.s32 0, %v1644
    %v1646 = vsel %vm1640, %v1645, %v1644
    %vm1647 = vcmp.lt.s32.totalorder %v1487, 0
    %v1648 = vsub.s32 0, %v1487
    %v1649 = vsel %vm1647, %v1648, %v1487
    %v1650 = vshrl.u32 %v1649, 6
    %v1651 = vand.u32 %v1649, 63
    %v1652 = vsub.s32 0, %v1651
    %v1653 = vsel %vm1647, %v1652, %v1651
    %vm1654 = vcmp.lt.s32.totalorder %v1488, 0
    %v1655 = vsub.s32 0, %v1488
    %v1656 = vsel %vm1654, %v1655, %v1488
    %v1657 = vshrl.u32 %v1656, 6
    %v1658 = vand.u32 %v1656, 63
    %v1659 = vsub.s32 0, %v1658
    %v1660 = vsel %vm1654, %v1659, %v1658
    %vm1661 = vcmp.lt.s32.totalorder %v1489, 0
    %v1662 = vsub.s32 0, %v1489
    %v1663 = vsel %vm1661, %v1662, %v1489
    %v1664 = vshrl.u32 %v1663, 6
    %v1665 = vand.u32 %v1663, 63
    %v1666 = vsub.s32 0, %v1665
    %v1667 = vsel %vm1661, %v1666, %v1665
    %vm1668 = vcmp.lt.s32.totalorder %v1490, 0
    %v1669 = vsub.s32 0, %v1490
    %v1670 = vsel %vm1668, %v1669, %v1490
    %v1671 = vshrl.u32 %v1670, 6
    %v1672 = vand.u32 %v1670, 63
    %v1673 = vsub.s32 0, %v1672
    %v1674 = vsel %vm1668, %v1673, %v1672
    %vm1675 = vcmp.lt.s32.totalorder %v1491, 0
    %v1676 = vsub.s32 0, %v1491
    %v1677 = vsel %vm1675, %v1676, %v1491
    %v1678 = vshrl.u32 %v1677, 6
    %v1679 = vand.u32 %v1677, 63
    %v1680 = vsub.s32 0, %v1679
    %v1681 = vsel %vm1675, %v1680, %v1679
    %vm1682 = vcmp.lt.s32.totalorder %v1492, 0
    %v1683 = vsub.s32 0, %v1492
    %v1684 = vsel %vm1682, %v1683, %v1492
    %v1685 = vshrl.u32 %v1684, 6
    %v1686 = vand.u32 %v1684, 63
    %v1687 = vsub.s32 0, %v1686
    %v1688 = vsel %vm1682, %v1687, %v1686
    %vm1689 = vcmp.lt.s32.totalorder %v1493, 0
    %v1690 = vsub.s32 0, %v1493
    %v1691 = vsel %vm1689, %v1690, %v1493
    %v1692 = vshrl.u32 %v1691, 6
    %v1693 = vand.u32 %v1691, 63
    %v1694 = vsub.s32 0, %v1693
    %v1695 = vsel %vm1689, %v1694, %v1693
    %vm1696 = vcmp.lt.s32.totalorder %v1494, 0
    %v1697 = vsub.s32 0, %v1494
    %v1698 = vsel %vm1696, %v1697, %v1494
    %v1699 = vshrl.u32 %v1698, 6
    %v1700 = vand.u32 %v1698, 63
    %v1701 = vsub.s32 0, %v1700
    %v1702 = vsel %vm1696, %v1701, %v1700
    %vm1703 = vcmp.lt.s32.totalorder %v1495, 0
    %v1704 = vsub.s32 0, %v1495
    %v1705 = vsel %vm1703, %v1704, %v1495
    %v1706 = vshrl.u32 %v1705, 6
    %v1707 = vand.u32 %v1705, 63
    %v1708 = vsub.s32 0, %v1707
    %v1709 = vsel %vm1703, %v1708, %v1707
    %vm1710 = vcmp.lt.s32.totalorder %v1496, 0
    %v1711 = vsub.s32 0, %v1496
    %v1712 = vsel %vm1710, %v1711, %v1496
    %v1713 = vshrl.u32 %v1712, 6
    %v1714 = vand.u32 %v1712, 63
    %v1715 = vsub.s32 0, %v1714
    %v1716 = vsel %vm1710, %v1715, %v1714
    %vm1717 = vcmp.lt.s32.totalorder %v1497, 0
    %v1718 = vsub.s32 0, %v1497
    %v1719 = vsel %vm1717, %v1718, %v1497
    %v1720 = vshrl.u32 %v1719, 6
    %v1721 = vand.u32 %v1719, 63
    %v1722 = vsub.s32 0, %v1721
    %v1723 = vsel %vm1717, %v1722, %v1721
    %vm1724 = vcmp.lt.s32.totalorder %v1498, 0
    %v1725 = vsub.s32 0, %v1498
    %v1726 = vsel %vm1724, %v1725, %v1498
    %v1727 = vshrl.u32 %v1726, 6
    %v1728 = vand.u32 %v1726, 63
    %v1729 = vsub.s32 0, %v1728
    %v1730 = vsel %vm1724, %v1729, %v1728
    %vm1731 = vcmp.lt.s32.totalorder %v1499, 0
    %v1732 = vsub.s32 0, %v1499
    %v1733 = vsel %vm1731, %v1732, %v1499
    %v1734 = vshrl.u32 %v1733, 6
    %v1735 = vand.u32 %v1733, 63
    %v1736 = vsub.s32 0, %v1735
    %v1737 = vsel %vm1731, %v1736, %v1735
    %vm1738 = vcmp.lt.s32.totalorder %v1500, 0
    %v1739 = vsub.s32 0, %v1500
    %v1740 = vsel %vm1738, %v1739, %v1500
    %v1741 = vshrl.u32 %v1740, 6
    %v1742 = vand.u32 %v1740, 63
    %v1743 = vsub.s32 0, %v1742
    %v1744 = vsel %vm1738, %v1743, %v1742
    %vm1745 = vcmp.lt.s32.totalorder %v1501, 0
    %v1746 = vsub.s32 0, %v1501
    %v1747 = vsel %vm1745, %v1746, %v1501
    %v1748 = vshrl.u32 %v1747, 6
    %v1749 = vand.u32 %v1747, 63
    %v1750 = vsub.s32 0, %v1749
    %v1751 = vsel %vm1745, %v1750, %v1749
    %vm1752 = vcmp.lt.s32.totalorder %v1502, 0
    %v1753 = vsub.s32 0, %v1502
    %v1754 = vsel %vm1752, %v1753, %v1502
    %v1755 = vshrl.u32 %v1754, 6
    %v1756 = vand.u32 %v1754, 63
    %v1757 = vsub.s32 0, %v1756
    %v1758 = vsel %vm1752, %v1757, %v1756
    %vm1759 = vcmp.lt.s32.totalorder %v1503, 0
    %v1760 = vsub.s32 0, %v1503
    %v1761 = vsel %vm1759, %v1760, %v1503
    %v1762 = vshrl.u32 %v1761, 6
    %v1763 = vand.u32 %v1761, 63
    %v1764 = vsub.s32 0, %v1763
    %v1765 = vsel %vm1759, %v1764, %v1763
    %vm1766 = vcmp.lt.s32.totalorder %v1504, 0
    %v1767 = vsub.s32 0, %v1504
    %v1768 = vsel %vm1766, %v1767, %v1504
    %v1769 = vshrl.u32 %v1768, 6
    %v1770 = vand.u32 %v1768, 63
    %v1771 = vsub.s32 0, %v1770
    %v1772 = vsel %vm1766, %v1771, %v1770
    %vm1773 = vcmp.lt.s32.totalorder %v1505, 0
    %v1774 = vsub.s32 0, %v1505
    %v1775 = vsel %vm1773, %v1774, %v1505
    %v1776 = vshrl.u32 %v1775, 6
    %v1777 = vand.u32 %v1775, 63
    %v1778 = vsub.s32 0, %v1777
    %v1779 = vsel %vm1773, %v1778, %v1777
    %vm1780 = vcmp.lt.s32.totalorder %v1506, 0
    %v1781 = vsub.s32 0, %v1506
    %v1782 = vsel %vm1780, %v1781, %v1506
    %v1783 = vshrl.u32 %v1782, 6
    %v1784 = vand.u32 %v1782, 63
    %v1785 = vsub.s32 0, %v1784
    %v1786 = vsel %vm1780, %v1785, %v1784
    %vm1787 = vcmp.lt.s32.totalorder %v1507, 0
    %v1788 = vsub.s32 0, %v1507
    %v1789 = vsel %vm1787, %v1788, %v1507
    %v1790 = vshrl.u32 %v1789, 6
    %v1791 = vand.u32 %v1789, 63
    %v1792 = vsub.s32 0, %v1791
    %v1793 = vsel %vm1787, %v1792, %v1791
    %vm1794 = vcmp.lt.s32.totalorder %v1508, 0
    %v1795 = vsub.s32 0, %v1508
    %v1796 = vsel %vm1794, %v1795, %v1508
    %v1797 = vshrl.u32 %v1796, 6
    %v1798 = vand.u32 %v1796, 63
    %v1799 = vsub.s32 0, %v1798
    %v1800 = vsel %vm1794, %v1799, %v1798
    %vm1801 = vcmp.lt.s32.totalorder %v1509, 0
    %v1802 = vsub.s32 0, %v1509
    %v1803 = vsel %vm1801, %v1802, %v1509
    %v1804 = vshrl.u32 %v1803, 6
    %v1805 = vand.u32 %v1803, 63
    %v1806 = vsub.s32 0, %v1805
    %v1807 = vsel %vm1801, %v1806, %v1805
    %vm1808 = vcmp.lt.s32.totalorder %v1510, 0
    %v1809 = vsub.s32 0, %v1510
    %v1810 = vsel %vm1808, %v1809, %v1510
    %v1811 = vshrl.u32 %v1810, 6
    %v1812 = vand.u32 %v1810, 63
    %v1813 = vsub.s32 0, %v1812
    %v1814 = vsel %vm1808, %v1813, %v1812
    %vm1815 = vcmp.lt.s32.totalorder %v1511, 0
    %v1816 = vsub.s32 0, %v1511
    %v1817 = vsel %vm1815, %v1816, %v1511
    %v1818 = vshrl.u32 %v1817, 6
    %v1819 = vand.u32 %v1817, 63
    %v1820 = vsub.s32 0, %v1819
    %v1821 = vsel %vm1815, %v1820, %v1819
    %vm1822 = vcmp.lt.s32.totalorder %v1512, 0
    %v1823 = vsub.s32 0, %v1512
    %v1824 = vsel %vm1822, %v1823, %v1512
    %v1825 = vshrl.u32 %v1824, 6
    %v1826 = vand.u32 %v1824, 63
    %v1827 = vsub.s32 0, %v1826
    %v1828 = vsel %vm1822, %v1827, %v1826
    %vm1829 = vcmp.lt.s32.totalorder %v1513, 0
    %v1830 = vsub.s32 0, %v1513
    %v1831 = vsel %vm1829, %v1830, %v1513
    %v1832 = vshrl.u32 %v1831, 6
    %v1833 = vand.u32 %v1831, 63
    %v1834 = vsub.s32 0, %v1833
    %v1835 = vsel %vm1829, %v1834, %v1833
    %vm1836 = vcmp.lt.s32.totalorder %v1514, 0
    %v1837 = vsub.s32 0, %v1514
    %v1838 = vsel %vm1836, %v1837, %v1514
    %v1839 = vshrl.u32 %v1838, 6
    %v1840 = vand.u32 %v1838, 63
    %v1841 = vsub.s32 0, %v1840
    %v1842 = vsel %vm1836, %v1841, %v1840
    %vm1843 = vcmp.lt.s32.totalorder %v1515, 0
    %v1844 = vsub.s32 0, %v1515
    %v1845 = vsel %vm1843, %v1844, %v1515
    %v1846 = vshrl.u32 %v1845, 6
    %v1847 = vand.u32 %v1845, 63
    %v1848 = vsub.s32 0, %v1847
    %v1849 = vsel %vm1843, %v1848, %v1847
    %vm1850 = vcmp.lt.s32.totalorder %v1516, 0
    %v1851 = vsub.s32 0, %v1516
    %v1852 = vsel %vm1850, %v1851, %v1516
    %v1853 = vshrl.u32 %v1852, 6
    %v1854 = vand.u32 %v1852, 63
    %v1855 = vsub.s32 0, %v1854
    %v1856 = vsel %vm1850, %v1855, %v1854
    %vm1857 = vcmp.lt.s32.totalorder %v1517, 0
    %v1858 = vsub.s32 0, %v1517
    %v1859 = vsel %vm1857, %v1858, %v1517
    %v1860 = vshrl.u32 %v1859, 6
    %v1861 = vand.u32 %v1859, 63
    %v1862 = vsub.s32 0, %v1861
    %v1863 = vsel %vm1857, %v1862, %v1861
    %vm1864 = vcmp.lt.s32.totalorder %v1518, 0
    %v1865 = vsub.s32 0, %v1518
    %v1866 = vsel %vm1864, %v1865, %v1518
    %v1867 = vshrl.u32 %v1866, 6
    %v1868 = vand.u32 %v1866, 63
    %v1869 = vsub.s32 0, %v1868
    %v1870 = vsel %vm1864, %v1869, %v1868
    %vm1871 = vcmp.lt.s32.totalorder %v1519, 0
    %v1872 = vsub.s32 0, %v1519
    %v1873 = vsel %vm1871, %v1872, %v1519
    %v1874 = vshrl.u32 %v1873, 6
    %v1875 = vand.u32 %v1873, 63
    %v1876 = vsub.s32 0, %v1875
    %v1877 = vsel %vm1871, %v1876, %v1875
    %vm1878 = vcmp.lt.s32.totalorder %v1520, 0
    %v1879 = vsub.s32 0, %v1520
    %v1880 = vsel %vm1878, %v1879, %v1520
    %v1881 = vshrl.u32 %v1880, 6
    %v1882 = vand.u32 %v1880, 63
    %v1883 = vsub.s32 0, %v1882
    %v1884 = vsel %vm1878, %v1883, %v1882
    %vm1885 = vcmp.lt.s32.totalorder %v1521, 0
    %v1886 = vsub.s32 0, %v1521
    %v1887 = vsel %vm1885, %v1886, %v1521
    %v1888 = vshrl.u32 %v1887, 6
    %v1889 = vand.u32 %v1887, 63
    %v1890 = vsub.s32 0, %v1889
    %v1891 = vsel %vm1885, %v1890, %v1889
    %vm1892 = vcmp.lt.s32.totalorder %v1522, 0
    %v1893 = vsub.s32 0, %v1522
    %v1894 = vsel %vm1892, %v1893, %v1522
    %v1895 = vshrl.u32 %v1894, 6
    %v1896 = vand.u32 %v1894, 63
    %v1897 = vsub.s32 0, %v1896
    %v1898 = vsel %vm1892, %v1897, %v1896
    %vm1899 = vcmp.lt.s32.totalorder %v1523, 0
    %v1900 = vsub.s32 0, %v1523
    %v1901 = vsel %vm1899, %v1900, %v1523
    %v1902 = vshrl.u32 %v1901, 6
    %v1903 = vand.u32 %v1901, 63
    %v1904 = vsub.s32 0, %v1903
    %v1905 = vsel %vm1899, %v1904, %v1903
    %vm1906 = vcmp.lt.s32.totalorder %v1524, 0
    %v1907 = vsub.s32 0, %v1524
    %v1908 = vsel %vm1906, %v1907, %v1524
    %v1909 = vshrl.u32 %v1908, 6
    %v1910 = vand.u32 %v1908, 63
    %v1911 = vsub.s32 0, %v1910
    %v1912 = vsel %vm1906, %v1911, %v1910
    %vm1913 = vcmp.lt.s32.totalorder %v1525, 0
    %v1914 = vsub.s32 0, %v1525
    %v1915 = vsel %vm1913, %v1914, %v1525
    %v1916 = vshrl.u32 %v1915, 6
    %v1917 = vand.u32 %v1915, 63
    %v1918 = vsub.s32 0, %v1917
    %v1919 = vsel %vm1913, %v1918, %v1917
    %vm1920 = vcmp.lt.s32.totalorder %v1526, 0
    %v1921 = vsub.s32 0, %v1526
    %v1922 = vsel %vm1920, %v1921, %v1526
    %v1923 = vshrl.u32 %v1922, 6
    %v1924 = vand.u32 %v1922, 63
    %v1925 = vsub.s32 0, %v1924
    %v1926 = vsel %vm1920, %v1925, %v1924
    %vm1927 = vcmp.lt.s32.totalorder %v1527, 0
    %v1928 = vsub.s32 0, %v1527
    %v1929 = vsel %vm1927, %v1928, %v1527
    %v1930 = vshrl.u32 %v1929, 6
    %v1931 = vand.u32 %v1929, 63
    %v1932 = vsub.s32 0, %v1931
    %v1933 = vsel %vm1927, %v1932, %v1931
    %vm1934 = vcmp.lt.s32.totalorder %v1528, 0
    %v1935 = vsub.s32 0, %v1528
    %v1936 = vsel %vm1934, %v1935, %v1528
    %v1937 = vshrl.u32 %v1936, 6
    %v1938 = vand.u32 %v1936, 63
    %v1939 = vsub.s32 0, %v1938
    %v1940 = vsel %vm1934, %v1939, %v1938
    %vm1941 = vcmp.lt.s32.totalorder %v1529, 0
    %v1942 = vsub.s32 0, %v1529
    %v1943 = vsel %vm1941, %v1942, %v1529
    %v1944 = vshrl.u32 %v1943, 6
    %v1945 = vand.u32 %v1943, 63
    %v1946 = vsub.s32 0, %v1945
    %v1947 = vsel %vm1941, %v1946, %v1945
    %vm1948 = vcmp.lt.s32.totalorder %v1530, 0
    %v1949 = vsub.s32 0, %v1530
    %v1950 = vsel %vm1948, %v1949, %v1530
    %v1951 = vshrl.u32 %v1950, 6
    %v1952 = vand.u32 %v1950, 63
    %v1953 = vsub.s32 0, %v1952
    %v1954 = vsel %vm1948, %v1953, %v1952
    %vm1955 = vcmp.lt.s32.totalorder %v1531, 0
    %v1956 = vsub.s32 0, %v1531
    %v1957 = vsel %vm1955, %v1956, %v1531
    %v1958 = vshrl.u32 %v1957, 6
    %v1959 = vand.u32 %v1957, 63
    %v1960 = vsub.s32 0, %v1959
    %v1961 = vsel %vm1955, %v1960, %v1959
    %vm1962 = vcmp.lt.s32.totalorder %v1532, 0
    %v1963 = vsub.s32 0, %v1532
    %v1964 = vsel %vm1962, %v1963, %v1532
    %v1965 = vshrl.u32 %v1964, 6
    %v1966 = vand.u32 %v1964, 63
    %v1967 = vsub.s32 0, %v1966
    %v1968 = vsel %vm1962, %v1967, %v1966
    %vm1969 = vcmp.lt.s32.totalorder %v1533, 0
    %v1970 = vsub.s32 0, %v1533
    %v1971 = vsel %vm1969, %v1970, %v1533
    %v1972 = vshrl.u32 %v1971, 6
    %v1973 = vand.u32 %v1971, 63
    %v1974 = vsub.s32 0, %v1973
    %v1975 = vsel %vm1969, %v1974, %v1973
    %vm1976 = vcmp.lt.s32.totalorder %v1534, 0
    %v1977 = vsub.s32 0, %v1534
    %v1978 = vsel %vm1976, %v1977, %v1534
    %v1979 = vshrl.u32 %v1978, 6
    %v1980 = vand.u32 %v1978, 63
    %v1981 = vsub.s32 0, %v1980
    %v1982 = vsel %vm1976, %v1981, %v1980
    %vm1983 = vcmp.ne.s32.totalorder %v1541, 0
    %vm1984 = vcmp.ne.s32.totalorder %v1548, 0
    %vm1985 = vcmp.ne.s32.totalorder %v1555, 0
    %vm1986 = vcmp.ne.s32.totalorder %v1562, 0
    %vm1987 = vcmp.ne.s32.totalorder %v1569, 0
    %vm1988 = vcmp.ne.s32.totalorder %v1576, 0
    %vm1989 = vcmp.ne.s32.totalorder %v1583, 0
    %vm1990 = vcmp.ne.s32.totalorder %v1590, 0
    %vm1991 = vcmp.ne.s32.totalorder %v1597, 0
    %vm1992 = vcmp.ne.s32.totalorder %v1604, 0
    %vm1993 = vcmp.ne.s32.totalorder %v1611, 0
    %vm1994 = vcmp.ne.s32.totalorder %v1618, 0
    %vm1995 = vcmp.ne.s32.totalorder %v1625, 0
    %vm1996 = vcmp.ne.s32.totalorder %v1632, 0
    %vm1997 = vcmp.ne.s32.totalorder %v1639, 0
    %vm1998 = vcmp.ne.s32.totalorder %v1646, 0
    %vm1999 = vcmp.ne.s32.totalorder %v1653, 0
    %vm2000 = vcmp.ne.s32.totalorder %v1660, 0
    %vm2001 = vcmp.ne.s32.totalorder %v1667, 0
    %vm2002 = vcmp.ne.s32.totalorder %v1674, 0
    %vm2003 = vcmp.ne.s32.totalorder %v1681, 0
    %vm2004 = vcmp.ne.s32.totalorder %v1688, 0
    %vm2005 = vcmp.ne.s32.totalorder %v1695, 0
    %vm2006 = vcmp.ne.s32.totalorder %v1702, 0
    %vm2007 = vcmp.ne.s32.totalorder %v1709, 0
    %vm2008 = vcmp.ne.s32.totalorder %v1716, 0
    %vm2009 = vcmp.ne.s32.totalorder %v1723, 0
    %vm2010 = vcmp.ne.s32.totalorder %v1730, 0
    %vm2011 = vcmp.ne.s32.totalorder %v1737, 0
    %vm2012 = vcmp.ne.s32.totalorder %v1744, 0
    %vm2013 = vcmp.ne.s32.totalorder %v1751, 0
    %vm2014 = vcmp.ne.s32.totalorder %v1758, 0
    %vm2015 = vcmp.ne.s32.totalorder %v1765, 0
    %vm2016 = vcmp.ne.s32.totalorder %v1772, 0
    %vm2017 = vcmp.ne.s32.totalorder %v1779, 0
    %vm2018 = vcmp.ne.s32.totalorder %v1786, 0
    %vm2019 = vcmp.ne.s32.totalorder %v1793, 0
    %vm2020 = vcmp.ne.s32.totalorder %v1800, 0
    %vm2021 = vcmp.ne.s32.totalorder %v1807, 0
    %vm2022 = vcmp.ne.s32.totalorder %v1814, 0
    %vm2023 = vcmp.ne.s32.totalorder %v1821, 0
    %vm2024 = vcmp.ne.s32.totalorder %v1828, 0
    %vm2025 = vcmp.ne.s32.totalorder %v1835, 0
    %vm2026 = vcmp.ne.s32.totalorder %v1842, 0
    %vm2027 = vcmp.ne.s32.totalorder %v1849, 0
    %vm2028 = vcmp.ne.s32.totalorder %v1856, 0
    %vm2029 = vcmp.ne.s32.totalorder %v1863, 0
    %vm2030 = vcmp.ne.s32.totalorder %v1870, 0
    %vm2031 = vcmp.ne.s32.totalorder %v1877, 0
    %vm2032 = vcmp.ne.s32.totalorder %v1884, 0
    %vm2033 = vcmp.ne.s32.totalorder %v1891, 0
    %vm2034 = vcmp.ne.s32.totalorder %v1898, 0
    %vm2035 = vcmp.ne.s32.totalorder %v1905, 0
    %vm2036 = vcmp.ne.s32.totalorder %v1912, 0
    %vm2037 = vcmp.ne.s32.totalorder %v1919, 0
    %vm2038 = vcmp.ne.s32.totalorder %v1926, 0
    %vm2039 = vcmp.ne.s32.totalorder %v1933, 0
    %vm2040 = vcmp.ne.s32.totalorder %v1940, 0
    %vm2041 = vcmp.ne.s32.totalorder %v1947, 0
    %vm2042 = vcmp.ne.s32.totalorder %v1954, 0
    %vm2043 = vcmp.ne.s32.totalorder %v1961, 0
    %vm2044 = vcmp.ne.s32.totalorder %v1968, 0
    %vm2045 = vcmp.ne.s32.totalorder %v1975, 0
    %vm2046 = vcmp.ne.s32.totalorder %v1982, 0
    %vm2047 = vcmp.lt.s32.totalorder %v1541, 0
    %vm2048 = vcmp.lt.s32.totalorder %v1548, 0
    %vm2049 = vcmp.lt.s32.totalorder %v1555, 0
    %vm2050 = vcmp.lt.s32.totalorder %v1562, 0
    %vm2051 = vcmp.lt.s32.totalorder %v1569, 0
    %vm2052 = vcmp.lt.s32.totalorder %v1576, 0
    %vm2053 = vcmp.lt.s32.totalorder %v1583, 0
    %vm2054 = vcmp.lt.s32.totalorder %v1590, 0
    %vm2055 = vcmp.lt.s32.totalorder %v1597, 0
    %vm2056 = vcmp.lt.s32.totalorder %v1604, 0
    %vm2057 = vcmp.lt.s32.totalorder %v1611, 0
    %vm2058 = vcmp.lt.s32.totalorder %v1618, 0
    %vm2059 = vcmp.lt.s32.totalorder %v1625, 0
    %vm2060 = vcmp.lt.s32.totalorder %v1632, 0
    %vm2061 = vcmp.lt.s32.totalorder %v1639, 0
    %vm2062 = vcmp.lt.s32.totalorder %v1646, 0
    %vm2063 = vcmp.lt.s32.totalorder %v1653, 0
    %vm2064 = vcmp.lt.s32.totalorder %v1660, 0
    %vm2065 = vcmp.lt.s32.totalorder %v1667, 0
    %vm2066 = vcmp.lt.s32.totalorder %v1674, 0
    %vm2067 = vcmp.lt.s32.totalorder %v1681, 0
    %vm2068 = vcmp.lt.s32.totalorder %v1688, 0
    %vm2069 = vcmp.lt.s32.totalorder %v1695, 0
    %vm2070 = vcmp.lt.s32.totalorder %v1702, 0
    %vm2071 = vcmp.lt.s32.totalorder %v1709, 0
    %vm2072 = vcmp.lt.s32.totalorder %v1716, 0
    %vm2073 = vcmp.lt.s32.totalorder %v1723, 0
    %vm2074 = vcmp.lt.s32.totalorder %v1730, 0
    %vm2075 = vcmp.lt.s32.totalorder %v1737, 0
    %vm2076 = vcmp.lt.s32.totalorder %v1744, 0
    %vm2077 = vcmp.lt.s32.totalorder %v1751, 0
    %vm2078 = vcmp.lt.s32.totalorder %v1758, 0
    %vm2079 = vcmp.lt.s32.totalorder %v1765, 0
    %vm2080 = vcmp.lt.s32.totalorder %v1772, 0
    %vm2081 = vcmp.lt.s32.totalorder %v1779, 0
    %vm2082 = vcmp.lt.s32.totalorder %v1786, 0
    %vm2083 = vcmp.lt.s32.totalorder %v1793, 0
    %vm2084 = vcmp.lt.s32.totalorder %v1800, 0
    %vm2085 = vcmp.lt.s32.totalorder %v1807, 0
    %vm2086 = vcmp.lt.s32.totalorder %v1814, 0
    %vm2087 = vcmp.lt.s32.totalorder %v1821, 0
    %vm2088 = vcmp.lt.s32.totalorder %v1828, 0
    %vm2089 = vcmp.lt.s32.totalorder %v1835, 0
    %vm2090 = vcmp.lt.s32.totalorder %v1842, 0
    %vm2091 = vcmp.lt.s32.totalorder %v1849, 0
    %vm2092 = vcmp.lt.s32.totalorder %v1856, 0
    %vm2093 = vcmp.lt.s32.totalorder %v1863, 0
    %vm2094 = vcmp.lt.s32.totalorder %v1870, 0
    %vm2095 = vcmp.lt.s32.totalorder %v1877, 0
    %vm2096 = vcmp.lt.s32.totalorder %v1884, 0
    %vm2097 = vcmp.lt.s32.totalorder %v1891, 0
    %vm2098 = vcmp.lt.s32.totalorder %v1898, 0
    %vm2099 = vcmp.lt.s32.totalorder %v1905, 0
    %vm2100 = vcmp.lt.s32.totalorder %v1912, 0
    %vm2101 = vcmp.lt.s32.totalorder %v1919, 0
    %vm2102 = vcmp.lt.s32.totalorder %v1926, 0
    %vm2103 = vcmp.lt.s32.totalorder %v1933, 0
    %vm2104 = vcmp.lt.s32.totalorder %v1940, 0
    %vm2105 = vcmp.lt.s32.totalorder %v1947, 0
    %vm2106 = vcmp.lt.s32.totalorder %v1954, 0
    %vm2107 = vcmp.lt.s32.totalorder %v1961, 0
    %vm2108 = vcmp.lt.s32.totalorder %v1968, 0
    %vm2109 = vcmp.lt.s32.totalorder %v1975, 0
    %vm2110 = vcmp.lt.s32.totalorder %v1982, 0
    %vm2111 = vmand %vm2047, %vm1983
    %vm2112 = vmand %vm2048, %vm1984
    %vm2113 = vmand %vm2049, %vm1985
    %vm2114 = vmand %vm2050, %vm1986
    %vm2115 = vmand %vm2051, %vm1987
    %vm2116 = vmand %vm2052, %vm1988
    %vm2117 = vmand %vm2053, %vm1989
    %vm2118 = vmand %vm2054, %vm1990
    %vm2119 = vmand %vm2055, %vm1991
    %vm2120 = vmand %vm2056, %vm1992
    %vm2121 = vmand %vm2057, %vm1993
    %vm2122 = vmand %vm2058, %vm1994
    %vm2123 = vmand %vm2059, %vm1995
    %vm2124 = vmand %vm2060, %vm1996
    %vm2125 = vmand %vm2061, %vm1997
    %vm2126 = vmand %vm2062, %vm1998
    %vm2127 = vmand %vm2063, %vm1999
    %vm2128 = vmand %vm2064, %vm2000
    %vm2129 = vmand %vm2065, %vm2001
    %vm2130 = vmand %vm2066, %vm2002
    %vm2131 = vmand %vm2067, %vm2003
    %vm2132 = vmand %vm2068, %vm2004
    %vm2133 = vmand %vm2069, %vm2005
    %vm2134 = vmand %vm2070, %vm2006
    %vm2135 = vmand %vm2071, %vm2007
    %vm2136 = vmand %vm2072, %vm2008
    %vm2137 = vmand %vm2073, %vm2009
    %vm2138 = vmand %vm2074, %vm2010
    %vm2139 = vmand %vm2075, %vm2011
    %vm2140 = vmand %vm2076, %vm2012
    %vm2141 = vmand %vm2077, %vm2013
    %vm2142 = vmand %vm2078, %vm2014
    %vm2143 = vmand %vm2079, %vm2015
    %vm2144 = vmand %vm2080, %vm2016
    %vm2145 = vmand %vm2081, %vm2017
    %vm2146 = vmand %vm2082, %vm2018
    %vm2147 = vmand %vm2083, %vm2019
    %vm2148 = vmand %vm2084, %vm2020
    %vm2149 = vmand %vm2085, %vm2021
    %vm2150 = vmand %vm2086, %vm2022
    %vm2151 = vmand %vm2087, %vm2023
    %vm2152 = vmand %vm2088, %vm2024
    %vm2153 = vmand %vm2089, %vm2025
    %vm2154 = vmand %vm2090, %vm2026
    %vm2155 = vmand %vm2091, %vm2027
    %vm2156 = vmand %vm2092, %vm2028
    %vm2157 = vmand %vm2093, %vm2029
    %vm2158 = vmand %vm2094, %vm2030
    %vm2159 = vmand %vm2095, %vm2031
    %vm2160 = vmand %vm2096, %vm2032
    %vm2161 = vmand %vm2097, %vm2033
    %vm2162 = vmand %vm2098, %vm2034
    %vm2163 = vmand %vm2099, %vm2035
    %vm2164 = vmand %vm2100, %vm2036
    %vm2165 = vmand %vm2101, %vm2037
    %vm2166 = vmand %vm2102, %vm2038
    %vm2167 = vmand %vm2103, %vm2039
    %vm2168 = vmand %vm2104, %vm2040
    %vm2169 = vmand %vm2105, %vm2041
    %vm2170 = vmand %vm2106, %vm2042
    %vm2171 = vmand %vm2107, %vm2043
    %vm2172 = vmand %vm2108, %vm2044
    %vm2173 = vmand %vm2109, %vm2045
    %vm2174 = vmand %vm2110, %vm2046
    %v2175 = vadd.s32 %v1541, 64
    %v2176 = vadd.s32 %v1548, 64
    %v2177 = vadd.s32 %v1555, 64
    %v2178 = vadd.s32 %v1562, 64
    %v2179 = vadd.s32 %v1569, 64
    %v2180 = vadd.s32 %v1576, 64
    %v2181 = vadd.s32 %v1583, 64
    %v2182 = vadd.s32 %v1590, 64
    %v2183 = vadd.s32 %v1597, 64
    %v2184 = vadd.s32 %v1604, 64
    %v2185 = vadd.s32 %v1611, 64
    %v2186 = vadd.s32 %v1618, 64
    %v2187 = vadd.s32 %v1625, 64
    %v2188 = vadd.s32 %v1632, 64
    %v2189 = vadd.s32 %v1639, 64
    %v2190 = vadd.s32 %v1646, 64
    %v2191 = vadd.s32 %v1653, 64
    %v2192 = vadd.s32 %v1660, 64
    %v2193 = vadd.s32 %v1667, 64
    %v2194 = vadd.s32 %v1674, 64
    %v2195 = vadd.s32 %v1681, 64
    %v2196 = vadd.s32 %v1688, 64
    %v2197 = vadd.s32 %v1695, 64
    %v2198 = vadd.s32 %v1702, 64
    %v2199 = vadd.s32 %v1709, 64
    %v2200 = vadd.s32 %v1716, 64
    %v2201 = vadd.s32 %v1723, 64
    %v2202 = vadd.s32 %v1730, 64
    %v2203 = vadd.s32 %v1737, 64
    %v2204 = vadd.s32 %v1744, 64
    %v2205 = vadd.s32 %v1751, 64
    %v2206 = vadd.s32 %v1758, 64
    %v2207 = vadd.s32 %v1765, 64
    %v2208 = vadd.s32 %v1772, 64
    %v2209 = vadd.s32 %v1779, 64
    %v2210 = vadd.s32 %v1786, 64
    %v2211 = vadd.s32 %v1793, 64
    %v2212 = vadd.s32 %v1800, 64
    %v2213 = vadd.s32 %v1807, 64
    %v2214 = vadd.s32 %v1814, 64
    %v2215 = vadd.s32 %v1821, 64
    %v2216 = vadd.s32 %v1828, 64
    %v2217 = vadd.s32 %v1835, 64
    %v2218 = vadd.s32 %v1842, 64
    %v2219 = vadd.s32 %v1849, 64
    %v2220 = vadd.s32 %v1856, 64
    %v2221 = vadd.s32 %v1863, 64
    %v2222 = vadd.s32 %v1870, 64
    %v2223 = vadd.s32 %v1877, 64
    %v2224 = vadd.s32 %v1884, 64
    %v2225 = vadd.s32 %v1891, 64
    %v2226 = vadd.s32 %v1898, 64
    %v2227 = vadd.s32 %v1905, 64
    %v2228 = vadd.s32 %v1912, 64
    %v2229 = vadd.s32 %v1919, 64
    %v2230 = vadd.s32 %v1926, 64
    %v2231 = vadd.s32 %v1933, 64
    %v2232 = vadd.s32 %v1940, 64
    %v2233 = vadd.s32 %v1947, 64
    %v2234 = vadd.s32 %v1954, 64
    %v2235 = vadd.s32 %v1961, 64
    %v2236 = vadd.s32 %v1968, 64
    %v2237 = vadd.s32 %v1975, 64
    %v2238 = vadd.s32 %v1982, 64
    %v2239 = vsel %vm2111, %v2175, %v1541
    %v2240 = vsel %vm2112, %v2176, %v1548
    %v2241 = vsel %vm2113, %v2177, %v1555
    %v2242 = vsel %vm2114, %v2178, %v1562
    %v2243 = vsel %vm2115, %v2179, %v1569
    %v2244 = vsel %vm2116, %v2180, %v1576
    %v2245 = vsel %vm2117, %v2181, %v1583
    %v2246 = vsel %vm2118, %v2182, %v1590
    %v2247 = vsel %vm2119, %v2183, %v1597
    %v2248 = vsel %vm2120, %v2184, %v1604
    %v2249 = vsel %vm2121, %v2185, %v1611
    %v2250 = vsel %vm2122, %v2186, %v1618
    %v2251 = vsel %vm2123, %v2187, %v1625
    %v2252 = vsel %vm2124, %v2188, %v1632
    %v2253 = vsel %vm2125, %v2189, %v1639
    %v2254 = vsel %vm2126, %v2190, %v1646
    %v2255 = vsel %vm2127, %v2191, %v1653
    %v2256 = vsel %vm2128, %v2192, %v1660
    %v2257 = vsel %vm2129, %v2193, %v1667
    %v2258 = vsel %vm2130, %v2194, %v1674
    %v2259 = vsel %vm2131, %v2195, %v1681
    %v2260 = vsel %vm2132, %v2196, %v1688
    %v2261 = vsel %vm2133, %v2197, %v1695
    %v2262 = vsel %vm2134, %v2198, %v1702
    %v2263 = vsel %vm2135, %v2199, %v1709
    %v2264 = vsel %vm2136, %v2200, %v1716
    %v2265 = vsel %vm2137, %v2201, %v1723
    %v2266 = vsel %vm2138, %v2202, %v1730
    %v2267 = vsel %vm2139, %v2203, %v1737
    %v2268 = vsel %vm2140, %v2204, %v1744
    %v2269 = vsel %vm2141, %v2205, %v1751
    %v2270 = vsel %vm2142, %v2206, %v1758
    %v2271 = vsel %vm2143, %v2207, %v1765
    %v2272 = vsel %vm2144, %v2208, %v1772
    %v2273 = vsel %vm2145, %v2209, %v1779
    %v2274 = vsel %vm2146, %v2210, %v1786
    %v2275 = vsel %vm2147, %v2211, %v1793
    %v2276 = vsel %vm2148, %v2212, %v1800
    %v2277 = vsel %vm2149, %v2213, %v1807
    %v2278 = vsel %vm2150, %v2214, %v1814
    %v2279 = vsel %vm2151, %v2215, %v1821
    %v2280 = vsel %vm2152, %v2216, %v1828
    %v2281 = vsel %vm2153, %v2217, %v1835
    %v2282 = vsel %vm2154, %v2218, %v1842
    %v2283 = vsel %vm2155, %v2219, %v1849
    %v2284 = vsel %vm2156, %v2220, %v1856
    %v2285 = vsel %vm2157, %v2221, %v1863
    %v2286 = vsel %vm2158, %v2222, %v1870
    %v2287 = vsel %vm2159, %v2223, %v1877
    %v2288 = vsel %vm2160, %v2224, %v1884
    %v2289 = vsel %vm2161, %v2225, %v1891
    %v2290 = vsel %vm2162, %v2226, %v1898
    %v2291 = vsel %vm2163, %v2227, %v1905
    %v2292 = vsel %vm2164, %v2228, %v1912
    %v2293 = vsel %vm2165, %v2229, %v1919
    %v2294 = vsel %vm2166, %v2230, %v1926
    %v2295 = vsel %vm2167, %v2231, %v1933
    %v2296 = vsel %vm2168, %v2232, %v1940
    %v2297 = vsel %vm2169, %v2233, %v1947
    %v2298 = vsel %vm2170, %v2234, %v1954
    %v2299 = vsel %vm2171, %v2235, %v1961
    %v2300 = vsel %vm2172, %v2236, %v1968
    %v2301 = vsel %vm2173, %v2237, %v1975
    %v2302 = vsel %vm2174, %v2238, %v1982
    %v2303 = vld [vmem:[%s2] sm:$0x1]
    %v2305 = vlaneseq
    %v2306 = vshrl.u32 %v2305, 7
    %v2307 = vsub.s32 0, %v2306
    %v2308 = vrot.slane %v2303, %v2307
    %v2310 = vadd.f32 %v254, %v2308
    %v2311 = vadd.f32 %v260, %v2308
    %v2312 = vadd.f32 %v266, %v2308
    %v2313 = vadd.f32 %v272, %v2308
    %v2314 = vadd.f32 %v278, %v2308
    %v2315 = vadd.f32 %v284, %v2308
    %v2316 = vadd.f32 %v290, %v2308
    %v2317 = vadd.f32 %v296, %v2308
    %v2318 = vadd.f32 %v302, %v2308
    %v2319 = vadd.f32 %v308, %v2308
    %v2320 = vadd.f32 %v314, %v2308
    %v2321 = vadd.f32 %v320, %v2308
    %v2322 = vadd.f32 %v326, %v2308
    %v2323 = vadd.f32 %v332, %v2308
    %v2324 = vadd.f32 %v338, %v2308
    %v2325 = vadd.f32 %v344, %v2308
    %v2326 = vadd.f32 %v350, %v2308
    %v2327 = vadd.f32 %v356, %v2308
    %v2328 = vadd.f32 %v362, %v2308
    %v2329 = vadd.f32 %v368, %v2308
    %v2330 = vadd.f32 %v374, %v2308
    %v2331 = vadd.f32 %v380, %v2308
    %v2332 = vadd.f32 %v386, %v2308
    %v2333 = vadd.f32 %v392, %v2308
    %v2334 = vadd.f32 %v398, %v2308
    %v2335 = vadd.f32 %v404, %v2308
    %v2336 = vadd.f32 %v410, %v2308
    %v2337 = vadd.f32 %v416, %v2308
    %v2338 = vadd.f32 %v422, %v2308
    %v2339 = vadd.f32 %v428, %v2308
    %v2340 = vadd.f32 %v434, %v2308
    %v2341 = vadd.f32 %v440, %v2308
    %v2342 = vadd.f32 %v446, %v2308
    %v2343 = vadd.f32 %v452, %v2308
    %v2344 = vadd.f32 %v458, %v2308
    %v2345 = vadd.f32 %v464, %v2308
    %v2346 = vadd.f32 %v470, %v2308
    %v2347 = vadd.f32 %v476, %v2308
    %v2348 = vadd.f32 %v482, %v2308
    %v2349 = vadd.f32 %v488, %v2308
    %v2350 = vadd.f32 %v494, %v2308
    %v2351 = vadd.f32 %v500, %v2308
    %v2352 = vadd.f32 %v506, %v2308
    %v2353 = vadd.f32 %v512, %v2308
    %v2354 = vadd.f32 %v518, %v2308
    %v2355 = vadd.f32 %v524, %v2308
    %v2356 = vadd.f32 %v530, %v2308
    %v2357 = vadd.f32 %v536, %v2308
    %v2358 = vadd.f32 %v542, %v2308
    %v2359 = vadd.f32 %v548, %v2308
    %v2360 = vadd.f32 %v554, %v2308
    %v2361 = vadd.f32 %v560, %v2308
    %v2362 = vadd.f32 %v566, %v2308
    %v2363 = vadd.f32 %v572, %v2308
    %v2364 = vadd.f32 %v578, %v2308
    %v2365 = vadd.f32 %v584, %v2308
    %v2366 = vadd.f32 %v590, %v2308
    %v2367 = vadd.f32 %v596, %v2308
    %v2368 = vadd.f32 %v602, %v2308
    %v2369 = vadd.f32 %v608, %v2308
    %v2370 = vadd.f32 %v614, %v2308
    %v2371 = vadd.f32 %v620, %v2308
    %v2372 = vadd.f32 %v626, %v2308
    %v2373 = vadd.f32 %v632, %v2308
    %vm2374 = vcmp.ge.s32.totalorder %v2239, 1
    %vm2375 = vcmp.ge.s32.totalorder %v2240, 1
    %vm2376 = vcmp.ge.s32.totalorder %v2241, 1
    %vm2377 = vcmp.ge.s32.totalorder %v2242, 1
    %vm2378 = vcmp.ge.s32.totalorder %v2243, 1
    %vm2379 = vcmp.ge.s32.totalorder %v2244, 1
    %vm2380 = vcmp.ge.s32.totalorder %v2245, 1
    %vm2381 = vcmp.ge.s32.totalorder %v2246, 1
    %vm2382 = vcmp.ge.s32.totalorder %v2247, 1
    %vm2383 = vcmp.ge.s32.totalorder %v2248, 1
    %vm2384 = vcmp.ge.s32.totalorder %v2249, 1
    %vm2385 = vcmp.ge.s32.totalorder %v2250, 1
    %vm2386 = vcmp.ge.s32.totalorder %v2251, 1
    %vm2387 = vcmp.ge.s32.totalorder %v2252, 1
    %vm2388 = vcmp.ge.s32.totalorder %v2253, 1
    %vm2389 = vcmp.ge.s32.totalorder %v2254, 1
    %vm2390 = vcmp.ge.s32.totalorder %v2255, 1
    %vm2391 = vcmp.ge.s32.totalorder %v2256, 1
    %vm2392 = vcmp.ge.s32.totalorder %v2257, 1
    %vm2393 = vcmp.ge.s32.totalorder %v2258, 1
    %vm2394 = vcmp.ge.s32.totalorder %v2259, 1
    %vm2395 = vcmp.ge.s32.totalorder %v2260, 1
    %vm2396 = vcmp.ge.s32.totalorder %v2261, 1
    %vm2397 = vcmp.ge.s32.totalorder %v2262, 1
    %vm2398 = vcmp.ge.s32.totalorder %v2263, 1
    %vm2399 = vcmp.ge.s32.totalorder %v2264, 1
    %vm2400 = vcmp.ge.s32.totalorder %v2265, 1
    %vm2401 = vcmp.ge.s32.totalorder %v2266, 1
    %vm2402 = vcmp.ge.s32.totalorder %v2267, 1
    %vm2403 = vcmp.ge.s32.totalorder %v2268, 1
    %vm2404 = vcmp.ge.s32.totalorder %v2269, 1
    %vm2405 = vcmp.ge.s32.totalorder %v2270, 1
    %vm2406 = vcmp.ge.s32.totalorder %v2271, 1
    %vm2407 = vcmp.ge.s32.totalorder %v2272, 1
    %vm2408 = vcmp.ge.s32.totalorder %v2273, 1
    %vm2409 = vcmp.ge.s32.totalorder %v2274, 1
    %vm2410 = vcmp.ge.s32.totalorder %v2275, 1
    %vm2411 = vcmp.ge.s32.totalorder %v2276, 1
    %vm2412 = vcmp.ge.s32.totalorder %v2277, 1
    %vm2413 = vcmp.ge.s32.totalorder %v2278, 1
    %vm2414 = vcmp.ge.s32.totalorder %v2279, 1
    %vm2415 = vcmp.ge.s32.totalorder %v2280, 1
    %vm2416 = vcmp.ge.s32.totalorder %v2281, 1
    %vm2417 = vcmp.ge.s32.totalorder %v2282, 1
    %vm2418 = vcmp.ge.s32.totalorder %v2283, 1
    %vm2419 = vcmp.ge.s32.totalorder %v2284, 1
    %vm2420 = vcmp.ge.s32.totalorder %v2285, 1
    %vm2421 = vcmp.ge.s32.totalorder %v2286, 1
    %vm2422 = vcmp.ge.s32.totalorder %v2287, 1
    %vm2423 = vcmp.ge.s32.totalorder %v2288, 1
    %vm2424 = vcmp.ge.s32.totalorder %v2289, 1
    %vm2425 = vcmp.ge.s32.totalorder %v2290, 1
    %vm2426 = vcmp.ge.s32.totalorder %v2291, 1
    %vm2427 = vcmp.ge.s32.totalorder %v2292, 1
    %vm2428 = vcmp.ge.s32.totalorder %v2293, 1
    %vm2429 = vcmp.ge.s32.totalorder %v2294, 1
    %vm2430 = vcmp.ge.s32.totalorder %v2295, 1
    %vm2431 = vcmp.ge.s32.totalorder %v2296, 1
    %vm2432 = vcmp.ge.s32.totalorder %v2297, 1
    %vm2433 = vcmp.ge.s32.totalorder %v2298, 1
    %vm2434 = vcmp.ge.s32.totalorder %v2299, 1
    %vm2435 = vcmp.ge.s32.totalorder %v2300, 1
    %vm2436 = vcmp.ge.s32.totalorder %v2301, 1
    %vm2437 = vcmp.ge.s32.totalorder %v2302, 1
    %v2438 = vrot.slane %v256, 7
    %v2439 = vrot.slane %v262, 7
    %v2440 = vrot.slane %v268, 7
    %v2441 = vrot.slane %v274, 7
    %v2442 = vrot.slane %v280, 7
    %v2443 = vrot.slane %v286, 7
    %v2444 = vrot.slane %v292, 7
    %v2445 = vrot.slane %v298, 7
    %v2446 = vrot.slane %v304, 7
    %v2447 = vrot.slane %v310, 7
    %v2448 = vrot.slane %v316, 7
    %v2449 = vrot.slane %v322, 7
    %v2450 = vrot.slane %v328, 7
    %v2451 = vrot.slane %v334, 7
    %v2452 = vrot.slane %v340, 7
    %v2453 = vrot.slane %v346, 7
    %v2454 = vrot.slane %v352, 7
    %v2455 = vrot.slane %v358, 7
    %v2456 = vrot.slane %v364, 7
    %v2457 = vrot.slane %v370, 7
    %v2458 = vrot.slane %v376, 7
    %v2459 = vrot.slane %v382, 7
    %v2460 = vrot.slane %v388, 7
    %v2461 = vrot.slane %v394, 7
    %v2462 = vrot.slane %v400, 7
    %v2463 = vrot.slane %v406, 7
    %v2464 = vrot.slane %v412, 7
    %v2465 = vrot.slane %v418, 7
    %v2466 = vrot.slane %v424, 7
    %v2467 = vrot.slane %v430, 7
    %v2468 = vrot.slane %v436, 7
    %v2469 = vrot.slane %v442, 7
    %v2470 = vrot.slane %v448, 7
    %v2471 = vrot.slane %v454, 7
    %v2472 = vrot.slane %v460, 7
    %v2473 = vrot.slane %v466, 7
    %v2474 = vrot.slane %v472, 7
    %v2475 = vrot.slane %v478, 7
    %v2476 = vrot.slane %v484, 7
    %v2477 = vrot.slane %v490, 7
    %v2478 = vrot.slane %v496, 7
    %v2479 = vrot.slane %v502, 7
    %v2480 = vrot.slane %v508, 7
    %v2481 = vrot.slane %v514, 7
    %v2482 = vrot.slane %v520, 7
    %v2483 = vrot.slane %v526, 7
    %v2484 = vrot.slane %v532, 7
    %v2485 = vrot.slane %v538, 7
    %v2486 = vrot.slane %v544, 7
    %v2487 = vrot.slane %v550, 7
    %v2488 = vrot.slane %v556, 7
    %v2489 = vrot.slane %v562, 7
    %v2490 = vrot.slane %v568, 7
    %v2491 = vrot.slane %v574, 7
    %v2492 = vrot.slane %v580, 7
    %v2493 = vrot.slane %v586, 7
    %v2494 = vrot.slane %v592, 7
    %v2495 = vrot.slane %v598, 7
    %v2496 = vrot.slane %v604, 7
    %v2497 = vrot.slane %v610, 7
    %v2498 = vrot.slane %v616, 7
    %v2499 = vrot.slane %v622, 7
    %v2500 = vrot.slane %v628, 7
    %v2501 = vrot.slane %v634, 7
    %vm2502 = vcmp.lt.s32.totalorder %v1471, 1
    %v2503 = vsel %vm2502, %v2500, %v2501
    %v2504 = vsel %vm2502, %v2499, %v2500
    %v2505 = vsel %vm2502, %v2498, %v2499
    %v2506 = vsel %vm2502, %v2497, %v2498
    %v2507 = vsel %vm2502, %v2496, %v2497
    %v2508 = vsel %vm2502, %v2495, %v2496
    %v2509 = vsel %vm2502, %v2494, %v2495
    %v2510 = vsel %vm2502, %v2493, %v2494
    %v2511 = vsel %vm2502, %v2492, %v2493
    %v2512 = vsel %vm2502, %v2491, %v2492
    %v2513 = vsel %vm2502, %v2490, %v2491
    %v2514 = vsel %vm2502, %v2489, %v2490
    %v2515 = vsel %vm2502, %v2488, %v2489
    %v2516 = vsel %vm2502, %v2487, %v2488
    %v2517 = vsel %vm2502, %v2486, %v2487
    %v2518 = vsel %vm2502, %v2485, %v2486
    %v2519 = vsel %vm2502, %v2484, %v2485
    %v2520 = vsel %vm2502, %v2483, %v2484
    %v2521 = vsel %vm2502, %v2482, %v2483
    %v2522 = vsel %vm2502, %v2481, %v2482
    %v2523 = vsel %vm2502, %v2480, %v2481
    %v2524 = vsel %vm2502, %v2479, %v2480
    %v2525 = vsel %vm2502, %v2478, %v2479
    %v2526 = vsel %vm2502, %v2477, %v2478
    %v2527 = vsel %vm2502, %v2476, %v2477
    %v2528 = vsel %vm2502, %v2475, %v2476
    %v2529 = vsel %vm2502, %v2474, %v2475
    %v2530 = vsel %vm2502, %v2473, %v2474
    %v2531 = vsel %vm2502, %v2472, %v2473
    %v2532 = vsel %vm2502, %v2471, %v2472
    %v2533 = vsel %vm2502, %v2470, %v2471
    %v2534 = vsel %vm2502, %v2469, %v2470
    %v2535 = vsel %vm2502, %v2468, %v2469
    %v2536 = vsel %vm2502, %v2467, %v2468
    %v2537 = vsel %vm2502, %v2466, %v2467
    %v2538 = vsel %vm2502, %v2465, %v2466
    %v2539 = vsel %vm2502, %v2464, %v2465
    %v2540 = vsel %vm2502, %v2463, %v2464
    %v2541 = vsel %vm2502, %v2462, %v2463
    %v2542 = vsel %vm2502, %v2461, %v2462
    %v2543 = vsel %vm2502, %v2460, %v2461
    %v2544 = vsel %vm2502, %v2459, %v2460
    %v2545 = vsel %vm2502, %v2458, %v2459
    %v2546 = vsel %vm2502, %v2457, %v2458
    %v2547 = vsel %vm2502, %v2456, %v2457
    %v2548 = vsel %vm2502, %v2455, %v2456
    %v2549 = vsel %vm2502, %v2454, %v2455
    %v2550 = vsel %vm2502, %v2453, %v2454
    %v2551 = vsel %vm2502, %v2452, %v2453
    %v2552 = vsel %vm2502, %v2451, %v2452
    %v2553 = vsel %vm2502, %v2450, %v2451
    %v2554 = vsel %vm2502, %v2449, %v2450
    %v2555 = vsel %vm2502, %v2448, %v2449
    %v2556 = vsel %vm2502, %v2447, %v2448
    %v2557 = vsel %vm2502, %v2446, %v2447
    %v2558 = vsel %vm2502, %v2445, %v2446
    %v2559 = vsel %vm2502, %v2444, %v2445
    %v2560 = vsel %vm2502, %v2443, %v2444
    %v2561 = vsel %vm2502, %v2442, %v2443
    %v2562 = vsel %vm2502, %v2441, %v2442
    %v2563 = vsel %vm2502, %v2440, %v2441
    %v2564 = vsel %vm2502, %v2439, %v2440
    %v2565 = vsel %vm2502, %v2438, %v2439
    %v2566 = vsel %vm2502, %v2501, %v2438
    %v2567 = vsel %vm2374, 1, 0
    %v2568 = vsel %vm2375, 1, 0
    %v2569 = vsel %vm2376, 1, 0
    %v2570 = vsel %vm2377, 1, 0
    %v2571 = vsel %vm2378, 1, 0
    %v2572 = vsel %vm2379, 1, 0
    %v2573 = vsel %vm2380, 1, 0
    %v2574 = vsel %vm2381, 1, 0
    %v2575 = vsel %vm2382, 1, 0
    %v2576 = vsel %vm2383, 1, 0
    %v2577 = vsel %vm2384, 1, 0
    %v2578 = vsel %vm2385, 1, 0
    %v2579 = vsel %vm2386, 1, 0
    %v2580 = vsel %vm2387, 1, 0
    %v2581 = vsel %vm2388, 1, 0
    %v2582 = vsel %vm2389, 1, 0
    %v2583 = vsel %vm2390, 1, 0
    %v2584 = vsel %vm2391, 1, 0
    %v2585 = vsel %vm2392, 1, 0
    %v2586 = vsel %vm2393, 1, 0
    %v2587 = vsel %vm2394, 1, 0
    %v2588 = vsel %vm2395, 1, 0
    %v2589 = vsel %vm2396, 1, 0
    %v2590 = vsel %vm2397, 1, 0
    %v2591 = vsel %vm2398, 1, 0
    %v2592 = vsel %vm2399, 1, 0
    %v2593 = vsel %vm2400, 1, 0
    %v2594 = vsel %vm2401, 1, 0
    %v2595 = vsel %vm2402, 1, 0
    %v2596 = vsel %vm2403, 1, 0
    %v2597 = vsel %vm2404, 1, 0
    %v2598 = vsel %vm2405, 1, 0
    %v2599 = vsel %vm2406, 1, 0
    %v2600 = vsel %vm2407, 1, 0
    %v2601 = vsel %vm2408, 1, 0
    %v2602 = vsel %vm2409, 1, 0
    %v2603 = vsel %vm2410, 1, 0
    %v2604 = vsel %vm2411, 1, 0
    %v2605 = vsel %vm2412, 1, 0
    %v2606 = vsel %vm2413, 1, 0
    %v2607 = vsel %vm2414, 1, 0
    %v2608 = vsel %vm2415, 1, 0
    %v2609 = vsel %vm2416, 1, 0
    %v2610 = vsel %vm2417, 1, 0
    %v2611 = vsel %vm2418, 1, 0
    %v2612 = vsel %vm2419, 1, 0
    %v2613 = vsel %vm2420, 1, 0
    %v2614 = vsel %vm2421, 1, 0
    %v2615 = vsel %vm2422, 1, 0
    %v2616 = vsel %vm2423, 1, 0
    %v2617 = vsel %vm2424, 1, 0
    %v2618 = vsel %vm2425, 1, 0
    %v2619 = vsel %vm2426, 1, 0
    %v2620 = vsel %vm2427, 1, 0
    %v2621 = vsel %vm2428, 1, 0
    %v2622 = vsel %vm2429, 1, 0
    %v2623 = vsel %vm2430, 1, 0
    %v2624 = vsel %vm2431, 1, 0
    %v2625 = vsel %vm2432, 1, 0
    %v2626 = vsel %vm2433, 1, 0
    %v2627 = vsel %vm2434, 1, 0
    %v2628 = vsel %vm2435, 1, 0
    %v2629 = vsel %vm2436, 1, 0
    %v2630 = vsel %vm2437, 1, 0
    %vm2631 = vcmp.eq.s32.totalorder %v2567, 1
    %vm2632 = vcmp.eq.s32.totalorder %v2568, 1
    %vm2633 = vcmp.eq.s32.totalorder %v2569, 1
    %vm2634 = vcmp.eq.s32.totalorder %v2570, 1
    %vm2635 = vcmp.eq.s32.totalorder %v2571, 1
    %vm2636 = vcmp.eq.s32.totalorder %v2572, 1
    %vm2637 = vcmp.eq.s32.totalorder %v2573, 1
    %vm2638 = vcmp.eq.s32.totalorder %v2574, 1
    %vm2639 = vcmp.eq.s32.totalorder %v2575, 1
    %vm2640 = vcmp.eq.s32.totalorder %v2576, 1
    %vm2641 = vcmp.eq.s32.totalorder %v2577, 1
    %vm2642 = vcmp.eq.s32.totalorder %v2578, 1
    %vm2643 = vcmp.eq.s32.totalorder %v2579, 1
    %vm2644 = vcmp.eq.s32.totalorder %v2580, 1
    %vm2645 = vcmp.eq.s32.totalorder %v2581, 1
    %vm2646 = vcmp.eq.s32.totalorder %v2582, 1
    %vm2647 = vcmp.eq.s32.totalorder %v2583, 1
    %vm2648 = vcmp.eq.s32.totalorder %v2584, 1
    %vm2649 = vcmp.eq.s32.totalorder %v2585, 1
    %vm2650 = vcmp.eq.s32.totalorder %v2586, 1
    %vm2651 = vcmp.eq.s32.totalorder %v2587, 1
    %vm2652 = vcmp.eq.s32.totalorder %v2588, 1
    %vm2653 = vcmp.eq.s32.totalorder %v2589, 1
    %vm2654 = vcmp.eq.s32.totalorder %v2590, 1
    %vm2655 = vcmp.eq.s32.totalorder %v2591, 1
    %vm2656 = vcmp.eq.s32.totalorder %v2592, 1
    %vm2657 = vcmp.eq.s32.totalorder %v2593, 1
    %vm2658 = vcmp.eq.s32.totalorder %v2594, 1
    %vm2659 = vcmp.eq.s32.totalorder %v2595, 1
    %vm2660 = vcmp.eq.s32.totalorder %v2596, 1
    %vm2661 = vcmp.eq.s32.totalorder %v2597, 1
    %vm2662 = vcmp.eq.s32.totalorder %v2598, 1
    %vm2663 = vcmp.eq.s32.totalorder %v2599, 1
    %vm2664 = vcmp.eq.s32.totalorder %v2600, 1
    %vm2665 = vcmp.eq.s32.totalorder %v2601, 1
    %vm2666 = vcmp.eq.s32.totalorder %v2602, 1
    %vm2667 = vcmp.eq.s32.totalorder %v2603, 1
    %vm2668 = vcmp.eq.s32.totalorder %v2604, 1
    %vm2669 = vcmp.eq.s32.totalorder %v2605, 1
    %vm2670 = vcmp.eq.s32.totalorder %v2606, 1
    %vm2671 = vcmp.eq.s32.totalorder %v2607, 1
    %vm2672 = vcmp.eq.s32.totalorder %v2608, 1
    %vm2673 = vcmp.eq.s32.totalorder %v2609, 1
    %vm2674 = vcmp.eq.s32.totalorder %v2610, 1
    %vm2675 = vcmp.eq.s32.totalorder %v2611, 1
    %vm2676 = vcmp.eq.s32.totalorder %v2612, 1
    %vm2677 = vcmp.eq.s32.totalorder %v2613, 1
    %vm2678 = vcmp.eq.s32.totalorder %v2614, 1
    %vm2679 = vcmp.eq.s32.totalorder %v2615, 1
    %vm2680 = vcmp.eq.s32.totalorder %v2616, 1
    %vm2681 = vcmp.eq.s32.totalorder %v2617, 1
    %vm2682 = vcmp.eq.s32.totalorder %v2618, 1
    %vm2683 = vcmp.eq.s32.totalorder %v2619, 1
    %vm2684 = vcmp.eq.s32.totalorder %v2620, 1
    %vm2685 = vcmp.eq.s32.totalorder %v2621, 1
    %vm2686 = vcmp.eq.s32.totalorder %v2622, 1
    %vm2687 = vcmp.eq.s32.totalorder %v2623, 1
    %vm2688 = vcmp.eq.s32.totalorder %v2624, 1
    %vm2689 = vcmp.eq.s32.totalorder %v2625, 1
    %vm2690 = vcmp.eq.s32.totalorder %v2626, 1
    %vm2691 = vcmp.eq.s32.totalorder %v2627, 1
    %vm2692 = vcmp.eq.s32.totalorder %v2628, 1
    %vm2693 = vcmp.eq.s32.totalorder %v2629, 1
    %vm2694 = vcmp.eq.s32.totalorder %v2630, 1
    %v2695 = vsel %vm2631, %v2566, 0.0
    %v2696 = vsel %vm2632, %v2565, 0.0
    %v2697 = vsel %vm2633, %v2564, 0.0
    %v2698 = vsel %vm2634, %v2563, 0.0
    %v2699 = vsel %vm2635, %v2562, 0.0
    %v2700 = vsel %vm2636, %v2561, 0.0
    %v2701 = vsel %vm2637, %v2560, 0.0
    %v2702 = vsel %vm2638, %v2559, 0.0
    %v2703 = vsel %vm2639, %v2558, 0.0
    %v2704 = vsel %vm2640, %v2557, 0.0
    %v2705 = vsel %vm2641, %v2556, 0.0
    %v2706 = vsel %vm2642, %v2555, 0.0
    %v2707 = vsel %vm2643, %v2554, 0.0
    %v2708 = vsel %vm2644, %v2553, 0.0
    %v2709 = vsel %vm2645, %v2552, 0.0
    %v2710 = vsel %vm2646, %v2551, 0.0
    %v2711 = vsel %vm2647, %v2550, 0.0
    %v2712 = vsel %vm2648, %v2549, 0.0
    %v2713 = vsel %vm2649, %v2548, 0.0
    %v2714 = vsel %vm2650, %v2547, 0.0
    %v2715 = vsel %vm2651, %v2546, 0.0
    %v2716 = vsel %vm2652, %v2545, 0.0
    %v2717 = vsel %vm2653, %v2544, 0.0
    %v2718 = vsel %vm2654, %v2543, 0.0
    %v2719 = vsel %vm2655, %v2542, 0.0
    %v2720 = vsel %vm2656, %v2541, 0.0
    %v2721 = vsel %vm2657, %v2540, 0.0
    %v2722 = vsel %vm2658, %v2539, 0.0
    %v2723 = vsel %vm2659, %v2538, 0.0
    %v2724 = vsel %vm2660, %v2537, 0.0
    %v2725 = vsel %vm2661, %v2536, 0.0
    %v2726 = vsel %vm2662, %v2535, 0.0
    %v2727 = vsel %vm2663, %v2534, 0.0
    %v2728 = vsel %vm2664, %v2533, 0.0
    %v2729 = vsel %vm2665, %v2532, 0.0
    %v2730 = vsel %vm2666, %v2531, 0.0
    %v2731 = vsel %vm2667, %v2530, 0.0
    %v2732 = vsel %vm2668, %v2529, 0.0
    %v2733 = vsel %vm2669, %v2528, 0.0
    %v2734 = vsel %vm2670, %v2527, 0.0
    %v2735 = vsel %vm2671, %v2526, 0.0
    %v2736 = vsel %vm2672, %v2525, 0.0
    %v2737 = vsel %vm2673, %v2524, 0.0
    %v2738 = vsel %vm2674, %v2523, 0.0
    %v2739 = vsel %vm2675, %v2522, 0.0
    %v2740 = vsel %vm2676, %v2521, 0.0
    %v2741 = vsel %vm2677, %v2520, 0.0
    %v2742 = vsel %vm2678, %v2519, 0.0
    %v2743 = vsel %vm2679, %v2518, 0.0
    %v2744 = vsel %vm2680, %v2517, 0.0
    %v2745 = vsel %vm2681, %v2516, 0.0
    %v2746 = vsel %vm2682, %v2515, 0.0
    %v2747 = vsel %vm2683, %v2514, 0.0
    %v2748 = vsel %vm2684, %v2513, 0.0
    %v2749 = vsel %vm2685, %v2512, 0.0
    %v2750 = vsel %vm2686, %v2511, 0.0
    %v2751 = vsel %vm2687, %v2510, 0.0
    %v2752 = vsel %vm2688, %v2509, 0.0
    %v2753 = vsel %vm2689, %v2508, 0.0
    %v2754 = vsel %vm2690, %v2507, 0.0
    %v2755 = vsel %vm2691, %v2506, 0.0
    %v2756 = vsel %vm2692, %v2505, 0.0
    %v2757 = vsel %vm2693, %v2504, 0.0
    %v2758 = vsel %vm2694, %v2503, 0.0
    %v2759 = vadd.f32 %v2310, %v2695
    %v2760 = vadd.f32 %v2311, %v2696
    %v2761 = vadd.f32 %v2312, %v2697
    %v2762 = vadd.f32 %v2313, %v2698
    %v2763 = vadd.f32 %v2314, %v2699
    %v2764 = vadd.f32 %v2315, %v2700
    %v2765 = vadd.f32 %v2316, %v2701
    %v2766 = vadd.f32 %v2317, %v2702
    %v2767 = vadd.f32 %v2318, %v2703
    %v2768 = vadd.f32 %v2319, %v2704
    %v2769 = vadd.f32 %v2320, %v2705
    %v2770 = vadd.f32 %v2321, %v2706
    %v2771 = vadd.f32 %v2322, %v2707
    %v2772 = vadd.f32 %v2323, %v2708
    %v2773 = vadd.f32 %v2324, %v2709
    %v2774 = vadd.f32 %v2325, %v2710
    %v2775 = vadd.f32 %v2326, %v2711
    %v2776 = vadd.f32 %v2327, %v2712
    %v2777 = vadd.f32 %v2328, %v2713
    %v2778 = vadd.f32 %v2329, %v2714
    %v2779 = vadd.f32 %v2330, %v2715
    %v2780 = vadd.f32 %v2331, %v2716
    %v2781 = vadd.f32 %v2332, %v2717
    %v2782 = vadd.f32 %v2333, %v2718
    %v2783 = vadd.f32 %v2334, %v2719
    %v2784 = vadd.f32 %v2335, %v2720
    %v2785 = vadd.f32 %v2336, %v2721
    %v2786 = vadd.f32 %v2337, %v2722
    %v2787 = vadd.f32 %v2338, %v2723
    %v2788 = vadd.f32 %v2339, %v2724
    %v2789 = vadd.f32 %v2340, %v2725
    %v2790 = vadd.f32 %v2341, %v2726
    %v2791 = vadd.f32 %v2342, %v2727
    %v2792 = vadd.f32 %v2343, %v2728
    %v2793 = vadd.f32 %v2344, %v2729
    %v2794 = vadd.f32 %v2345, %v2730
    %v2795 = vadd.f32 %v2346, %v2731
    %v2796 = vadd.f32 %v2347, %v2732
    %v2797 = vadd.f32 %v2348, %v2733
    %v2798 = vadd.f32 %v2349, %v2734
    %v2799 = vadd.f32 %v2350, %v2735
    %v2800 = vadd.f32 %v2351, %v2736
    %v2801 = vadd.f32 %v2352, %v2737
    %v2802 = vadd.f32 %v2353, %v2738
    %v2803 = vadd.f32 %v2354, %v2739
    %v2804 = vadd.f32 %v2355, %v2740
    %v2805 = vadd.f32 %v2356, %v2741
    %v2806 = vadd.f32 %v2357, %v2742
    %v2807 = vadd.f32 %v2358, %v2743
    %v2808 = vadd.f32 %v2359, %v2744
    %v2809 = vadd.f32 %v2360, %v2745
    %v2810 = vadd.f32 %v2361, %v2746
    %v2811 = vadd.f32 %v2362, %v2747
    %v2812 = vadd.f32 %v2363, %v2748
    %v2813 = vadd.f32 %v2364, %v2749
    %v2814 = vadd.f32 %v2365, %v2750
    %v2815 = vadd.f32 %v2366, %v2751
    %v2816 = vadd.f32 %v2367, %v2752
    %v2817 = vadd.f32 %v2368, %v2753
    %v2818 = vadd.f32 %v2369, %v2754
    %v2819 = vadd.f32 %v2370, %v2755
    %v2820 = vadd.f32 %v2371, %v2756
    %v2821 = vadd.f32 %v2372, %v2757
    %v2822 = vadd.f32 %v2373, %v2758
    %vm2823 = vcmp.le.s32.totalorder %v2239, 62
    %vm2824 = vcmp.le.s32.totalorder %v2240, 62
    %vm2825 = vcmp.le.s32.totalorder %v2241, 62
    %vm2826 = vcmp.le.s32.totalorder %v2242, 62
    %vm2827 = vcmp.le.s32.totalorder %v2243, 62
    %vm2828 = vcmp.le.s32.totalorder %v2244, 62
    %vm2829 = vcmp.le.s32.totalorder %v2245, 62
    %vm2830 = vcmp.le.s32.totalorder %v2246, 62
    %vm2831 = vcmp.le.s32.totalorder %v2247, 62
    %vm2832 = vcmp.le.s32.totalorder %v2248, 62
    %vm2833 = vcmp.le.s32.totalorder %v2249, 62
    %vm2834 = vcmp.le.s32.totalorder %v2250, 62
    %vm2835 = vcmp.le.s32.totalorder %v2251, 62
    %vm2836 = vcmp.le.s32.totalorder %v2252, 62
    %vm2837 = vcmp.le.s32.totalorder %v2253, 62
    %vm2838 = vcmp.le.s32.totalorder %v2254, 62
    %vm2839 = vcmp.le.s32.totalorder %v2255, 62
    %vm2840 = vcmp.le.s32.totalorder %v2256, 62
    %vm2841 = vcmp.le.s32.totalorder %v2257, 62
    %vm2842 = vcmp.le.s32.totalorder %v2258, 62
    %vm2843 = vcmp.le.s32.totalorder %v2259, 62
    %vm2844 = vcmp.le.s32.totalorder %v2260, 62
    %vm2845 = vcmp.le.s32.totalorder %v2261, 62
    %vm2846 = vcmp.le.s32.totalorder %v2262, 62
    %vm2847 = vcmp.le.s32.totalorder %v2263, 62
    %vm2848 = vcmp.le.s32.totalorder %v2264, 62
    %vm2849 = vcmp.le.s32.totalorder %v2265, 62
    %vm2850 = vcmp.le.s32.totalorder %v2266, 62
    %vm2851 = vcmp.le.s32.totalorder %v2267, 62
    %vm2852 = vcmp.le.s32.totalorder %v2268, 62
    %vm2853 = vcmp.le.s32.totalorder %v2269, 62
    %vm2854 = vcmp.le.s32.totalorder %v2270, 62
    %vm2855 = vcmp.le.s32.totalorder %v2271, 62
    %vm2856 = vcmp.le.s32.totalorder %v2272, 62
    %vm2857 = vcmp.le.s32.totalorder %v2273, 62
    %vm2858 = vcmp.le.s32.totalorder %v2274, 62
    %vm2859 = vcmp.le.s32.totalorder %v2275, 62
    %vm2860 = vcmp.le.s32.totalorder %v2276, 62
    %vm2861 = vcmp.le.s32.totalorder %v2277, 62
    %vm2862 = vcmp.le.s32.totalorder %v2278, 62
    %vm2863 = vcmp.le.s32.totalorder %v2279, 62
    %vm2864 = vcmp.le.s32.totalorder %v2280, 62
    %vm2865 = vcmp.le.s32.totalorder %v2281, 62
    %vm2866 = vcmp.le.s32.totalorder %v2282, 62
    %vm2867 = vcmp.le.s32.totalorder %v2283, 62
    %vm2868 = vcmp.le.s32.totalorder %v2284, 62
    %vm2869 = vcmp.le.s32.totalorder %v2285, 62
    %vm2870 = vcmp.le.s32.totalorder %v2286, 62
    %vm2871 = vcmp.le.s32.totalorder %v2287, 62
    %vm2872 = vcmp.le.s32.totalorder %v2288, 62
    %vm2873 = vcmp.le.s32.totalorder %v2289, 62
    %vm2874 = vcmp.le.s32.totalorder %v2290, 62
    %vm2875 = vcmp.le.s32.totalorder %v2291, 62
    %vm2876 = vcmp.le.s32.totalorder %v2292, 62
    %vm2877 = vcmp.le.s32.totalorder %v2293, 62
    %vm2878 = vcmp.le.s32.totalorder %v2294, 62
    %vm2879 = vcmp.le.s32.totalorder %v2295, 62
    %vm2880 = vcmp.le.s32.totalorder %v2296, 62
    %vm2881 = vcmp.le.s32.totalorder %v2297, 62
    %vm2882 = vcmp.le.s32.totalorder %v2298, 62
    %vm2883 = vcmp.le.s32.totalorder %v2299, 62
    %vm2884 = vcmp.le.s32.totalorder %v2300, 62
    %vm2885 = vcmp.le.s32.totalorder %v2301, 62
    %vm2886 = vcmp.le.s32.totalorder %v2302, 62
    %v2887 = vrot.slane %v703, 1
    %v2888 = vrot.slane %v709, 1
    %v2889 = vrot.slane %v715, 1
    %v2890 = vrot.slane %v721, 1
    %v2891 = vrot.slane %v727, 1
    %v2892 = vrot.slane %v733, 1
    %v2893 = vrot.slane %v739, 1
    %v2894 = vrot.slane %v745, 1
    %v2895 = vrot.slane %v751, 1
    %v2896 = vrot.slane %v757, 1
    %v2897 = vrot.slane %v763, 1
    %v2898 = vrot.slane %v769, 1
    %v2899 = vrot.slane %v775, 1
    %v2900 = vrot.slane %v781, 1
    %v2901 = vrot.slane %v787, 1
    %v2902 = vrot.slane %v793, 1
    %v2903 = vrot.slane %v799, 1
    %v2904 = vrot.slane %v805, 1
    %v2905 = vrot.slane %v811, 1
    %v2906 = vrot.slane %v817, 1
    %v2907 = vrot.slane %v823, 1
    %v2908 = vrot.slane %v829, 1
    %v2909 = vrot.slane %v835, 1
    %v2910 = vrot.slane %v841, 1
    %v2911 = vrot.slane %v847, 1
    %v2912 = vrot.slane %v853, 1
    %v2913 = vrot.slane %v859, 1
    %v2914 = vrot.slane %v865, 1
    %v2915 = vrot.slane %v871, 1
    %v2916 = vrot.slane %v877, 1
    %v2917 = vrot.slane %v883, 1
    %v2918 = vrot.slane %v889, 1
    %v2919 = vrot.slane %v895, 1
    %v2920 = vrot.slane %v901, 1
    %v2921 = vrot.slane %v907, 1
    %v2922 = vrot.slane %v913, 1
    %v2923 = vrot.slane %v919, 1
    %v2924 = vrot.slane %v925, 1
    %v2925 = vrot.slane %v931, 1
    %v2926 = vrot.slane %v937, 1
    %v2927 = vrot.slane %v943, 1
    %v2928 = vrot.slane %v949, 1
    %v2929 = vrot.slane %v955, 1
    %v2930 = vrot.slane %v961, 1
    %v2931 = vrot.slane %v967, 1
    %v2932 = vrot.slane %v973, 1
    %v2933 = vrot.slane %v979, 1
    %v2934 = vrot.slane %v985, 1
    %v2935 = vrot.slane %v991, 1
    %v2936 = vrot.slane %v997, 1
    %v2937 = vrot.slane %v1003, 1
    %v2938 = vrot.slane %v1009, 1
    %v2939 = vrot.slane %v1015, 1
    %v2940 = vrot.slane %v1021, 1
    %v2941 = vrot.slane %v1027, 1
    %v2942 = vrot.slane %v1033, 1
    %v2943 = vrot.slane %v1039, 1
    %v2944 = vrot.slane %v1045, 1
    %v2945 = vrot.slane %v1051, 1
    %v2946 = vrot.slane %v1057, 1
    %v2947 = vrot.slane %v1063, 1
    %v2948 = vrot.slane %v1069, 1
    %v2949 = vrot.slane %v1075, 1
    %v2950 = vrot.slane %v1081, 1
    %vm2951 = vcmp.lt.s32.totalorder %v1471, 7
    %v2952 = vsel %vm2951, %v2949, %v2950
    %v2953 = vsel %vm2951, %v2948, %v2949
    %v2954 = vsel %vm2951, %v2947, %v2948
    %v2955 = vsel %vm2951, %v2946, %v2947
    %v2956 = vsel %vm2951, %v2945, %v2946
    %v2957 = vsel %vm2951, %v2944, %v2945
    %v2958 = vsel %vm2951, %v2943, %v2944
    %v2959 = vsel %vm2951, %v2942, %v2943
    %v2960 = vsel %vm2951, %v2941, %v2942
    %v2961 = vsel %vm2951, %v2940, %v2941
    %v2962 = vsel %vm2951, %v2939, %v2940
    %v2963 = vsel %vm2951, %v2938, %v2939
    %v2964 = vsel %vm2951, %v2937, %v2938
    %v2965 = vsel %vm2951, %v2936, %v2937
    %v2966 = vsel %vm2951, %v2935, %v2936
    %v2967 = vsel %vm2951, %v2934, %v2935
    %v2968 = vsel %vm2951, %v2933, %v2934
    %v2969 = vsel %vm2951, %v2932, %v2933
    %v2970 = vsel %vm2951, %v2931, %v2932
    %v2971 = vsel %vm2951, %v2930, %v2931
    %v2972 = vsel %vm2951, %v2929, %v2930
    %v2973 = vsel %vm2951, %v2928, %v2929
    %v2974 = vsel %vm2951, %v2927, %v2928
    %v2975 = vsel %vm2951, %v2926, %v2927
    %v2976 = vsel %vm2951, %v2925, %v2926
    %v2977 = vsel %vm2951, %v2924, %v2925
    %v2978 = vsel %vm2951, %v2923, %v2924
    %v2979 = vsel %vm2951, %v2922, %v2923
    %v2980 = vsel %vm2951, %v2921, %v2922
    %v2981 = vsel %vm2951, %v2920, %v2921
    %v2982 = vsel %vm2951, %v2919, %v2920
    %v2983 = vsel %vm2951, %v2918, %v2919
    %v2984 = vsel %vm2951, %v2917, %v2918
    %v2985 = vsel %vm2951, %v2916, %v2917
    %v2986 = vsel %vm2951, %v2915, %v2916
    %v2987 = vsel %vm2951, %v2914, %v2915
    %v2988 = vsel %vm2951, %v2913, %v2914
    %v2989 = vsel %vm2951, %v2912, %v2913
    %v2990 = vsel %vm2951, %v2911, %v2912
    %v2991 = vsel %vm2951, %v2910, %v2911
    %v2992 = vsel %vm2951, %v2909, %v2910
    %v2993 = vsel %vm2951, %v2908, %v2909
    %v2994 = vsel %vm2951, %v2907, %v2908
    %v2995 = vsel %vm2951, %v2906, %v2907
    %v2996 = vsel %vm2951, %v2905, %v2906
    %v2997 = vsel %vm2951, %v2904, %v2905
    %v2998 = vsel %vm2951, %v2903, %v2904
    %v2999 = vsel %vm2951, %v2902, %v2903
    %v3000 = vsel %vm2951, %v2901, %v2902
    %v3001 = vsel %vm2951, %v2900, %v2901
    %v3002 = vsel %vm2951, %v2899, %v2900
    %v3003 = vsel %vm2951, %v2898, %v2899
    %v3004 = vsel %vm2951, %v2897, %v2898
    %v3005 = vsel %vm2951, %v2896, %v2897
    %v3006 = vsel %vm2951, %v2895, %v2896
    %v3007 = vsel %vm2951, %v2894, %v2895
    %v3008 = vsel %vm2951, %v2893, %v2894
    %v3009 = vsel %vm2951, %v2892, %v2893
    %v3010 = vsel %vm2951, %v2891, %v2892
    %v3011 = vsel %vm2951, %v2890, %v2891
    %v3012 = vsel %vm2951, %v2889, %v2890
    %v3013 = vsel %vm2951, %v2888, %v2889
    %v3014 = vsel %vm2951, %v2887, %v2888
    %v3015 = vsel %vm2951, %v2950, %v2887
    %v3016 = vsel %vm2823, 1, 0
    %v3017 = vsel %vm2824, 1, 0
    %v3018 = vsel %vm2825, 1, 0
    %v3019 = vsel %vm2826, 1, 0
    %v3020 = vsel %vm2827, 1, 0
    %v3021 = vsel %vm2828, 1, 0
    %v3022 = vsel %vm2829, 1, 0
    %v3023 = vsel %vm2830, 1, 0
    %v3024 = vsel %vm2831, 1, 0
    %v3025 = vsel %vm2832, 1, 0
    %v3026 = vsel %vm2833, 1, 0
    %v3027 = vsel %vm2834, 1, 0
    %v3028 = vsel %vm2835, 1, 0
    %v3029 = vsel %vm2836, 1, 0
    %v3030 = vsel %vm2837, 1, 0
    %v3031 = vsel %vm2838, 1, 0
    %v3032 = vsel %vm2839, 1, 0
    %v3033 = vsel %vm2840, 1, 0
    %v3034 = vsel %vm2841, 1, 0
    %v3035 = vsel %vm2842, 1, 0
    %v3036 = vsel %vm2843, 1, 0
    %v3037 = vsel %vm2844, 1, 0
    %v3038 = vsel %vm2845, 1, 0
    %v3039 = vsel %vm2846, 1, 0
    %v3040 = vsel %vm2847, 1, 0
    %v3041 = vsel %vm2848, 1, 0
    %v3042 = vsel %vm2849, 1, 0
    %v3043 = vsel %vm2850, 1, 0
    %v3044 = vsel %vm2851, 1, 0
    %v3045 = vsel %vm2852, 1, 0
    %v3046 = vsel %vm2853, 1, 0
    %v3047 = vsel %vm2854, 1, 0
    %v3048 = vsel %vm2855, 1, 0
    %v3049 = vsel %vm2856, 1, 0
    %v3050 = vsel %vm2857, 1, 0
    %v3051 = vsel %vm2858, 1, 0
    %v3052 = vsel %vm2859, 1, 0
    %v3053 = vsel %vm2860, 1, 0
    %v3054 = vsel %vm2861, 1, 0
    %v3055 = vsel %vm2862, 1, 0
    %v3056 = vsel %vm2863, 1, 0
    %v3057 = vsel %vm2864, 1, 0
    %v3058 = vsel %vm2865, 1, 0
    %v3059 = vsel %vm2866, 1, 0
    %v3060 = vsel %vm2867, 1, 0
    %v3061 = vsel %vm2868, 1, 0
    %v3062 = vsel %vm2869, 1, 0
    %v3063 = vsel %vm2870, 1, 0
    %v3064 = vsel %vm2871, 1, 0
    %v3065 = vsel %vm2872, 1, 0
    %v3066 = vsel %vm2873, 1, 0
    %v3067 = vsel %vm2874, 1, 0
    %v3068 = vsel %vm2875, 1, 0
    %v3069 = vsel %vm2876, 1, 0
    %v3070 = vsel %vm2877, 1, 0
    %v3071 = vsel %vm2878, 1, 0
    %v3072 = vsel %vm2879, 1, 0
    %v3073 = vsel %vm2880, 1, 0
    %v3074 = vsel %vm2881, 1, 0
    %v3075 = vsel %vm2882, 1, 0
    %v3076 = vsel %vm2883, 1, 0
    %v3077 = vsel %vm2884, 1, 0
    %v3078 = vsel %vm2885, 1, 0
    %v3079 = vsel %vm2886, 1, 0
    %vm3080 = vcmp.eq.s32.totalorder %v3016, 1
    %vm3081 = vcmp.eq.s32.totalorder %v3017, 1
    %vm3082 = vcmp.eq.s32.totalorder %v3018, 1
    %vm3083 = vcmp.eq.s32.totalorder %v3019, 1
    %vm3084 = vcmp.eq.s32.totalorder %v3020, 1
    %vm3085 = vcmp.eq.s32.totalorder %v3021, 1
    %vm3086 = vcmp.eq.s32.totalorder %v3022, 1
    %vm3087 = vcmp.eq.s32.totalorder %v3023, 1
    %vm3088 = vcmp.eq.s32.totalorder %v3024, 1
    %vm3089 = vcmp.eq.s32.totalorder %v3025, 1
    %vm3090 = vcmp.eq.s32.totalorder %v3026, 1
    %vm3091 = vcmp.eq.s32.totalorder %v3027, 1
    %vm3092 = vcmp.eq.s32.totalorder %v3028, 1
    %vm3093 = vcmp.eq.s32.totalorder %v3029, 1
    %vm3094 = vcmp.eq.s32.totalorder %v3030, 1
    %vm3095 = vcmp.eq.s32.totalorder %v3031, 1
    %vm3096 = vcmp.eq.s32.totalorder %v3032, 1
    %vm3097 = vcmp.eq.s32.totalorder %v3033, 1
    %vm3098 = vcmp.eq.s32.totalorder %v3034, 1
    %vm3099 = vcmp.eq.s32.totalorder %v3035, 1
    %vm3100 = vcmp.eq.s32.totalorder %v3036, 1
    %vm3101 = vcmp.eq.s32.totalorder %v3037, 1
    %vm3102 = vcmp.eq.s32.totalorder %v3038, 1
    %vm3103 = vcmp.eq.s32.totalorder %v3039, 1
    %vm3104 = vcmp.eq.s32.totalorder %v3040, 1
    %vm3105 = vcmp.eq.s32.totalorder %v3041, 1
    %vm3106 = vcmp.eq.s32.totalorder %v3042, 1
    %vm3107 = vcmp.eq.s32.totalorder %v3043, 1
    %vm3108 = vcmp.eq.s32.totalorder %v3044, 1
    %vm3109 = vcmp.eq.s32.totalorder %v3045, 1
    %vm3110 = vcmp.eq.s32.totalorder %v3046, 1
    %vm3111 = vcmp.eq.s32.totalorder %v3047, 1
    %vm3112 = vcmp.eq.s32.totalorder %v3048, 1
    %vm3113 = vcmp.eq.s32.totalorder %v3049, 1
    %vm3114 = vcmp.eq.s32.totalorder %v3050, 1
    %vm3115 = vcmp.eq.s32.totalorder %v3051, 1
    %vm3116 = vcmp.eq.s32.totalorder %v3052, 1
    %vm3117 = vcmp.eq.s32.totalorder %v3053, 1
    %vm3118 = vcmp.eq.s32.totalorder %v3054, 1
    %vm3119 = vcmp.eq.s32.totalorder %v3055, 1
    %vm3120 = vcmp.eq.s32.totalorder %v3056, 1
    %vm3121 = vcmp.eq.s32.totalorder %v3057, 1
    %vm3122 = vcmp.eq.s32.totalorder %v3058, 1
    %vm3123 = vcmp.eq.s32.totalorder %v3059, 1
    %vm3124 = vcmp.eq.s32.totalorder %v3060, 1
    %vm3125 = vcmp.eq.s32.totalorder %v3061, 1
    %vm3126 = vcmp.eq.s32.totalorder %v3062, 1
    %vm3127 = vcmp.eq.s32.totalorder %v3063, 1
    %vm3128 = vcmp.eq.s32.totalorder %v3064, 1
    %vm3129 = vcmp.eq.s32.totalorder %v3065, 1
    %vm3130 = vcmp.eq.s32.totalorder %v3066, 1
    %vm3131 = vcmp.eq.s32.totalorder %v3067, 1
    %vm3132 = vcmp.eq.s32.totalorder %v3068, 1
    %vm3133 = vcmp.eq.s32.totalorder %v3069, 1
    %vm3134 = vcmp.eq.s32.totalorder %v3070, 1
    %vm3135 = vcmp.eq.s32.totalorder %v3071, 1
    %vm3136 = vcmp.eq.s32.totalorder %v3072, 1
    %vm3137 = vcmp.eq.s32.totalorder %v3073, 1
    %vm3138 = vcmp.eq.s32.totalorder %v3074, 1
    %vm3139 = vcmp.eq.s32.totalorder %v3075, 1
    %vm3140 = vcmp.eq.s32.totalorder %v3076, 1
    %vm3141 = vcmp.eq.s32.totalorder %v3077, 1
    %vm3142 = vcmp.eq.s32.totalorder %v3078, 1
    %vm3143 = vcmp.eq.s32.totalorder %v3079, 1
    %v3144 = vsel %vm3080, %v3014, 0.0
    %v3145 = vsel %vm3081, %v3013, 0.0
    %v3146 = vsel %vm3082, %v3012, 0.0
    %v3147 = vsel %vm3083, %v3011, 0.0
    %v3148 = vsel %vm3084, %v3010, 0.0
    %v3149 = vsel %vm3085, %v3009, 0.0
    %v3150 = vsel %vm3086, %v3008, 0.0
    %v3151 = vsel %vm3087, %v3007, 0.0
    %v3152 = vsel %vm3088, %v3006, 0.0
    %v3153 = vsel %vm3089, %v3005, 0.0
    %v3154 = vsel %vm3090, %v3004, 0.0
    %v3155 = vsel %vm3091, %v3003, 0.0
    %v3156 = vsel %vm3092, %v3002, 0.0
    %v3157 = vsel %vm3093, %v3001, 0.0
    %v3158 = vsel %vm3094, %v3000, 0.0
    %v3159 = vsel %vm3095, %v2999, 0.0
    %v3160 = vsel %vm3096, %v2998, 0.0
    %v3161 = vsel %vm3097, %v2997, 0.0
    %v3162 = vsel %vm3098, %v2996, 0.0
    %v3163 = vsel %vm3099, %v2995, 0.0
    %v3164 = vsel %vm3100, %v2994, 0.0
    %v3165 = vsel %vm3101, %v2993, 0.0
    %v3166 = vsel %vm3102, %v2992, 0.0
    %v3167 = vsel %vm3103, %v2991, 0.0
    %v3168 = vsel %vm3104, %v2990, 0.0
    %v3169 = vsel %vm3105, %v2989, 0.0
    %v3170 = vsel %vm3106, %v2988, 0.0
    %v3171 = vsel %vm3107, %v2987, 0.0
    %v3172 = vsel %vm3108, %v2986, 0.0
    %v3173 = vsel %vm3109, %v2985, 0.0
    %v3174 = vsel %vm3110, %v2984, 0.0
    %v3175 = vsel %vm3111, %v2983, 0.0
    %v3176 = vsel %vm3112, %v2982, 0.0
    %v3177 = vsel %vm3113, %v2981, 0.0
    %v3178 = vsel %vm3114, %v2980, 0.0
    %v3179 = vsel %vm3115, %v2979, 0.0
    %v3180 = vsel %vm3116, %v2978, 0.0
    %v3181 = vsel %vm3117, %v2977, 0.0
    %v3182 = vsel %vm3118, %v2976, 0.0
    %v3183 = vsel %vm3119, %v2975, 0.0
    %v3184 = vsel %vm3120, %v2974, 0.0
    %v3185 = vsel %vm3121, %v2973, 0.0
    %v3186 = vsel %vm3122, %v2972, 0.0
    %v3187 = vsel %vm3123, %v2971, 0.0
    %v3188 = vsel %vm3124, %v2970, 0.0
    %v3189 = vsel %vm3125, %v2969, 0.0
    %v3190 = vsel %vm3126, %v2968, 0.0
    %v3191 = vsel %vm3127, %v2967, 0.0
    %v3192 = vsel %vm3128, %v2966, 0.0
    %v3193 = vsel %vm3129, %v2965, 0.0
    %v3194 = vsel %vm3130, %v2964, 0.0
    %v3195 = vsel %vm3131, %v2963, 0.0
    %v3196 = vsel %vm3132, %v2962, 0.0
    %v3197 = vsel %vm3133, %v2961, 0.0
    %v3198 = vsel %vm3134, %v2960, 0.0
    %v3199 = vsel %vm3135, %v2959, 0.0
    %v3200 = vsel %vm3136, %v2958, 0.0
    %v3201 = vsel %vm3137, %v2957, 0.0
    %v3202 = vsel %vm3138, %v2956, 0.0
    %v3203 = vsel %vm3139, %v2955, 0.0
    %v3204 = vsel %vm3140, %v2954, 0.0
    %v3205 = vsel %vm3141, %v2953, 0.0
    %v3206 = vsel %vm3142, %v2952, 0.0
    %v3207 = vsel %vm3143, %v3015, 0.0
    %v3208 = vadd.f32 %v2759, %v3144
    %v3209 = vadd.f32 %v2760, %v3145
    %v3210 = vadd.f32 %v2761, %v3146
    %v3211 = vadd.f32 %v2762, %v3147
    %v3212 = vadd.f32 %v2763, %v3148
    %v3213 = vadd.f32 %v2764, %v3149
    %v3214 = vadd.f32 %v2765, %v3150
    %v3215 = vadd.f32 %v2766, %v3151
    %v3216 = vadd.f32 %v2767, %v3152
    %v3217 = vadd.f32 %v2768, %v3153
    %v3218 = vadd.f32 %v2769, %v3154
    %v3219 = vadd.f32 %v2770, %v3155
    %v3220 = vadd.f32 %v2771, %v3156
    %v3221 = vadd.f32 %v2772, %v3157
    %v3222 = vadd.f32 %v2773, %v3158
    %v3223 = vadd.f32 %v2774, %v3159
    %v3224 = vadd.f32 %v2775, %v3160
    %v3225 = vadd.f32 %v2776, %v3161
    %v3226 = vadd.f32 %v2777, %v3162
    %v3227 = vadd.f32 %v2778, %v3163
    %v3228 = vadd.f32 %v2779, %v3164
    %v3229 = vadd.f32 %v2780, %v3165
    %v3230 = vadd.f32 %v2781, %v3166
    %v3231 = vadd.f32 %v2782, %v3167
    %v3232 = vadd.f32 %v2783, %v3168
    %v3233 = vadd.f32 %v2784, %v3169
    %v3234 = vadd.f32 %v2785, %v3170
    %v3235 = vadd.f32 %v2786, %v3171
    %v3236 = vadd.f32 %v2787, %v3172
    %v3237 = vadd.f32 %v2788, %v3173
    %v3238 = vadd.f32 %v2789, %v3174
    %v3239 = vadd.f32 %v2790, %v3175
    %v3240 = vadd.f32 %v2791, %v3176
    %v3241 = vadd.f32 %v2792, %v3177
    %v3242 = vadd.f32 %v2793, %v3178
    %v3243 = vadd.f32 %v2794, %v3179
    %v3244 = vadd.f32 %v2795, %v3180
    %v3245 = vadd.f32 %v2796, %v3181
    %v3246 = vadd.f32 %v2797, %v3182
    %v3247 = vadd.f32 %v2798, %v3183
    %v3248 = vadd.f32 %v2799, %v3184
    %v3249 = vadd.f32 %v2800, %v3185
    %v3250 = vadd.f32 %v2801, %v3186
    %v3251 = vadd.f32 %v2802, %v3187
    %v3252 = vadd.f32 %v2803, %v3188
    %v3253 = vadd.f32 %v2804, %v3189
    %v3254 = vadd.f32 %v2805, %v3190
    %v3255 = vadd.f32 %v2806, %v3191
    %v3256 = vadd.f32 %v2807, %v3192
    %v3257 = vadd.f32 %v2808, %v3193
    %v3258 = vadd.f32 %v2809, %v3194
    %v3259 = vadd.f32 %v2810, %v3195
    %v3260 = vadd.f32 %v2811, %v3196
    %v3261 = vadd.f32 %v2812, %v3197
    %v3262 = vadd.f32 %v2813, %v3198
    %v3263 = vadd.f32 %v2814, %v3199
    %v3264 = vadd.f32 %v2815, %v3200
    %v3265 = vadd.f32 %v2816, %v3201
    %v3266 = vadd.f32 %v2817, %v3202
    %v3267 = vadd.f32 %v2818, %v3203
    %v3268 = vadd.f32 %v2819, %v3204
    %v3269 = vadd.f32 %v2820, %v3205
    %v3270 = vadd.f32 %v2821, %v3206
    %v3271 = vadd.f32 %v2822, %v3207
    %vm3272 = vcmp.ge.s32.totalorder %v2239, 2
    %vm3273 = vcmp.ge.s32.totalorder %v2240, 2
    %vm3274 = vcmp.ge.s32.totalorder %v2241, 2
    %vm3275 = vcmp.ge.s32.totalorder %v2242, 2
    %vm3276 = vcmp.ge.s32.totalorder %v2243, 2
    %vm3277 = vcmp.ge.s32.totalorder %v2244, 2
    %vm3278 = vcmp.ge.s32.totalorder %v2245, 2
    %vm3279 = vcmp.ge.s32.totalorder %v2246, 2
    %vm3280 = vcmp.ge.s32.totalorder %v2247, 2
    %vm3281 = vcmp.ge.s32.totalorder %v2248, 2
    %vm3282 = vcmp.ge.s32.totalorder %v2249, 2
    %vm3283 = vcmp.ge.s32.totalorder %v2250, 2
    %vm3284 = vcmp.ge.s32.totalorder %v2251, 2
    %vm3285 = vcmp.ge.s32.totalorder %v2252, 2
    %vm3286 = vcmp.ge.s32.totalorder %v2253, 2
    %vm3287 = vcmp.ge.s32.totalorder %v2254, 2
    %vm3288 = vcmp.ge.s32.totalorder %v2255, 2
    %vm3289 = vcmp.ge.s32.totalorder %v2256, 2
    %vm3290 = vcmp.ge.s32.totalorder %v2257, 2
    %vm3291 = vcmp.ge.s32.totalorder %v2258, 2
    %vm3292 = vcmp.ge.s32.totalorder %v2259, 2
    %vm3293 = vcmp.ge.s32.totalorder %v2260, 2
    %vm3294 = vcmp.ge.s32.totalorder %v2261, 2
    %vm3295 = vcmp.ge.s32.totalorder %v2262, 2
    %vm3296 = vcmp.ge.s32.totalorder %v2263, 2
    %vm3297 = vcmp.ge.s32.totalorder %v2264, 2
    %vm3298 = vcmp.ge.s32.totalorder %v2265, 2
    %vm3299 = vcmp.ge.s32.totalorder %v2266, 2
    %vm3300 = vcmp.ge.s32.totalorder %v2267, 2
    %vm3301 = vcmp.ge.s32.totalorder %v2268, 2
    %vm3302 = vcmp.ge.s32.totalorder %v2269, 2
    %vm3303 = vcmp.ge.s32.totalorder %v2270, 2
    %vm3304 = vcmp.ge.s32.totalorder %v2271, 2
    %vm3305 = vcmp.ge.s32.totalorder %v2272, 2
    %vm3306 = vcmp.ge.s32.totalorder %v2273, 2
    %vm3307 = vcmp.ge.s32.totalorder %v2274, 2
    %vm3308 = vcmp.ge.s32.totalorder %v2275, 2
    %vm3309 = vcmp.ge.s32.totalorder %v2276, 2
    %vm3310 = vcmp.ge.s32.totalorder %v2277, 2
    %vm3311 = vcmp.ge.s32.totalorder %v2278, 2
    %vm3312 = vcmp.ge.s32.totalorder %v2279, 2
    %vm3313 = vcmp.ge.s32.totalorder %v2280, 2
    %vm3314 = vcmp.ge.s32.totalorder %v2281, 2
    %vm3315 = vcmp.ge.s32.totalorder %v2282, 2
    %vm3316 = vcmp.ge.s32.totalorder %v2283, 2
    %vm3317 = vcmp.ge.s32.totalorder %v2284, 2
    %vm3318 = vcmp.ge.s32.totalorder %v2285, 2
    %vm3319 = vcmp.ge.s32.totalorder %v2286, 2
    %vm3320 = vcmp.ge.s32.totalorder %v2287, 2
    %vm3321 = vcmp.ge.s32.totalorder %v2288, 2
    %vm3322 = vcmp.ge.s32.totalorder %v2289, 2
    %vm3323 = vcmp.ge.s32.totalorder %v2290, 2
    %vm3324 = vcmp.ge.s32.totalorder %v2291, 2
    %vm3325 = vcmp.ge.s32.totalorder %v2292, 2
    %vm3326 = vcmp.ge.s32.totalorder %v2293, 2
    %vm3327 = vcmp.ge.s32.totalorder %v2294, 2
    %vm3328 = vcmp.ge.s32.totalorder %v2295, 2
    %vm3329 = vcmp.ge.s32.totalorder %v2296, 2
    %vm3330 = vcmp.ge.s32.totalorder %v2297, 2
    %vm3331 = vcmp.ge.s32.totalorder %v2298, 2
    %vm3332 = vcmp.ge.s32.totalorder %v2299, 2
    %vm3333 = vcmp.ge.s32.totalorder %v2300, 2
    %vm3334 = vcmp.ge.s32.totalorder %v2301, 2
    %vm3335 = vcmp.ge.s32.totalorder %v2302, 2
    %v3336 = vrot.slane %v705, 6
    %v3337 = vrot.slane %v711, 6
    %v3338 = vrot.slane %v717, 6
    %v3339 = vrot.slane %v723, 6
    %v3340 = vrot.slane %v729, 6
    %v3341 = vrot.slane %v735, 6
    %v3342 = vrot.slane %v741, 6
    %v3343 = vrot.slane %v747, 6
    %v3344 = vrot.slane %v753, 6
    %v3345 = vrot.slane %v759, 6
    %v3346 = vrot.slane %v765, 6
    %v3347 = vrot.slane %v771, 6
    %v3348 = vrot.slane %v777, 6
    %v3349 = vrot.slane %v783, 6
    %v3350 = vrot.slane %v789, 6
    %v3351 = vrot.slane %v795, 6
    %v3352 = vrot.slane %v801, 6
    %v3353 = vrot.slane %v807, 6
    %v3354 = vrot.slane %v813, 6
    %v3355 = vrot.slane %v819, 6
    %v3356 = vrot.slane %v825, 6
    %v3357 = vrot.slane %v831, 6
    %v3358 = vrot.slane %v837, 6
    %v3359 = vrot.slane %v843, 6
    %v3360 = vrot.slane %v849, 6
    %v3361 = vrot.slane %v855, 6
    %v3362 = vrot.slane %v861, 6
    %v3363 = vrot.slane %v867, 6
    %v3364 = vrot.slane %v873, 6
    %v3365 = vrot.slane %v879, 6
    %v3366 = vrot.slane %v885, 6
    %v3367 = vrot.slane %v891, 6
    %v3368 = vrot.slane %v897, 6
    %v3369 = vrot.slane %v903, 6
    %v3370 = vrot.slane %v909, 6
    %v3371 = vrot.slane %v915, 6
    %v3372 = vrot.slane %v921, 6
    %v3373 = vrot.slane %v927, 6
    %v3374 = vrot.slane %v933, 6
    %v3375 = vrot.slane %v939, 6
    %v3376 = vrot.slane %v945, 6
    %v3377 = vrot.slane %v951, 6
    %v3378 = vrot.slane %v957, 6
    %v3379 = vrot.slane %v963, 6
    %v3380 = vrot.slane %v969, 6
    %v3381 = vrot.slane %v975, 6
    %v3382 = vrot.slane %v981, 6
    %v3383 = vrot.slane %v987, 6
    %v3384 = vrot.slane %v993, 6
    %v3385 = vrot.slane %v999, 6
    %v3386 = vrot.slane %v1005, 6
    %v3387 = vrot.slane %v1011, 6
    %v3388 = vrot.slane %v1017, 6
    %v3389 = vrot.slane %v1023, 6
    %v3390 = vrot.slane %v1029, 6
    %v3391 = vrot.slane %v1035, 6
    %v3392 = vrot.slane %v1041, 6
    %v3393 = vrot.slane %v1047, 6
    %v3394 = vrot.slane %v1053, 6
    %v3395 = vrot.slane %v1059, 6
    %v3396 = vrot.slane %v1065, 6
    %v3397 = vrot.slane %v1071, 6
    %v3398 = vrot.slane %v1077, 6
    %v3399 = vrot.slane %v1083, 6
    %vm3400 = vcmp.lt.s32.totalorder %v1471, 2
    %v3401 = vsel %vm3400, %v3398, %v3399
    %v3402 = vsel %vm3400, %v3397, %v3398
    %v3403 = vsel %vm3400, %v3396, %v3397
    %v3404 = vsel %vm3400, %v3395, %v3396
    %v3405 = vsel %vm3400, %v3394, %v3395
    %v3406 = vsel %vm3400, %v3393, %v3394
    %v3407 = vsel %vm3400, %v3392, %v3393
    %v3408 = vsel %vm3400, %v3391, %v3392
    %v3409 = vsel %vm3400, %v3390, %v3391
    %v3410 = vsel %vm3400, %v3389, %v3390
    %v3411 = vsel %vm3400, %v3388, %v3389
    %v3412 = vsel %vm3400, %v3387, %v3388
    %v3413 = vsel %vm3400, %v3386, %v3387
    %v3414 = vsel %vm3400, %v3385, %v3386
    %v3415 = vsel %vm3400, %v3384, %v3385
    %v3416 = vsel %vm3400, %v3383, %v3384
    %v3417 = vsel %vm3400, %v3382, %v3383
    %v3418 = vsel %vm3400, %v3381, %v3382
    %v3419 = vsel %vm3400, %v3380, %v3381
    %v3420 = vsel %vm3400, %v3379, %v3380
    %v3421 = vsel %vm3400, %v3378, %v3379
    %v3422 = vsel %vm3400, %v3377, %v3378
    %v3423 = vsel %vm3400, %v3376, %v3377
    %v3424 = vsel %vm3400, %v3375, %v3376
    %v3425 = vsel %vm3400, %v3374, %v3375
    %v3426 = vsel %vm3400, %v3373, %v3374
    %v3427 = vsel %vm3400, %v3372, %v3373
    %v3428 = vsel %vm3400, %v3371, %v3372
    %v3429 = vsel %vm3400, %v3370, %v3371
    %v3430 = vsel %vm3400, %v3369, %v3370
    %v3431 = vsel %vm3400, %v3368, %v3369
    %v3432 = vsel %vm3400, %v3367, %v3368
    %v3433 = vsel %vm3400, %v3366, %v3367
    %v3434 = vsel %vm3400, %v3365, %v3366
    %v3435 = vsel %vm3400, %v3364, %v3365
    %v3436 = vsel %vm3400, %v3363, %v3364
    %v3437 = vsel %vm3400, %v3362, %v3363
    %v3438 = vsel %vm3400, %v3361, %v3362
    %v3439 = vsel %vm3400, %v3360, %v3361
    %v3440 = vsel %vm3400, %v3359, %v3360
    %v3441 = vsel %vm3400, %v3358, %v3359
    %v3442 = vsel %vm3400, %v3357, %v3358
    %v3443 = vsel %vm3400, %v3356, %v3357
    %v3444 = vsel %vm3400, %v3355, %v3356
    %v3445 = vsel %vm3400, %v3354, %v3355
    %v3446 = vsel %vm3400, %v3353, %v3354
    %v3447 = vsel %vm3400, %v3352, %v3353
    %v3448 = vsel %vm3400, %v3351, %v3352
    %v3449 = vsel %vm3400, %v3350, %v3351
    %v3450 = vsel %vm3400, %v3349, %v3350
    %v3451 = vsel %vm3400, %v3348, %v3349
    %v3452 = vsel %vm3400, %v3347, %v3348
    %v3453 = vsel %vm3400, %v3346, %v3347
    %v3454 = vsel %vm3400, %v3345, %v3346
    %v3455 = vsel %vm3400, %v3344, %v3345
    %v3456 = vsel %vm3400, %v3343, %v3344
    %v3457 = vsel %vm3400, %v3342, %v3343
    %v3458 = vsel %vm3400, %v3341, %v3342
    %v3459 = vsel %vm3400, %v3340, %v3341
    %v3460 = vsel %vm3400, %v3339, %v3340
    %v3461 = vsel %vm3400, %v3338, %v3339
    %v3462 = vsel %vm3400, %v3337, %v3338
    %v3463 = vsel %vm3400, %v3336, %v3337
    %v3464 = vsel %vm3400, %v3399, %v3336
    %v3465 = vsel %vm3272, 1, 0
    %v3466 = vsel %vm3273, 1, 0
    %v3467 = vsel %vm3274, 1, 0
    %v3468 = vsel %vm3275, 1, 0
    %v3469 = vsel %vm3276, 1, 0
    %v3470 = vsel %vm3277, 1, 0
    %v3471 = vsel %vm3278, 1, 0
    %v3472 = vsel %vm3279, 1, 0
    %v3473 = vsel %vm3280, 1, 0
    %v3474 = vsel %vm3281, 1, 0
    %v3475 = vsel %vm3282, 1, 0
    %v3476 = vsel %vm3283, 1, 0
    %v3477 = vsel %vm3284, 1, 0
    %v3478 = vsel %vm3285, 1, 0
    %v3479 = vsel %vm3286, 1, 0
    %v3480 = vsel %vm3287, 1, 0
    %v3481 = vsel %vm3288, 1, 0
    %v3482 = vsel %vm3289, 1, 0
    %v3483 = vsel %vm3290, 1, 0
    %v3484 = vsel %vm3291, 1, 0
    %v3485 = vsel %vm3292, 1, 0
    %v3486 = vsel %vm3293, 1, 0
    %v3487 = vsel %vm3294, 1, 0
    %v3488 = vsel %vm3295, 1, 0
    %v3489 = vsel %vm3296, 1, 0
    %v3490 = vsel %vm3297, 1, 0
    %v3491 = vsel %vm3298, 1, 0
    %v3492 = vsel %vm3299, 1, 0
    %v3493 = vsel %vm3300, 1, 0
    %v3494 = vsel %vm3301, 1, 0
    %v3495 = vsel %vm3302, 1, 0
    %v3496 = vsel %vm3303, 1, 0
    %v3497 = vsel %vm3304, 1, 0
    %v3498 = vsel %vm3305, 1, 0
    %v3499 = vsel %vm3306, 1, 0
    %v3500 = vsel %vm3307, 1, 0
    %v3501 = vsel %vm3308, 1, 0
    %v3502 = vsel %vm3309, 1, 0
    %v3503 = vsel %vm3310, 1, 0
    %v3504 = vsel %vm3311, 1, 0
    %v3505 = vsel %vm3312, 1, 0
    %v3506 = vsel %vm3313, 1, 0
    %v3507 = vsel %vm3314, 1, 0
    %v3508 = vsel %vm3315, 1, 0
    %v3509 = vsel %vm3316, 1, 0
    %v3510 = vsel %vm3317, 1, 0
    %v3511 = vsel %vm3318, 1, 0
    %v3512 = vsel %vm3319, 1, 0
    %v3513 = vsel %vm3320, 1, 0
    %v3514 = vsel %vm3321, 1, 0
    %v3515 = vsel %vm3322, 1, 0
    %v3516 = vsel %vm3323, 1, 0
    %v3517 = vsel %vm3324, 1, 0
    %v3518 = vsel %vm3325, 1, 0
    %v3519 = vsel %vm3326, 1, 0
    %v3520 = vsel %vm3327, 1, 0
    %v3521 = vsel %vm3328, 1, 0
    %v3522 = vsel %vm3329, 1, 0
    %v3523 = vsel %vm3330, 1, 0
    %v3524 = vsel %vm3331, 1, 0
    %v3525 = vsel %vm3332, 1, 0
    %v3526 = vsel %vm3333, 1, 0
    %v3527 = vsel %vm3334, 1, 0
    %v3528 = vsel %vm3335, 1, 0
    %vm3529 = vcmp.eq.s32.totalorder %v3465, 1
    %vm3530 = vcmp.eq.s32.totalorder %v3466, 1
    %vm3531 = vcmp.eq.s32.totalorder %v3467, 1
    %vm3532 = vcmp.eq.s32.totalorder %v3468, 1
    %vm3533 = vcmp.eq.s32.totalorder %v3469, 1
    %vm3534 = vcmp.eq.s32.totalorder %v3470, 1
    %vm3535 = vcmp.eq.s32.totalorder %v3471, 1
    %vm3536 = vcmp.eq.s32.totalorder %v3472, 1
    %vm3537 = vcmp.eq.s32.totalorder %v3473, 1
    %vm3538 = vcmp.eq.s32.totalorder %v3474, 1
    %vm3539 = vcmp.eq.s32.totalorder %v3475, 1
    %vm3540 = vcmp.eq.s32.totalorder %v3476, 1
    %vm3541 = vcmp.eq.s32.totalorder %v3477, 1
    %vm3542 = vcmp.eq.s32.totalorder %v3478, 1
    %vm3543 = vcmp.eq.s32.totalorder %v3479, 1
    %vm3544 = vcmp.eq.s32.totalorder %v3480, 1
    %vm3545 = vcmp.eq.s32.totalorder %v3481, 1
    %vm3546 = vcmp.eq.s32.totalorder %v3482, 1
    %vm3547 = vcmp.eq.s32.totalorder %v3483, 1
    %vm3548 = vcmp.eq.s32.totalorder %v3484, 1
    %vm3549 = vcmp.eq.s32.totalorder %v3485, 1
    %vm3550 = vcmp.eq.s32.totalorder %v3486, 1
    %vm3551 = vcmp.eq.s32.totalorder %v3487, 1
    %vm3552 = vcmp.eq.s32.totalorder %v3488, 1
    %vm3553 = vcmp.eq.s32.totalorder %v3489, 1
    %vm3554 = vcmp.eq.s32.totalorder %v3490, 1
    %vm3555 = vcmp.eq.s32.totalorder %v3491, 1
    %vm3556 = vcmp.eq.s32.totalorder %v3492, 1
    %vm3557 = vcmp.eq.s32.totalorder %v3493, 1
    %vm3558 = vcmp.eq.s32.totalorder %v3494, 1
    %vm3559 = vcmp.eq.s32.totalorder %v3495, 1
    %vm3560 = vcmp.eq.s32.totalorder %v3496, 1
    %vm3561 = vcmp.eq.s32.totalorder %v3497, 1
    %vm3562 = vcmp.eq.s32.totalorder %v3498, 1
    %vm3563 = vcmp.eq.s32.totalorder %v3499, 1
    %vm3564 = vcmp.eq.s32.totalorder %v3500, 1
    %vm3565 = vcmp.eq.s32.totalorder %v3501, 1
    %vm3566 = vcmp.eq.s32.totalorder %v3502, 1
    %vm3567 = vcmp.eq.s32.totalorder %v3503, 1
    %vm3568 = vcmp.eq.s32.totalorder %v3504, 1
    %vm3569 = vcmp.eq.s32.totalorder %v3505, 1
    %vm3570 = vcmp.eq.s32.totalorder %v3506, 1
    %vm3571 = vcmp.eq.s32.totalorder %v3507, 1
    %vm3572 = vcmp.eq.s32.totalorder %v3508, 1
    %vm3573 = vcmp.eq.s32.totalorder %v3509, 1
    %vm3574 = vcmp.eq.s32.totalorder %v3510, 1
    %vm3575 = vcmp.eq.s32.totalorder %v3511, 1
    %vm3576 = vcmp.eq.s32.totalorder %v3512, 1
    %vm3577 = vcmp.eq.s32.totalorder %v3513, 1
    %vm3578 = vcmp.eq.s32.totalorder %v3514, 1
    %vm3579 = vcmp.eq.s32.totalorder %v3515, 1
    %vm3580 = vcmp.eq.s32.totalorder %v3516, 1
    %vm3581 = vcmp.eq.s32.totalorder %v3517, 1
    %vm3582 = vcmp.eq.s32.totalorder %v3518, 1
    %vm3583 = vcmp.eq.s32.totalorder %v3519, 1
    %vm3584 = vcmp.eq.s32.totalorder %v3520, 1
    %vm3585 = vcmp.eq.s32.totalorder %v3521, 1
    %vm3586 = vcmp.eq.s32.totalorder %v3522, 1
    %vm3587 = vcmp.eq.s32.totalorder %v3523, 1
    %vm3588 = vcmp.eq.s32.totalorder %v3524, 1
    %vm3589 = vcmp.eq.s32.totalorder %v3525, 1
    %vm3590 = vcmp.eq.s32.totalorder %v3526, 1
    %vm3591 = vcmp.eq.s32.totalorder %v3527, 1
    %vm3592 = vcmp.eq.s32.totalorder %v3528, 1
    %v3593 = vsel %vm3529, %v3464, 0.0
    %v3594 = vsel %vm3530, %v3463, 0.0
    %v3595 = vsel %vm3531, %v3462, 0.0
    %v3596 = vsel %vm3532, %v3461, 0.0
    %v3597 = vsel %vm3533, %v3460, 0.0
    %v3598 = vsel %vm3534, %v3459, 0.0
    %v3599 = vsel %vm3535, %v3458, 0.0
    %v3600 = vsel %vm3536, %v3457, 0.0
    %v3601 = vsel %vm3537, %v3456, 0.0
    %v3602 = vsel %vm3538, %v3455, 0.0
    %v3603 = vsel %vm3539, %v3454, 0.0
    %v3604 = vsel %vm3540, %v3453, 0.0
    %v3605 = vsel %vm3541, %v3452, 0.0
    %v3606 = vsel %vm3542, %v3451, 0.0
    %v3607 = vsel %vm3543, %v3450, 0.0
    %v3608 = vsel %vm3544, %v3449, 0.0
    %v3609 = vsel %vm3545, %v3448, 0.0
    %v3610 = vsel %vm3546, %v3447, 0.0
    %v3611 = vsel %vm3547, %v3446, 0.0
    %v3612 = vsel %vm3548, %v3445, 0.0
    %v3613 = vsel %vm3549, %v3444, 0.0
    %v3614 = vsel %vm3550, %v3443, 0.0
    %v3615 = vsel %vm3551, %v3442, 0.0
    %v3616 = vsel %vm3552, %v3441, 0.0
    %v3617 = vsel %vm3553, %v3440, 0.0
    %v3618 = vsel %vm3554, %v3439, 0.0
    %v3619 = vsel %vm3555, %v3438, 0.0
    %v3620 = vsel %vm3556, %v3437, 0.0
    %v3621 = vsel %vm3557, %v3436, 0.0
    %v3622 = vsel %vm3558, %v3435, 0.0
    %v3623 = vsel %vm3559, %v3434, 0.0
    %v3624 = vsel %vm3560, %v3433, 0.0
    %v3625 = vsel %vm3561, %v3432, 0.0
    %v3626 = vsel %vm3562, %v3431, 0.0
    %v3627 = vsel %vm3563, %v3430, 0.0
    %v3628 = vsel %vm3564, %v3429, 0.0
    %v3629 = vsel %vm3565, %v3428, 0.0
    %v3630 = vsel %vm3566, %v3427, 0.0
    %v3631 = vsel %vm3567, %v3426, 0.0
    %v3632 = vsel %vm3568, %v3425, 0.0
    %v3633 = vsel %vm3569, %v3424, 0.0
    %v3634 = vsel %vm3570, %v3423, 0.0
    %v3635 = vsel %vm3571, %v3422, 0.0
    %v3636 = vsel %vm3572, %v3421, 0.0
    %v3637 = vsel %vm3573, %v3420, 0.0
    %v3638 = vsel %vm3574, %v3419, 0.0
    %v3639 = vsel %vm3575, %v3418, 0.0
    %v3640 = vsel %vm3576, %v3417, 0.0
    %v3641 = vsel %vm3577, %v3416, 0.0
    %v3642 = vsel %vm3578, %v3415, 0.0
    %v3643 = vsel %vm3579, %v3414, 0.0
    %v3644 = vsel %vm3580, %v3413, 0.0
    %v3645 = vsel %vm3581, %v3412, 0.0
    %v3646 = vsel %vm3582, %v3411, 0.0
    %v3647 = vsel %vm3583, %v3410, 0.0
    %v3648 = vsel %vm3584, %v3409, 0.0
    %v3649 = vsel %vm3585, %v3408, 0.0
    %v3650 = vsel %vm3586, %v3407, 0.0
    %v3651 = vsel %vm3587, %v3406, 0.0
    %v3652 = vsel %vm3588, %v3405, 0.0
    %v3653 = vsel %vm3589, %v3404, 0.0
    %v3654 = vsel %vm3590, %v3403, 0.0
    %v3655 = vsel %vm3591, %v3402, 0.0
    %v3656 = vsel %vm3592, %v3401, 0.0
    %v3657 = vadd.f32 %v3208, %v3593
    %v3658 = vadd.f32 %v3209, %v3594
    %v3659 = vadd.f32 %v3210, %v3595
    %v3660 = vadd.f32 %v3211, %v3596
    %v3661 = vadd.f32 %v3212, %v3597
    %v3662 = vadd.f32 %v3213, %v3598
    %v3663 = vadd.f32 %v3214, %v3599
    %v3664 = vadd.f32 %v3215, %v3600
    %v3665 = vadd.f32 %v3216, %v3601
    %v3666 = vadd.f32 %v3217, %v3602
    %v3667 = vadd.f32 %v3218, %v3603
    %v3668 = vadd.f32 %v3219, %v3604
    %v3669 = vadd.f32 %v3220, %v3605
    %v3670 = vadd.f32 %v3221, %v3606
    %v3671 = vadd.f32 %v3222, %v3607
    %v3672 = vadd.f32 %v3223, %v3608
    %v3673 = vadd.f32 %v3224, %v3609
    %v3674 = vadd.f32 %v3225, %v3610
    %v3675 = vadd.f32 %v3226, %v3611
    %v3676 = vadd.f32 %v3227, %v3612
    %v3677 = vadd.f32 %v3228, %v3613
    %v3678 = vadd.f32 %v3229, %v3614
    %v3679 = vadd.f32 %v3230, %v3615
    %v3680 = vadd.f32 %v3231, %v3616
    %v3681 = vadd.f32 %v3232, %v3617
    %v3682 = vadd.f32 %v3233, %v3618
    %v3683 = vadd.f32 %v3234, %v3619
    %v3684 = vadd.f32 %v3235, %v3620
    %v3685 = vadd.f32 %v3236, %v3621
    %v3686 = vadd.f32 %v3237, %v3622
    %v3687 = vadd.f32 %v3238, %v3623
    %v3688 = vadd.f32 %v3239, %v3624
    %v3689 = vadd.f32 %v3240, %v3625
    %v3690 = vadd.f32 %v3241, %v3626
    %v3691 = vadd.f32 %v3242, %v3627
    %v3692 = vadd.f32 %v3243, %v3628
    %v3693 = vadd.f32 %v3244, %v3629
    %v3694 = vadd.f32 %v3245, %v3630
    %v3695 = vadd.f32 %v3246, %v3631
    %v3696 = vadd.f32 %v3247, %v3632
    %v3697 = vadd.f32 %v3248, %v3633
    %v3698 = vadd.f32 %v3249, %v3634
    %v3699 = vadd.f32 %v3250, %v3635
    %v3700 = vadd.f32 %v3251, %v3636
    %v3701 = vadd.f32 %v3252, %v3637
    %v3702 = vadd.f32 %v3253, %v3638
    %v3703 = vadd.f32 %v3254, %v3639
    %v3704 = vadd.f32 %v3255, %v3640
    %v3705 = vadd.f32 %v3256, %v3641
    %v3706 = vadd.f32 %v3257, %v3642
    %v3707 = vadd.f32 %v3258, %v3643
    %v3708 = vadd.f32 %v3259, %v3644
    %v3709 = vadd.f32 %v3260, %v3645
    %v3710 = vadd.f32 %v3261, %v3646
    %v3711 = vadd.f32 %v3262, %v3647
    %v3712 = vadd.f32 %v3263, %v3648
    %v3713 = vadd.f32 %v3264, %v3649
    %v3714 = vadd.f32 %v3265, %v3650
    %v3715 = vadd.f32 %v3266, %v3651
    %v3716 = vadd.f32 %v3267, %v3652
    %v3717 = vadd.f32 %v3268, %v3653
    %v3718 = vadd.f32 %v3269, %v3654
    %v3719 = vadd.f32 %v3270, %v3655
    %v3720 = vadd.f32 %v3271, %v3656
    %vm3721 = vcmp.le.s32.totalorder %v2239, 61
    %vm3722 = vcmp.le.s32.totalorder %v2240, 61
    %vm3723 = vcmp.le.s32.totalorder %v2241, 61
    %vm3724 = vcmp.le.s32.totalorder %v2242, 61
    %vm3725 = vcmp.le.s32.totalorder %v2243, 61
    %vm3726 = vcmp.le.s32.totalorder %v2244, 61
    %vm3727 = vcmp.le.s32.totalorder %v2245, 61
    %vm3728 = vcmp.le.s32.totalorder %v2246, 61
    %vm3729 = vcmp.le.s32.totalorder %v2247, 61
    %vm3730 = vcmp.le.s32.totalorder %v2248, 61
    %vm3731 = vcmp.le.s32.totalorder %v2249, 61
    %vm3732 = vcmp.le.s32.totalorder %v2250, 61
    %vm3733 = vcmp.le.s32.totalorder %v2251, 61
    %vm3734 = vcmp.le.s32.totalorder %v2252, 61
    %vm3735 = vcmp.le.s32.totalorder %v2253, 61
    %vm3736 = vcmp.le.s32.totalorder %v2254, 61
    %vm3737 = vcmp.le.s32.totalorder %v2255, 61
    %vm3738 = vcmp.le.s32.totalorder %v2256, 61
    %vm3739 = vcmp.le.s32.totalorder %v2257, 61
    %vm3740 = vcmp.le.s32.totalorder %v2258, 61
    %vm3741 = vcmp.le.s32.totalorder %v2259, 61
    %vm3742 = vcmp.le.s32.totalorder %v2260, 61
    %vm3743 = vcmp.le.s32.totalorder %v2261, 61
    %vm3744 = vcmp.le.s32.totalorder %v2262, 61
    %vm3745 = vcmp.le.s32.totalorder %v2263, 61
    %vm3746 = vcmp.le.s32.totalorder %v2264, 61
    %vm3747 = vcmp.le.s32.totalorder %v2265, 61
    %vm3748 = vcmp.le.s32.totalorder %v2266, 61
    %vm3749 = vcmp.le.s32.totalorder %v2267, 61
    %vm3750 = vcmp.le.s32.totalorder %v2268, 61
    %vm3751 = vcmp.le.s32.totalorder %v2269, 61
    %vm3752 = vcmp.le.s32.totalorder %v2270, 61
    %vm3753 = vcmp.le.s32.totalorder %v2271, 61
    %vm3754 = vcmp.le.s32.totalorder %v2272, 61
    %vm3755 = vcmp.le.s32.totalorder %v2273, 61
    %vm3756 = vcmp.le.s32.totalorder %v2274, 61
    %vm3757 = vcmp.le.s32.totalorder %v2275, 61
    %vm3758 = vcmp.le.s32.totalorder %v2276, 61
    %vm3759 = vcmp.le.s32.totalorder %v2277, 61
    %vm3760 = vcmp.le.s32.totalorder %v2278, 61
    %vm3761 = vcmp.le.s32.totalorder %v2279, 61
    %vm3762 = vcmp.le.s32.totalorder %v2280, 61
    %vm3763 = vcmp.le.s32.totalorder %v2281, 61
    %vm3764 = vcmp.le.s32.totalorder %v2282, 61
    %vm3765 = vcmp.le.s32.totalorder %v2283, 61
    %vm3766 = vcmp.le.s32.totalorder %v2284, 61
    %vm3767 = vcmp.le.s32.totalorder %v2285, 61
    %vm3768 = vcmp.le.s32.totalorder %v2286, 61
    %vm3769 = vcmp.le.s32.totalorder %v2287, 61
    %vm3770 = vcmp.le.s32.totalorder %v2288, 61
    %vm3771 = vcmp.le.s32.totalorder %v2289, 61
    %vm3772 = vcmp.le.s32.totalorder %v2290, 61
    %vm3773 = vcmp.le.s32.totalorder %v2291, 61
    %vm3774 = vcmp.le.s32.totalorder %v2292, 61
    %vm3775 = vcmp.le.s32.totalorder %v2293, 61
    %vm3776 = vcmp.le.s32.totalorder %v2294, 61
    %vm3777 = vcmp.le.s32.totalorder %v2295, 61
    %vm3778 = vcmp.le.s32.totalorder %v2296, 61
    %vm3779 = vcmp.le.s32.totalorder %v2297, 61
    %vm3780 = vcmp.le.s32.totalorder %v2298, 61
    %vm3781 = vcmp.le.s32.totalorder %v2299, 61
    %vm3782 = vcmp.le.s32.totalorder %v2300, 61
    %vm3783 = vcmp.le.s32.totalorder %v2301, 61
    %vm3784 = vcmp.le.s32.totalorder %v2302, 61
    %v3785 = vrot.slane %v1152, 2
    %v3786 = vrot.slane %v1157, 2
    %v3787 = vrot.slane %v1162, 2
    %v3788 = vrot.slane %v1167, 2
    %v3789 = vrot.slane %v1172, 2
    %v3790 = vrot.slane %v1177, 2
    %v3791 = vrot.slane %v1182, 2
    %v3792 = vrot.slane %v1187, 2
    %v3793 = vrot.slane %v1192, 2
    %v3794 = vrot.slane %v1197, 2
    %v3795 = vrot.slane %v1202, 2
    %v3796 = vrot.slane %v1207, 2
    %v3797 = vrot.slane %v1212, 2
    %v3798 = vrot.slane %v1217, 2
    %v3799 = vrot.slane %v1222, 2
    %v3800 = vrot.slane %v1227, 2
    %v3801 = vrot.slane %v1232, 2
    %v3802 = vrot.slane %v1237, 2
    %v3803 = vrot.slane %v1242, 2
    %v3804 = vrot.slane %v1247, 2
    %v3805 = vrot.slane %v1252, 2
    %v3806 = vrot.slane %v1257, 2
    %v3807 = vrot.slane %v1262, 2
    %v3808 = vrot.slane %v1267, 2
    %v3809 = vrot.slane %v1272, 2
    %v3810 = vrot.slane %v1277, 2
    %v3811 = vrot.slane %v1282, 2
    %v3812 = vrot.slane %v1287, 2
    %v3813 = vrot.slane %v1292, 2
    %v3814 = vrot.slane %v1297, 2
    %v3815 = vrot.slane %v1302, 2
    %v3816 = vrot.slane %v1307, 2
    %v3817 = vrot.slane %v1312, 2
    %v3818 = vrot.slane %v1317, 2
    %v3819 = vrot.slane %v1322, 2
    %v3820 = vrot.slane %v1327, 2
    %v3821 = vrot.slane %v1332, 2
    %v3822 = vrot.slane %v1337, 2
    %v3823 = vrot.slane %v1342, 2
    %v3824 = vrot.slane %v1347, 2
    %v3825 = vrot.slane %v1352, 2
    %v3826 = vrot.slane %v1357, 2
    %v3827 = vrot.slane %v1362, 2
    %v3828 = vrot.slane %v1367, 2
    %v3829 = vrot.slane %v1372, 2
    %v3830 = vrot.slane %v1377, 2
    %v3831 = vrot.slane %v1382, 2
    %v3832 = vrot.slane %v1387, 2
    %v3833 = vrot.slane %v1392, 2
    %v3834 = vrot.slane %v1397, 2
    %v3835 = vrot.slane %v1402, 2
    %v3836 = vrot.slane %v1407, 2
    %v3837 = vrot.slane %v1412, 2
    %v3838 = vrot.slane %v1417, 2
    %v3839 = vrot.slane %v1422, 2
    %v3840 = vrot.slane %v1427, 2
    %v3841 = vrot.slane %v1432, 2
    %v3842 = vrot.slane %v1437, 2
    %v3843 = vrot.slane %v1442, 2
    %v3844 = vrot.slane %v1447, 2
    %v3845 = vrot.slane %v1452, 2
    %v3846 = vrot.slane %v1457, 2
    %v3847 = vrot.slane %v1462, 2
    %v3848 = vrot.slane %v1467, 2
    %vm3849 = vcmp.lt.s32.totalorder %v1471, 6
    %v3850 = vsel %vm3849, %v3847, %v3848
    %v3851 = vsel %vm3849, %v3846, %v3847
    %v3852 = vsel %vm3849, %v3845, %v3846
    %v3853 = vsel %vm3849, %v3844, %v3845
    %v3854 = vsel %vm3849, %v3843, %v3844
    %v3855 = vsel %vm3849, %v3842, %v3843
    %v3856 = vsel %vm3849, %v3841, %v3842
    %v3857 = vsel %vm3849, %v3840, %v3841
    %v3858 = vsel %vm3849, %v3839, %v3840
    %v3859 = vsel %vm3849, %v3838, %v3839
    %v3860 = vsel %vm3849, %v3837, %v3838
    %v3861 = vsel %vm3849, %v3836, %v3837
    %v3862 = vsel %vm3849, %v3835, %v3836
    %v3863 = vsel %vm3849, %v3834, %v3835
    %v3864 = vsel %vm3849, %v3833, %v3834
    %v3865 = vsel %vm3849, %v3832, %v3833
    %v3866 = vsel %vm3849, %v3831, %v3832
    %v3867 = vsel %vm3849, %v3830, %v3831
    %v3868 = vsel %vm3849, %v3829, %v3830
    %v3869 = vsel %vm3849, %v3828, %v3829
    %v3870 = vsel %vm3849, %v3827, %v3828
    %v3871 = vsel %vm3849, %v3826, %v3827
    %v3872 = vsel %vm3849, %v3825, %v3826
    %v3873 = vsel %vm3849, %v3824, %v3825
    %v3874 = vsel %vm3849, %v3823, %v3824
    %v3875 = vsel %vm3849, %v3822, %v3823
    %v3876 = vsel %vm3849, %v3821, %v3822
    %v3877 = vsel %vm3849, %v3820, %v3821
    %v3878 = vsel %vm3849, %v3819, %v3820
    %v3879 = vsel %vm3849, %v3818, %v3819
    %v3880 = vsel %vm3849, %v3817, %v3818
    %v3881 = vsel %vm3849, %v3816, %v3817
    %v3882 = vsel %vm3849, %v3815, %v3816
    %v3883 = vsel %vm3849, %v3814, %v3815
    %v3884 = vsel %vm3849, %v3813, %v3814
    %v3885 = vsel %vm3849, %v3812, %v3813
    %v3886 = vsel %vm3849, %v3811, %v3812
    %v3887 = vsel %vm3849, %v3810, %v3811
    %v3888 = vsel %vm3849, %v3809, %v3810
    %v3889 = vsel %vm3849, %v3808, %v3809
    %v3890 = vsel %vm3849, %v3807, %v3808
    %v3891 = vsel %vm3849, %v3806, %v3807
    %v3892 = vsel %vm3849, %v3805, %v3806
    %v3893 = vsel %vm3849, %v3804, %v3805
    %v3894 = vsel %vm3849, %v3803, %v3804
    %v3895 = vsel %vm3849, %v3802, %v3803
    %v3896 = vsel %vm3849, %v3801, %v3802
    %v3897 = vsel %vm3849, %v3800, %v3801
    %v3898 = vsel %vm3849, %v3799, %v3800
    %v3899 = vsel %vm3849, %v3798, %v3799
    %v3900 = vsel %vm3849, %v3797, %v3798
    %v3901 = vsel %vm3849, %v3796, %v3797
    %v3902 = vsel %vm3849, %v3795, %v3796
    %v3903 = vsel %vm3849, %v3794, %v3795
    %v3904 = vsel %vm3849, %v3793, %v3794
    %v3905 = vsel %vm3849, %v3792, %v3793
    %v3906 = vsel %vm3849, %v3791, %v3792
    %v3907 = vsel %vm3849, %v3790, %v3791
    %v3908 = vsel %vm3849, %v3789, %v3790
    %v3909 = vsel %vm3849, %v3788, %v3789
    %v3910 = vsel %vm3849, %v3787, %v3788
    %v3911 = vsel %vm3849, %v3786, %v3787
    %v3912 = vsel %vm3849, %v3785, %v3786
    %v3913 = vsel %vm3849, %v3848, %v3785
    %v3914 = vsel %vm3721, 1, 0
    %v3915 = vsel %vm3722, 1, 0
    %v3916 = vsel %vm3723, 1, 0
    %v3917 = vsel %vm3724, 1, 0
    %v3918 = vsel %vm3725, 1, 0
    %v3919 = vsel %vm3726, 1, 0
    %v3920 = vsel %vm3727, 1, 0
    %v3921 = vsel %vm3728, 1, 0
    %v3922 = vsel %vm3729, 1, 0
    %v3923 = vsel %vm3730, 1, 0
    %v3924 = vsel %vm3731, 1, 0
    %v3925 = vsel %vm3732, 1, 0
    %v3926 = vsel %vm3733, 1, 0
    %v3927 = vsel %vm3734, 1, 0
    %v3928 = vsel %vm3735, 1, 0
    %v3929 = vsel %vm3736, 1, 0
    %v3930 = vsel %vm3737, 1, 0
    %v3931 = vsel %vm3738, 1, 0
    %v3932 = vsel %vm3739, 1, 0
    %v3933 = vsel %vm3740, 1, 0
    %v3934 = vsel %vm3741, 1, 0
    %v3935 = vsel %vm3742, 1, 0
    %v3936 = vsel %vm3743, 1, 0
    %v3937 = vsel %vm3744, 1, 0
    %v3938 = vsel %vm3745, 1, 0
    %v3939 = vsel %vm3746, 1, 0
    %v3940 = vsel %vm3747, 1, 0
    %v3941 = vsel %vm3748, 1, 0
    %v3942 = vsel %vm3749, 1, 0
    %v3943 = vsel %vm3750, 1, 0
    %v3944 = vsel %vm3751, 1, 0
    %v3945 = vsel %vm3752, 1, 0
    %v3946 = vsel %vm3753, 1, 0
    %v3947 = vsel %vm3754, 1, 0
    %v3948 = vsel %vm3755, 1, 0
    %v3949 = vsel %vm3756, 1, 0
    %v3950 = vsel %vm3757, 1, 0
    %v3951 = vsel %vm3758, 1, 0
    %v3952 = vsel %vm3759, 1, 0
    %v3953 = vsel %vm3760, 1, 0
    %v3954 = vsel %vm3761, 1, 0
    %v3955 = vsel %vm3762, 1, 0
    %v3956 = vsel %vm3763, 1, 0
    %v3957 = vsel %vm3764, 1, 0
    %v3958 = vsel %vm3765, 1, 0
    %v3959 = vsel %vm3766, 1, 0
    %v3960 = vsel %vm3767, 1, 0
    %v3961 = vsel %vm3768, 1, 0
    %v3962 = vsel %vm3769, 1, 0
    %v3963 = vsel %vm3770, 1, 0
    %v3964 = vsel %vm3771, 1, 0
    %v3965 = vsel %vm3772, 1, 0
    %v3966 = vsel %vm3773, 1, 0
    %v3967 = vsel %vm3774, 1, 0
    %v3968 = vsel %vm3775, 1, 0
    %v3969 = vsel %vm3776, 1, 0
    %v3970 = vsel %vm3777, 1, 0
    %v3971 = vsel %vm3778, 1, 0
    %v3972 = vsel %vm3779, 1, 0
    %v3973 = vsel %vm3780, 1, 0
    %v3974 = vsel %vm3781, 1, 0
    %v3975 = vsel %vm3782, 1, 0
    %v3976 = vsel %vm3783, 1, 0
    %v3977 = vsel %vm3784, 1, 0
    %vm3978 = vcmp.eq.s32.totalorder %v3914, 1
    %vm3979 = vcmp.eq.s32.totalorder %v3915, 1
    %vm3980 = vcmp.eq.s32.totalorder %v3916, 1
    %vm3981 = vcmp.eq.s32.totalorder %v3917, 1
    %vm3982 = vcmp.eq.s32.totalorder %v3918, 1
    %vm3983 = vcmp.eq.s32.totalorder %v3919, 1
    %vm3984 = vcmp.eq.s32.totalorder %v3920, 1
    %vm3985 = vcmp.eq.s32.totalorder %v3921, 1
    %vm3986 = vcmp.eq.s32.totalorder %v3922, 1
    %vm3987 = vcmp.eq.s32.totalorder %v3923, 1
    %vm3988 = vcmp.eq.s32.totalorder %v3924, 1
    %vm3989 = vcmp.eq.s32.totalorder %v3925, 1
    %vm3990 = vcmp.eq.s32.totalorder %v3926, 1
    %vm3991 = vcmp.eq.s32.totalorder %v3927, 1
    %vm3992 = vcmp.eq.s32.totalorder %v3928, 1
    %vm3993 = vcmp.eq.s32.totalorder %v3929, 1
    %vm3994 = vcmp.eq.s32.totalorder %v3930, 1
    %vm3995 = vcmp.eq.s32.totalorder %v3931, 1
    %vm3996 = vcmp.eq.s32.totalorder %v3932, 1
    %vm3997 = vcmp.eq.s32.totalorder %v3933, 1
    %vm3998 = vcmp.eq.s32.totalorder %v3934, 1
    %vm3999 = vcmp.eq.s32.totalorder %v3935, 1
    %vm4000 = vcmp.eq.s32.totalorder %v3936, 1
    %vm4001 = vcmp.eq.s32.totalorder %v3937, 1
    %vm4002 = vcmp.eq.s32.totalorder %v3938, 1
    %vm4003 = vcmp.eq.s32.totalorder %v3939, 1
    %vm4004 = vcmp.eq.s32.totalorder %v3940, 1
    %vm4005 = vcmp.eq.s32.totalorder %v3941, 1
    %vm4006 = vcmp.eq.s32.totalorder %v3942, 1
    %vm4007 = vcmp.eq.s32.totalorder %v3943, 1
    %vm4008 = vcmp.eq.s32.totalorder %v3944, 1
    %vm4009 = vcmp.eq.s32.totalorder %v3945, 1
    %vm4010 = vcmp.eq.s32.totalorder %v3946, 1
    %vm4011 = vcmp.eq.s32.totalorder %v3947, 1
    %vm4012 = vcmp.eq.s32.totalorder %v3948, 1
    %vm4013 = vcmp.eq.s32.totalorder %v3949, 1
    %vm4014 = vcmp.eq.s32.totalorder %v3950, 1
    %vm4015 = vcmp.eq.s32.totalorder %v3951, 1
    %vm4016 = vcmp.eq.s32.totalorder %v3952, 1
    %vm4017 = vcmp.eq.s32.totalorder %v3953, 1
    %vm4018 = vcmp.eq.s32.totalorder %v3954, 1
    %vm4019 = vcmp.eq.s32.totalorder %v3955, 1
    %vm4020 = vcmp.eq.s32.totalorder %v3956, 1
    %vm4021 = vcmp.eq.s32.totalorder %v3957, 1
    %vm4022 = vcmp.eq.s32.totalorder %v3958, 1
    %vm4023 = vcmp.eq.s32.totalorder %v3959, 1
    %vm4024 = vcmp.eq.s32.totalorder %v3960, 1
    %vm4025 = vcmp.eq.s32.totalorder %v3961, 1
    %vm4026 = vcmp.eq.s32.totalorder %v3962, 1
    %vm4027 = vcmp.eq.s32.totalorder %v3963, 1
    %vm4028 = vcmp.eq.s32.totalorder %v3964, 1
    %vm4029 = vcmp.eq.s32.totalorder %v3965, 1
    %vm4030 = vcmp.eq.s32.totalorder %v3966, 1
    %vm4031 = vcmp.eq.s32.totalorder %v3967, 1
    %vm4032 = vcmp.eq.s32.totalorder %v3968, 1
    %vm4033 = vcmp.eq.s32.totalorder %v3969, 1
    %vm4034 = vcmp.eq.s32.totalorder %v3970, 1
    %vm4035 = vcmp.eq.s32.totalorder %v3971, 1
    %vm4036 = vcmp.eq.s32.totalorder %v3972, 1
    %vm4037 = vcmp.eq.s32.totalorder %v3973, 1
    %vm4038 = vcmp.eq.s32.totalorder %v3974, 1
    %vm4039 = vcmp.eq.s32.totalorder %v3975, 1
    %vm4040 = vcmp.eq.s32.totalorder %v3976, 1
    %vm4041 = vcmp.eq.s32.totalorder %v3977, 1
    %v4042 = vsel %vm3978, %v3912, 0.0
    %v4043 = vsel %vm3979, %v3911, 0.0
    %v4044 = vsel %vm3980, %v3910, 0.0
    %v4045 = vsel %vm3981, %v3909, 0.0
    %v4046 = vsel %vm3982, %v3908, 0.0
    %v4047 = vsel %vm3983, %v3907, 0.0
    %v4048 = vsel %vm3984, %v3906, 0.0
    %v4049 = vsel %vm3985, %v3905, 0.0
    %v4050 = vsel %vm3986, %v3904, 0.0
    %v4051 = vsel %vm3987, %v3903, 0.0
    %v4052 = vsel %vm3988, %v3902, 0.0
    %v4053 = vsel %vm3989, %v3901, 0.0
    %v4054 = vsel %vm3990, %v3900, 0.0
    %v4055 = vsel %vm3991, %v3899, 0.0
    %v4056 = vsel %vm3992, %v3898, 0.0
    %v4057 = vsel %vm3993, %v3897, 0.0
    %v4058 = vsel %vm3994, %v3896, 0.0
    %v4059 = vsel %vm3995, %v3895, 0.0
    %v4060 = vsel %vm3996, %v3894, 0.0
    %v4061 = vsel %vm3997, %v3893, 0.0
    %v4062 = vsel %vm3998, %v3892, 0.0
    %v4063 = vsel %vm3999, %v3891, 0.0
    %v4064 = vsel %vm4000, %v3890, 0.0
    %v4065 = vsel %vm4001, %v3889, 0.0
    %v4066 = vsel %vm4002, %v3888, 0.0
    %v4067 = vsel %vm4003, %v3887, 0.0
    %v4068 = vsel %vm4004, %v3886, 0.0
    %v4069 = vsel %vm4005, %v3885, 0.0
    %v4070 = vsel %vm4006, %v3884, 0.0
    %v4071 = vsel %vm4007, %v3883, 0.0
    %v4072 = vsel %vm4008, %v3882, 0.0
    %v4073 = vsel %vm4009, %v3881, 0.0
    %v4074 = vsel %vm4010, %v3880, 0.0
    %v4075 = vsel %vm4011, %v3879, 0.0
    %v4076 = vsel %vm4012, %v3878, 0.0
    %v4077 = vsel %vm4013, %v3877, 0.0
    %v4078 = vsel %vm4014, %v3876, 0.0
    %v4079 = vsel %vm4015, %v3875, 0.0
    %v4080 = vsel %vm4016, %v3874, 0.0
    %v4081 = vsel %vm4017, %v3873, 0.0
    %v4082 = vsel %vm4018, %v3872, 0.0
    %v4083 = vsel %vm4019, %v3871, 0.0
    %v4084 = vsel %vm4020, %v3870, 0.0
    %v4085 = vsel %vm4021, %v3869, 0.0
    %v4086 = vsel %vm4022, %v3868, 0.0
    %v4087 = vsel %vm4023, %v3867, 0.0
    %v4088 = vsel %vm4024, %v3866, 0.0
    %v4089 = vsel %vm4025, %v3865, 0.0
    %v4090 = vsel %vm4026, %v3864, 0.0
    %v4091 = vsel %vm4027, %v3863, 0.0
    %v4092 = vsel %vm4028, %v3862, 0.0
    %v4093 = vsel %vm4029, %v3861, 0.0
    %v4094 = vsel %vm4030, %v3860, 0.0
    %v4095 = vsel %vm4031, %v3859, 0.0
    %v4096 = vsel %vm4032, %v3858, 0.0
    %v4097 = vsel %vm4033, %v3857, 0.0
    %v4098 = vsel %vm4034, %v3856, 0.0
    %v4099 = vsel %vm4035, %v3855, 0.0
    %v4100 = vsel %vm4036, %v3854, 0.0
    %v4101 = vsel %vm4037, %v3853, 0.0
    %v4102 = vsel %vm4038, %v3852, 0.0
    %v4103 = vsel %vm4039, %v3851, 0.0
    %v4104 = vsel %vm4040, %v3850, 0.0
    %v4105 = vsel %vm4041, %v3913, 0.0
    %v4106 = vadd.f32 %v3657, %v4042
    %v4107 = vadd.f32 %v3658, %v4043
    %v4108 = vadd.f32 %v3659, %v4044
    %v4109 = vadd.f32 %v3660, %v4045
    %v4110 = vadd.f32 %v3661, %v4046
    %v4111 = vadd.f32 %v3662, %v4047
    %v4112 = vadd.f32 %v3663, %v4048
    %v4113 = vadd.f32 %v3664, %v4049
    %v4114 = vadd.f32 %v3665, %v4050
    %v4115 = vadd.f32 %v3666, %v4051
    %v4116 = vadd.f32 %v3667, %v4052
    %v4117 = vadd.f32 %v3668, %v4053
    %v4118 = vadd.f32 %v3669, %v4054
    %v4119 = vadd.f32 %v3670, %v4055
    %v4120 = vadd.f32 %v3671, %v4056
    %v4121 = vadd.f32 %v3672, %v4057
    %v4122 = vadd.f32 %v3673, %v4058
    %v4123 = vadd.f32 %v3674, %v4059
    %v4124 = vadd.f32 %v3675, %v4060
    %v4125 = vadd.f32 %v3676, %v4061
    %v4126 = vadd.f32 %v3677, %v4062
    %v4127 = vadd.f32 %v3678, %v4063
    %v4128 = vadd.f32 %v3679, %v4064
    %v4129 = vadd.f32 %v3680, %v4065
    %v4130 = vadd.f32 %v3681, %v4066
    %v4131 = vadd.f32 %v3682, %v4067
    %v4132 = vadd.f32 %v3683, %v4068
    %v4133 = vadd.f32 %v3684, %v4069
    %v4134 = vadd.f32 %v3685, %v4070
    %v4135 = vadd.f32 %v3686, %v4071
    %v4136 = vadd.f32 %v3687, %v4072
    %v4137 = vadd.f32 %v3688, %v4073
    %v4138 = vadd.f32 %v3689, %v4074
    %v4139 = vadd.f32 %v3690, %v4075
    %v4140 = vadd.f32 %v3691, %v4076
    %v4141 = vadd.f32 %v3692, %v4077
    %v4142 = vadd.f32 %v3693, %v4078
    %v4143 = vadd.f32 %v3694, %v4079
    %v4144 = vadd.f32 %v3695, %v4080
    %v4145 = vadd.f32 %v3696, %v4081
    %v4146 = vadd.f32 %v3697, %v4082
    %v4147 = vadd.f32 %v3698, %v4083
    %v4148 = vadd.f32 %v3699, %v4084
    %v4149 = vadd.f32 %v3700, %v4085
    %v4150 = vadd.f32 %v3701, %v4086
    %v4151 = vadd.f32 %v3702, %v4087
    %v4152 = vadd.f32 %v3703, %v4088
    %v4153 = vadd.f32 %v3704, %v4089
    %v4154 = vadd.f32 %v3705, %v4090
    %v4155 = vadd.f32 %v3706, %v4091
    %v4156 = vadd.f32 %v3707, %v4092
    %v4157 = vadd.f32 %v3708, %v4093
    %v4158 = vadd.f32 %v3709, %v4094
    %v4159 = vadd.f32 %v3710, %v4095
    %v4160 = vadd.f32 %v3711, %v4096
    %v4161 = vadd.f32 %v3712, %v4097
    %v4162 = vadd.f32 %v3713, %v4098
    %v4163 = vadd.f32 %v3714, %v4099
    %v4164 = vadd.f32 %v3715, %v4100
    %v4165 = vadd.f32 %v3716, %v4101
    %v4166 = vadd.f32 %v3717, %v4102
    %v4167 = vadd.f32 %v3718, %v4103
    %v4168 = vadd.f32 %v3719, %v4104
    %v4169 = vadd.f32 %v3720, %v4105
    %4170 = vst [vmem:[#allocation7] sm:$0xff] %v4106
    %4171 = vst [vmem:[#allocation7 + $0x8] sm:$0xff] %v4107
    %4172 = vst [vmem:[#allocation7 + $0x10] sm:$0xff] %v4108
    %4173 = vst [vmem:[#allocation7 + $0x18] sm:$0xff] %v4109
    %4174 = vst [vmem:[#allocation7 + $0x20] sm:$0xff] %v4110
    %4175 = vst [vmem:[#allocation7 + $0x28] sm:$0xff] %v4111
    %4176 = vst [vmem:[#allocation7 + $0x30] sm:$0xff] %v4112
    %4177 = vst [vmem:[#allocation7 + $0x38] sm:$0xff] %v4113
    %4178 = vst [vmem:[#allocation7 + $0x40] sm:$0xff] %v4114
    %4179 = vst [vmem:[#allocation7 + $0x48] sm:$0xff] %v4115
    %4180 = vst [vmem:[#allocation7 + $0x50] sm:$0xff] %v4116
    %4181 = vst [vmem:[#allocation7 + $0x58] sm:$0xff] %v4117
    %4182 = vst [vmem:[#allocation7 + $0x60] sm:$0xff] %v4118
    %4183 = vst [vmem:[#allocation7 + $0x68] sm:$0xff] %v4119
    %4184 = vst [vmem:[#allocation7 + $0x70] sm:$0xff] %v4120
    %4185 = vst [vmem:[#allocation7 + $0x78] sm:$0xff] %v4121
    %4186 = vst [vmem:[#allocation7 + $0x80] sm:$0xff] %v4122
    %4187 = vst [vmem:[#allocation7 + $0x88] sm:$0xff] %v4123
    %4188 = vst [vmem:[#allocation7 + $0x90] sm:$0xff] %v4124
    %4189 = vst [vmem:[#allocation7 + $0x98] sm:$0xff] %v4125
    %4190 = vst [vmem:[#allocation7 + $0xa0] sm:$0xff] %v4126
    %4191 = vst [vmem:[#allocation7 + $0xa8] sm:$0xff] %v4127
    %4192 = vst [vmem:[#allocation7 + $0xb0] sm:$0xff] %v4128
    %4193 = vst [vmem:[#allocation7 + $0xb8] sm:$0xff] %v4129
    %4194 = vst [vmem:[#allocation7 + $0xc0] sm:$0xff] %v4130
    %4195 = vst [vmem:[#allocation7 + $0xc8] sm:$0xff] %v4131
    %4196 = vst [vmem:[#allocation7 + $0xd0] sm:$0xff] %v4132
    %4197 = vst [vmem:[#allocation7 + $0xd8] sm:$0xff] %v4133
    %4198 = vst [vmem:[#allocation7 + $0xe0] sm:$0xff] %v4134
    %4199 = vst [vmem:[#allocation7 + $0xe8] sm:$0xff] %v4135
    %4200 = vst [vmem:[#allocation7 + $0xf0] sm:$0xff] %v4136
    %4201 = vst [vmem:[#allocation7 + $0xf8] sm:$0xff] %v4137
    %4202 = vst [vmem:[#allocation7 + $0x100] sm:$0xff] %v4138
    %4203 = vst [vmem:[#allocation7 + $0x108] sm:$0xff] %v4139
    %4204 = vst [vmem:[#allocation7 + $0x110] sm:$0xff] %v4140
    %4205 = vst [vmem:[#allocation7 + $0x118] sm:$0xff] %v4141
    %4206 = vst [vmem:[#allocation7 + $0x120] sm:$0xff] %v4142
    %4207 = vst [vmem:[#allocation7 + $0x128] sm:$0xff] %v4143
    %4208 = vst [vmem:[#allocation7 + $0x130] sm:$0xff] %v4144
    %4209 = vst [vmem:[#allocation7 + $0x138] sm:$0xff] %v4145
    %4210 = vst [vmem:[#allocation7 + $0x140] sm:$0xff] %v4146
    %4211 = vst [vmem:[#allocation7 + $0x148] sm:$0xff] %v4147
    %4212 = vst [vmem:[#allocation7 + $0x150] sm:$0xff] %v4148
    %4213 = vst [vmem:[#allocation7 + $0x158] sm:$0xff] %v4149
    %4214 = vst [vmem:[#allocation7 + $0x160] sm:$0xff] %v4150
    %4215 = vst [vmem:[#allocation7 + $0x168] sm:$0xff] %v4151
    %4216 = vst [vmem:[#allocation7 + $0x170] sm:$0xff] %v4152
    %4217 = vst [vmem:[#allocation7 + $0x178] sm:$0xff] %v4153
    %4218 = vst [vmem:[#allocation7 + $0x180] sm:$0xff] %v4154
    %4219 = vst [vmem:[#allocation7 + $0x188] sm:$0xff] %v4155
    %4220 = vst [vmem:[#allocation7 + $0x190] sm:$0xff] %v4156
    %4221 = vst [vmem:[#allocation7 + $0x198] sm:$0xff] %v4157
    %4222 = vst [vmem:[#allocation7 + $0x1a0] sm:$0xff] %v4158
    %4223 = vst [vmem:[#allocation7 + $0x1a8] sm:$0xff] %v4159
    %4224 = vst [vmem:[#allocation7 + $0x1b0] sm:$0xff] %v4160
    %4225 = vst [vmem:[#allocation7 + $0x1b8] sm:$0xff] %v4161
    %4226 = vst [vmem:[#allocation7 + $0x1c0] sm:$0xff] %v4162
    %4227 = vst [vmem:[#allocation7 + $0x1c8] sm:$0xff] %v4163
    %4228 = vst [vmem:[#allocation7 + $0x1d0] sm:$0xff] %v4164
    %4229 = vst [vmem:[#allocation7 + $0x1d8] sm:$0xff] %v4165
    %4230 = vst [vmem:[#allocation7 + $0x1e0] sm:$0xff] %v4166
    %4231 = vst [vmem:[#allocation7 + $0x1e8] sm:$0xff] %v4167
    %4232 = vst [vmem:[#allocation7 + $0x1f0] sm:$0xff] %v4168
    %4233 = vst [vmem:[#allocation7 + $0x1f8] sm:$0xff] %v4169
    // Predicated region
    $region22: #{tpu_custom_call.1} parent=1 // pred_check
      _
    $region23: #{tpu_custom_call.1} parent=1 // pred_check_branch
      %4235 = sbr.rel (0) target = $region25
    $region24: #{tpu_custom_call.1} parent=1 // pred_region
      %s4237 = ssub.s32 8192, 8192
      %4238 = vsyncadd [#allocation4], %s4237
      %s4239 = sshll.u32 [#allocation7], 4
      %s4240 = int_to_ptr.vmem [resolvable:$true] %s4239
      %4245 = dma.vmem_to_hbm [thread:$0]  %s4240, 8192, %s3, [#allocation4], 128, 128, 8
    $region25: #{tpu_custom_call.1} parent=1 // pred_fallthru
      _
    // Predicated region
    $region26: #{tpu_custom_call.1} parent=1 // pred_check
      _
    $region27: #{tpu_custom_call.1} parent=1 // pred_check_branch
      %4247 = sbr.rel (0) target = $region29
    $region28: #{tpu_custom_call.1} parent=1 // pred_region
      %4248 = dma.done [#allocation4], 8192
    $region29: #{tpu_custom_call.1} parent=1 // pred_fallthru
      _
    %4249 = vsyncpa [#allocation3], 1
    %4250 = vsyncpa [#allocation6], 1
    %4251 = vsyncpa [#allocation4], 1

</llo_original>
